<compile_context>
chip_gen: v5e
topology: v5e:2x2
jax: 0.10.0
libtpu: 0.0.40
codegen_flags: <defaults>
</compile_context>

<pallas_src>
import functools

import jax
import jax.numpy as jnp
from jax import lax
from jax.experimental import pallas as pl
from jax.experimental.pallas import tpu as pltpu


def _round_up(x, m):
    return (x + m - 1) // m * m


def _lstm_pooler_kernel(x_ref, wih_ref, whh_ref, b_ref, wfc_ref, bfc_ref,
                        out_ref, h_ref, c_ref, gx0_ref, gx1_ref,
                        *, seq_len, seq_len_padded, unroll, matmul_dtype):
    """Grid = (batch_split, num_chunks + 1).

    Step s prefetch-projects x-chunk min(s, nc-1) and runs the recurrence over
    chunk s-1 (skewed software pipeline; step 0 is the prologue, the last step
    is the drain + finalize).

    x_ref:   (Bc, Tt, H)     streamed input chunk (double-buffered by Pallas)
    wih_ref: (H,  4*Hp)      input->gate weights, gate-padded, matmul dtype
    whh_ref: (Hp, 4*Hp)      hidden->gate weights, gate-padded (f32 default)
    b_ref:   (1,  4*Hp)      combined bias (b_ih + b_hh), gate-padded, f32
    wfc_ref: (Hp, H)         final Linear weights (pre-transposed, row-padded)
    bfc_ref: (1,  H)         final Linear bias
    out_ref: (Bc, H)         pooled output (written on the last grid step)
    h_ref, c_ref:  (Bc, Hp)       f32 recurrent state (persists across steps)
    gx0/gx1_ref:   (Bc, Tt, 4Hp)  f32 double-buffered hoisted x-projection
    """
    s = pl.program_id(1)
    n_steps = pl.num_programs(1)              # = num_chunks + 1
    Bc, Tt, H = x_ref.shape
    Hp = h_ref.shape[1]
    G = 4 * Hp
    has_pad = seq_len_padded != seq_len       # static Python bool

    def project(write_gx_ref):
        # Hoisted input projection for the chunk resident in x_ref: one big
        # (Bc*Tt, H) x (H, G) MXU matmul, off the serial critical path.
        x2 = x_ref[...].astype(matmul_dtype).reshape(Bc * Tt, H)
        gx = jnp.dot(x2, wih_ref[...], preferred_element_type=jnp.float32)
        write_gx_ref[...] = (gx + b_ref[...]).reshape(Bc, Tt, G)

    def run_chunk(read_gx_ref):
        # Serial recurrence over the chunk projected on the PREVIOUS grid step.
        whh = whh_ref[...]
        chunk_start = (s - 1) * Tt            # global index of this chunk's t=0

        def body(t, carry):
            h, c = carry
            gx_t = read_gx_ref[:, pl.ds(t, 1), :][:, 0, :]          # (Bc, G)
            h_mm = h if whh.dtype == jnp.float32 else h.astype(whh.dtype)
            gates = gx_t + jnp.dot(h_mm, whh,
                                   preferred_element_type=jnp.float32)
            # Padded gate layout [i|f|o|g]: one sigmoid over a contiguous
            # (Bc, 3*Hp) slab, tanh over the tail slab.
            sig = jax.nn.sigmoid(gates[:, :3 * Hp])
            i_g = sig[:, 0 * Hp:1 * Hp]
            f_g = sig[:, 1 * Hp:2 * Hp]
            o_g = sig[:, 2 * Hp:3 * Hp]
            g_g = jnp.tanh(gates[:, 3 * Hp:])
            c_new = f_g * c + i_g * g_g
            h_new = o_g * jnp.tanh(c_new)
            if has_pad:                       # emitted only when T was padded
                keep = (chunk_start + t) < seq_len
                c_new = jnp.where(keep, c_new, c)
                h_new = jnp.where(keep, h_new, h)
            return h_new, c_new

        h_fin, c_fin = lax.fori_loop(0, Tt, body, (h_ref[...], c_ref[...]),
                                     unroll=unroll)
        h_ref[...] = h_fin
        c_ref[...] = c_fin

    @pl.when(s == 0)
    def _prologue():                          # init state, project chunk 0
        h_ref[...] = jnp.zeros_like(h_ref)
        c_ref[...] = jnp.zeros_like(c_ref)
        project(gx0_ref)

    # Steady state: parity-specialized so next-chunk projection and current-
    # chunk recurrence sit in ONE basic block on DISJOINT VMEM refs.  Chunk k
    # lives in gx{k % 2}.  On the final drain step the projection is a cheap
    # redundant re-projection of the last chunk into the unused buffer (kept
    # unguarded so the branch stays a single schedulable block).
    @pl.when(s % 2 == 1)
    def _odd_step():                          # write gx1, consume gx0
        project(gx1_ref)
        run_chunk(gx0_ref)

    @pl.when(jnp.logical_and(s > 0, s % 2 == 0))
    def _even_step():                         # write gx0, consume gx1
        project(gx0_ref)
        run_chunk(gx1_ref)

    @pl.when(s == n_steps - 1)
    def _finalize():                          # out = fc(h_T)
        out = jnp.dot(h_ref[...].astype(matmul_dtype), wfc_ref[...],
                      preferred_element_type=jnp.float32) + bfc_ref[...]
        out_ref[...] = out.astype(out_ref.dtype)


def _pick_time_chunk(T, max_chunk, grain):
    """Pick Tt (multiple of `grain`) and the padded sequence length T_pad."""
    max_chunk = max(grain, (max_chunk // grain) * grain)
    best = None
    for tt in range(grain, min(T, max_chunk) + 1, grain):
        if T % tt == 0:                       # exact divisor: no padded steps
            best = tt
    if best is not None:
        return best, T
    best_tt, best_pad = grain, _round_up(T, grain)
    for tt in range(grain, max_chunk + 1, grain):
        tp = _round_up(T, tt)
        if tp < best_pad or (tp == best_pad and tt > best_tt):
            best_tt, best_pad = tt, tp
    return best_tt, best_pad


def _pick_unroll(Tt, Bc, Hp):
    """Full unroll only while live state stays far from the 64-vreg file."""
    state_vregs = -(-Bc // 8) * -(-Hp // 128)
    if state_vregs <= 2 and Tt <= 32:
        return True
    for u in (8, 4, 2):
        if Tt % u == 0:
            return u
    return 1


def _vmem_cap_bytes():
    """Per-core VMEM request cap (leave headroom under v7x's 64 MiB/TC)."""
    try:
        kind = jax.devices()[0].device_kind.lower()
    except Exception:
        kind = ""
    if ("v5" in kind) or ("v6" in kind) or ("trillium" in kind):
        return 100 << 20                      # 128 MiB physical
    return 60 << 20                           # v7x / unknown


def _prepare_params(params, H, Hp, matmul_dtype, whh_dtype):
    """Transpose to right-multiply layout, pad each gate to Hp lanes, and
    reorder PyTorch's (i, f, g, o) gates to (i, f, o, g).  Padded rows/columns
    are zero, which keeps the padded h/c lanes exactly zero all the way
    through the recurrence and the final Linear."""
    G = 4 * Hp
    wih_t = params["w_ih"].T.astype(jnp.float32)               # (H, 4H)
    whh_t = params["w_hh"].T.astype(jnp.float32)               # (H, 4H)
    bias = (params["b_ih"] + params["b_hh"]).astype(jnp.float32)
    wfc_t = params["w_fc"].T.astype(jnp.float32)                # (H, H)

    wih_p = jnp.zeros((H, G), jnp.float32)
    whh_p = jnp.zeros((Hp, G), jnp.float32)
    b_p = jnp.zeros((1, G), jnp.float32)
    for dst, src in enumerate((0, 1, 3, 2)):                    # -> i, f, o, g
        wih_p = wih_p.at[:, dst * Hp:dst * Hp + H].set(
            wih_t[:, src * H:(src + 1) * H])
        whh_p = whh_p.at[:H, dst * Hp:dst * Hp + H].set(
            whh_t[:, src * H:(src + 1) * H])
        b_p = b_p.at[0, dst * Hp:dst * Hp + H].set(bias[src * H:(src + 1) * H])
    wfc_p = jnp.zeros((Hp, H), jnp.float32).at[:H, :].set(wfc_t)
    bfc = params["b_fc"].reshape(1, H).astype(jnp.float32)
    return (wih_p.astype(matmul_dtype), whh_p.astype(whh_dtype), b_p,
            wfc_p.astype(matmul_dtype), bfc)


def lstm_pooler(hidden_states, params, *, matmul_dtype=jnp.bfloat16,
                whh_dtype=jnp.float32, max_time_chunk=None, batch_split=None):
    """hidden_states: (B, T, H). Returns (B, H) float32 pooled output."""
    B, T, H = hidden_states.shape
    Hp = _round_up(H, 128)                    # lane-aligned per-gate width
    G = 4 * Hp

    cap = _vmem_cap_bytes()
    if max_time_chunk is None:
        max_time_chunk = 64 if cap >= (96 << 20) else 32

    grain = 16 if jnp.dtype(hidden_states.dtype).itemsize == 2 else 8
    Tt, T_pad = _pick_time_chunk(T, max_time_chunk, grain)
    num_chunks = T_pad // Tt

    if batch_split is None:                   # v7x: shard batch over the 2 TCs
        batch_split = 2 if (B % 2 == 0 and (B // 2) % 8 == 0) else 1
    assert B % batch_split == 0
    Bc = B // batch_split

    x = hidden_states
    if T_pad != T:
        x = jnp.pad(x, ((0, 0), (0, T_pad - T), (0, 0)))

    wih_p, whh_p, b_p, wfc_p, bfc = _prepare_params(params, H, Hp,
                                                    matmul_dtype, whh_dtype)
    unroll = _pick_unroll(Tt, Bc, Hp)

    # VMEM plan: every pallas_call input is double-buffered by default, so the
    # resident weights are counted twice; the requested limit stays below the
    # physical budget (60 MiB on v7x/unknown, ~100 MiB on v5e/v6e).
    x_item = jnp.dtype(x.dtype).itemsize
    w_item = jnp.dtype(matmul_dtype).itemsize
    r_item = jnp.dtype(whh_dtype).itemsize
    footprint = (
        2 * Bc * Tt * H * x_item              # streamed x chunks
        + 2 * H * G * w_item                  # W_ih
        + 2 * Hp * G * r_item                 # W_hh
        + 2 * G * 4 + 2 * H * 4               # biases
        + 2 * Hp * H * w_item                 # W_fc
        + 2 * Bc * H * 4                      # resident output block
        + 2 * Bc * Hp * 4                     # h, c state
        + 2 * Bc * Tt * G * 4                 # gx double buffer
    )
    vmem_limit = int(min(cap, max(footprint + footprint // 2 + (1 << 20),
                                  8 << 20)))

    kernel = functools.partial(_lstm_pooler_kernel, seq_len=T,
                               seq_len_padded=T_pad, unroll=unroll,
                               matmul_dtype=matmul_dtype)
    return pl.pallas_call(
        kernel,
        out_shape=jax.ShapeDtypeStruct((B, H), jnp.float32),
        grid_spec=pltpu.PrefetchScalarGridSpec(
            num_scalar_prefetch=0,
            grid=(batch_split, num_chunks + 1),        # +1 drain step (skew)
            in_specs=[
                pl.BlockSpec((Bc, Tt, H),
                             lambda cb, s: (cb, jnp.minimum(s, num_chunks - 1), 0)),
                pl.BlockSpec((H, G), lambda cb, s: (0, 0)),    # resident W_ih
                pl.BlockSpec((Hp, G), lambda cb, s: (0, 0)),   # resident W_hh
                pl.BlockSpec((1, G), lambda cb, s: (0, 0)),    # resident bias
                pl.BlockSpec((Hp, H), lambda cb, s: (0, 0)),   # resident W_fc
                pl.BlockSpec((1, H), lambda cb, s: (0, 0)),    # resident b_fc
            ],
            out_specs=pl.BlockSpec((Bc, H), lambda cb, s: (cb, 0)),
            scratch_shapes=[
                pltpu.VMEM((Bc, Hp), jnp.float32),      # h state
                pltpu.VMEM((Bc, Hp), jnp.float32),      # c state
                pltpu.VMEM((Bc, Tt, G), jnp.float32),   # gx buffer 0
                pltpu.VMEM((Bc, Tt, G), jnp.float32),   # gx buffer 1
            ],
        ),
        compiler_params=pltpu.CompilerParams(
            dimension_semantics=("parallel", "arbitrary"),
            vmem_limit_bytes=vmem_limit,
        ),
    )(x, wih_p, whh_p, b_p, wfc_p, bfc)


def init_params(key, hidden_size):
    """Deterministic init matching PyTorch LSTM/Linear parameter shapes."""
    H = hidden_size
    k = 1.0 / jnp.sqrt(jnp.float32(H))
    keys = jax.random.split(key, 6)
    u = lambda kk, shape: jax.random.uniform(kk, shape, jnp.float32, -k, k)
    return {
        "w_ih": u(keys[0], (4 * H, H)),   # LSTM weight_ih_l0
        "w_hh": u(keys[1], (4 * H, H)),   # LSTM weight_hh_l0
        "b_ih": u(keys[2], (4 * H,)),     # LSTM bias_ih_l0
        "b_hh": u(keys[3], (4 * H,)),     # LSTM bias_hh_l0
        "w_fc": u(keys[4], (H, H)),       # Linear weight
        "b_fc": u(keys[5], (H,)),         # Linear bias
    }


def lstm_pooler_ref(hidden_states, params):
    """Pure-JAX f32 reference (lax.scan) matching the PyTorch semantics."""
    B, T, H = hidden_states.shape
    wih_t, whh_t = params["w_ih"].T, params["w_hh"].T
    b = params["b_ih"] + params["b_hh"]

    def step(carry, x_t):
        h, c = carry
        gates = x_t @ wih_t + h @ whh_t + b
        i = jax.nn.sigmoid(gates[:, 0 * H:1 * H])
        f = jax.nn.sigmoid(gates[:, 1 * H:2 * H])
        g = jnp.tanh(gates[:, 2 * H:3 * H])
        o = jax.nn.sigmoid(gates[:, 3 * H:4 * H])
        c = f * c + i * g
        h = o * jnp.tanh(c)
        return (h, c), None

    h0 = jnp.zeros((B, H), jnp.float32)
    (h, _), _ = lax.scan(step, (h0, h0), jnp.transpose(hidden_states, (1, 0, 2)))
    return h @ params["w_fc"].T + params["b_fc"]


if __name__ == "__main__":
    key = jax.random.PRNGKey(0)
    k_x, k_p, k_x2, k_p2 = jax.random.split(key, 4)

    # Test 1: tiny config (single chunk, no padding, no batch split).
    B, T, H = 2, 8, 32
    x = jax.random.normal(k_x, (B, T, H), jnp.float32)
    params = init_params(k_p, H)
    out = jax.block_until_ready(lstm_pooler(x, params))
    ref = lstm_pooler_ref(x, params)
    assert out.shape == (B, H)
    err1 = float(jnp.max(jnp.abs(out - ref)))
    assert jnp.allclose(out, ref, atol=5e-2, rtol=5e-2), \
        "test1 max abs err = %f" % err1

    # Test 2: multi-chunk skewed pipeline (both parity branches), ragged T
    # (padded + masked timesteps), gate padding (H < 128), and the batch-split
    # "parallel" leading grid axis (B/2 = 8).
    B2, T2, H2 = 16, 44, 96
    x2 = jax.random.normal(k_x2, (B2, T2, H2), jnp.float32)
    params2 = init_params(k_p2, H2)
    out2 = jax.block_until_ready(lstm_pooler(x2, params2, max_time_chunk=16))
    ref2 = lstm_pooler_ref(x2, params2)
    assert out2.shape == (B2, H2)
    err2 = float(jnp.max(jnp.abs(out2 - ref2)))
    assert jnp.allclose(out2, ref2, atol=5e-2, rtol=5e-2), \
        "test2 max abs err = %f" % err2

    print("KERNEL_OK")
</pallas_src>

<mosaic_0001>
module attributes {stable_mosaic.version = 11 : i64} {
  func.func @_lstm_pooler_kernel(%arg0: i32, %arg1: i32, %arg2: memref<2x8x32xf32, #tpu.memory_space<vmem>>, %arg3: memref<32x512xbf16, #tpu.memory_space<vmem>>, %arg4: memref<128x512xf32, #tpu.memory_space<vmem>>, %arg5: memref<1x512xf32, #tpu.memory_space<vmem>>, %arg6: memref<128x32xbf16, #tpu.memory_space<vmem>>, %arg7: memref<1x32xf32, #tpu.memory_space<vmem>>, %arg8: memref<2x32xf32, #tpu.memory_space<vmem>>, %arg9: memref<2x128xf32, #tpu.memory_space<vmem>>, %arg10: memref<2x128xf32, #tpu.memory_space<vmem>>, %arg11: memref<2x8x512xf32, #tpu.memory_space<vmem>>, %arg12: memref<2x8x512xf32, #tpu.memory_space<vmem>>) attributes {dimension_semantics = [#tpu.dimension_semantics<parallel>, #tpu.dimension_semantics<arbitrary>], iteration_bounds = array<i64: 1, 2>, scalar_prefetch = 0 : i64, scratch_operands = 4 : i64, tpu.core_type = #tpu.core_type<tc>, window_params = [{transform_indices = @transform_0, window_bounds = array<i64: 2, 8, 32>}, {pipeline_mode = #tpu.pipeline_mode<synchronous>, transform_indices = @transform_1, window_bounds = array<i64: 32, 512>}, {pipeline_mode = #tpu.pipeline_mode<synchronous>, transform_indices = @transform_2, window_bounds = array<i64: 128, 512>}, {pipeline_mode = #tpu.pipeline_mode<synchronous>, transform_indices = @transform_3, window_bounds = array<i64: 1, 512>}, {pipeline_mode = #tpu.pipeline_mode<synchronous>, transform_indices = @transform_4, window_bounds = array<i64: 128, 32>}, {pipeline_mode = #tpu.pipeline_mode<synchronous>, transform_indices = @transform_5, window_bounds = array<i64: 1, 32>}, {transform_indices = @transform_6, window_bounds = array<i64: 2, 32>}]} {
    %c0_i32 = arith.constant 0 : i32
    %0 = arith.cmpi eq, %arg1, %c0_i32 : i32
    %1 = arith.extui %0 : i1 to i32
    %c0_i32_0 = arith.constant 0 : i32
    %2 = arith.cmpi ne, %1, %c0_i32_0 : i32
    scf.if %2 {
      %cst = arith.constant 0.000000e+00 : f32
      %34 = vector.broadcast %cst : f32 to vector<2x128xf32>
      %c0 = arith.constant 0 : index
      %c0_18 = arith.constant 0 : index
      %35 = vector.load %arg9[%c0, %c0_18] : memref<2x128xf32, #tpu.memory_space<vmem>>, vector<2x128xf32>
      tpu.vector_store %arg9[%c0, %c0_18], %34 {strides = array<i32>} : memref<2x128xf32, #tpu.memory_space<vmem>>, vector<2x128xf32>,
      %cst_19 = arith.constant 0.000000e+00 : f32
      %36 = vector.broadcast %cst_19 : f32 to vector<2x128xf32>
      %c0_20 = arith.constant 0 : index
      %c0_21 = arith.constant 0 : index
      %37 = vector.load %arg10[%c0_20, %c0_21] : memref<2x128xf32, #tpu.memory_space<vmem>>, vector<2x128xf32>
      tpu.vector_store %arg10[%c0_20, %c0_21], %36 {strides = array<i32>} : memref<2x128xf32, #tpu.memory_space<vmem>>, vector<2x128xf32>,
      %c0_22 = arith.constant 0 : index
      %c0_23 = arith.constant 0 : index
      %c0_24 = arith.constant 0 : index
      %38 = vector.load %arg2[%c0_22, %c0_23, %c0_24] : memref<2x8x32xf32, #tpu.memory_space<vmem>>, vector<2x8x32xf32>
      %39 = arith.truncf %38 : vector<2x8x32xf32> to vector<2x8x32xbf16>
      %40 = vector.shape_cast %39 : vector<2x8x32xbf16> to vector<16x32xbf16>
      %c0_25 = arith.constant 0 : index
      %c0_26 = arith.constant 0 : index
      %41 = vector.load %arg3[%c0_25, %c0_26] : memref<32x512xbf16, #tpu.memory_space<vmem>>, vector<32x512xbf16>
      %cst_27 = arith.constant dense<0.000000e+00> : vector<16x512xf32>
      %42 = tpu.matmul %40, %41, %cst_27 {dimension_numbers = #tpu.dot_dimension_numbers<[1], [0], [0], [1], [0, 0, 1, 1], [], []>} : vector<16x32xbf16>, vector<32x512xbf16>, vector<16x512xf32> -> vector<16x512xf32>
      %c0_28 = arith.constant 0 : index
      %c0_29 = arith.constant 0 : index
      %43 = vector.load %arg5[%c0_28, %c0_29] : memref<1x512xf32, #tpu.memory_space<vmem>>, vector<1x512xf32>
      %44 = vector.broadcast %43 : vector<1x512xf32> to vector<16x512xf32>
      %45 = arith.addf %42, %44 : vector<16x512xf32>
      %46 = vector.shape_cast %45 : vector<16x512xf32> to vector<2x8x512xf32>
      %c0_30 = arith.constant 0 : index
      %c0_31 = arith.constant 0 : index
      %c0_32 = arith.constant 0 : index
      %47 = vector.load %arg11[%c0_30, %c0_31, %c0_32] : memref<2x8x512xf32, #tpu.memory_space<vmem>>, vector<2x8x512xf32>
      tpu.vector_store %arg11[%c0_30, %c0_31, %c0_32], %46 {strides = array<i32>} : memref<2x8x512xf32, #tpu.memory_space<vmem>>, vector<2x8x512xf32>,
    } else {
    }
    %c2_i32 = arith.constant 2 : i32
    %c0_i32_1 = arith.constant 0 : i32
    %3 = arith.cmpi eq, %c2_i32, %c0_i32_1 : i32
    %c1_i32 = arith.constant 1 : i32
    %4 = arith.select %3, %c1_i32, %c2_i32 : i32
    %5 = arith.remsi %arg1, %4 : i32
    %c0_i32_2 = arith.constant 0 : i32
    %6 = arith.cmpi ne, %5, %c0_i32_2 : i32
    %c0_i32_3 = arith.constant 0 : i32
    %7 = arith.cmpi slt, %5, %c0_i32_3 : i32
    %c0_i32_4 = arith.constant 0 : i32
    %8 = arith.cmpi slt, %4, %c0_i32_4 : i32
    %9 = arith.xori %7, %8 : i1
    %10 = arith.andi %9, %6 : i1
    %11 = arith.addi %5, %4 : i32
    %12 = arith.select %10, %11, %5 : i32
    %c1_i32_5 = arith.constant 1 : i32
    %13 = arith.cmpi eq, %12, %c1_i32_5 : i32
    %14 = arith.extui %13 : i1 to i32
    %c0_i32_6 = arith.constant 0 : i32
    %15 = arith.cmpi ne, %14, %c0_i32_6 : i32
    scf.if %15 {
      %c0 = arith.constant 0 : index
      %c0_18 = arith.constant 0 : index
      %c0_19 = arith.constant 0 : index
      %34 = vector.load %arg2[%c0, %c0_18, %c0_19] : memref<2x8x32xf32, #tpu.memory_space<vmem>>, vector<2x8x32xf32>
      %35 = arith.truncf %34 : vector<2x8x32xf32> to vector<2x8x32xbf16>
      %36 = vector.shape_cast %35 : vector<2x8x32xbf16> to vector<16x32xbf16>
      %c0_20 = arith.constant 0 : index
      %c0_21 = arith.constant 0 : index
      %37 = vector.load %arg3[%c0_20, %c0_21] : memref<32x512xbf16, #tpu.memory_space<vmem>>, vector<32x512xbf16>
      %cst = arith.constant dense<0.000000e+00> : vector<16x512xf32>
      %38 = tpu.matmul %36, %37, %cst {dimension_numbers = #tpu.dot_dimension_numbers<[1], [0], [0], [1], [0, 0, 1, 1], [], []>} : vector<16x32xbf16>, vector<32x512xbf16>, vector<16x512xf32> -> vector<16x512xf32>
      %c0_22 = arith.constant 0 : index
      %c0_23 = arith.constant 0 : index
      %39 = vector.load %arg5[%c0_22, %c0_23] : memref<1x512xf32, #tpu.memory_space<vmem>>, vector<1x512xf32>
      %40 = vector.broadcast %39 : vector<1x512xf32> to vector<16x512xf32>
      %41 = arith.addf %38, %40 : vector<16x512xf32>
      %42 = vector.shape_cast %41 : vector<16x512xf32> to vector<2x8x512xf32>
      %c0_24 = arith.constant 0 : index
      %c0_25 = arith.constant 0 : index
      %c0_26 = arith.constant 0 : index
      %43 = vector.load %arg12[%c0_24, %c0_25, %c0_26] : memref<2x8x512xf32, #tpu.memory_space<vmem>>, vector<2x8x512xf32>
      tpu.vector_store %arg12[%c0_24, %c0_25, %c0_26], %42 {strides = array<i32>} : memref<2x8x512xf32, #tpu.memory_space<vmem>>, vector<2x8x512xf32>,
      %c0_27 = arith.constant 0 : index
      %c0_28 = arith.constant 0 : index
      %44 = vector.load %arg4[%c0_27, %c0_28] : memref<128x512xf32, #tpu.memory_space<vmem>>, vector<128x512xf32>
      %c0_29 = arith.constant 0 : index
      %c0_30 = arith.constant 0 : index
      %45 = vector.load %arg9[%c0_29, %c0_30] : memref<2x128xf32, #tpu.memory_space<vmem>>, vector<2x128xf32>
      %c0_31 = arith.constant 0 : index
      %c0_32 = arith.constant 0 : index
      %46 = vector.load %arg10[%c0_31, %c0_32] : memref<2x128xf32, #tpu.memory_space<vmem>>, vector<2x128xf32>
      %c0_i32_33 = arith.constant 0 : i32
      %c0_34 = arith.constant 0 : index
      %47 = arith.index_cast %c0_i32_33 : i32 to index
      %c0_35 = arith.constant 0 : index
      %48 = vector.load %arg11[%c0_34, %47, %c0_35] : memref<2x8x512xf32, #tpu.memory_space<vmem>>, vector<2x1x512xf32>
      %49 = vector.shape_cast %48 : vector<2x1x512xf32> to vector<2x512xf32>
      %cst_36 = arith.constant dense<0.000000e+00> : vector<2x512xf32>
      %50 = tpu.matmul %45, %44, %cst_36 {dimension_numbers = #tpu.dot_dimension_numbers<[1], [0], [0], [1], [0, 0, 1, 1], [], []>} : vector<2x128xf32>, vector<128x512xf32>, vector<2x512xf32> -> vector<2x512xf32>
      %51 = arith.addf %49, %50 : vector<2x512xf32>
      %52 = vector.extract_strided_slice %51 {offsets = [0, 0], sizes = [2, 384], strides = [1, 1]} : vector<2x512xf32> to vector<2x384xf32>
      %53 = arith.negf %52 : vector<2x384xf32>
      %54 = math.exp %53 : vector<2x384xf32>
      %cst_37 = arith.constant 1.000000e+00 : f32
      %55 = vector.broadcast %cst_37 : f32 to vector<2x384xf32>
      %56 = arith.addf %55, %54 : vector<2x384xf32>
      %57 = arith.divf %55, %56 : vector<2x384xf32>
      %58 = vector.extract_strided_slice %57 {offsets = [0, 0], sizes = [2, 128], strides = [1, 1]} : vector<2x384xf32> to vector<2x128xf32>
      %59 = vector.extract_strided_slice %57 {offsets = [0, 128], sizes = [2, 128], strides = [1, 1]} : vector<2x384xf32> to vector<2x128xf32>
      %60 = vector.extract_strided_slice %57 {offsets = [0, 256], sizes = [2, 128], strides = [1, 1]} : vector<2x384xf32> to vector<2x128xf32>
      %61 = vector.extract_strided_slice %51 {offsets = [0, 384], sizes = [2, 128], strides = [1, 1]} : vector<2x512xf32> to vector<2x128xf32>
      %62 = math.tanh %61 : vector<2x128xf32>
      %63 = arith.mulf %59, %46 : vector<2x128xf32>
      %64 = arith.mulf %58, %62 : vector<2x128xf32>
      %65 = arith.addf %63, %64 : vector<2x128xf32>
      %66 = math.tanh %65 : vector<2x128xf32>
      %67 = arith.mulf %60, %66 : vector<2x128xf32>
      %c1_i32_38 = arith.constant 1 : i32
      %c0_39 = arith.constant 0 : index
      %68 = arith.index_cast %c1_i32_38 : i32 to index
      %c0_40 = arith.constant 0 : index
      %69 = vector.load %arg11[%c0_39, %68, %c0_40] : memref<2x8x512xf32, #tpu.memory_space<vmem>>, vector<2x1x512xf32>
      %70 = vector.shape_cast %69 : vector<2x1x512xf32> to vector<2x512xf32>
      %cst_41 = arith.constant dense<0.000000e+00> : vector<2x512xf32>
      %71 = tpu.matmul %67, %44, %cst_41 {dimension_numbers = #tpu.dot_dimension_numbers<[1], [0], [0], [1], [0, 0, 1, 1], [], []>} : vector<2x128xf32>, vector<128x512xf32>, vector<2x512xf32> -> vector<2x512xf32>
      %72 = arith.addf %70, %71 : vector<2x512xf32>
      %73 = vector.extract_strided_slice %72 {offsets = [0, 0], sizes = [2, 384], strides = [1, 1]} : vector<2x512xf32> to vector<2x384xf32>
      %74 = arith.negf %73 : vector<2x384xf32>
      %75 = math.exp %74 : vector<2x384xf32>
      %cst_42 = arith.constant 1.000000e+00 : f32
      %76 = vector.broadcast %cst_42 : f32 to vector<2x384xf32>
      %77 = arith.addf %76, %75 : vector<2x384xf32>
      %78 = arith.divf %76, %77 : vector<2x384xf32>
      %79 = vector.extract_strided_slice %78 {offsets = [0, 0], sizes = [2, 128], strides = [1, 1]} : vector<2x384xf32> to vector<2x128xf32>
      %80 = vector.extract_strided_slice %78 {offsets = [0, 128], sizes = [2, 128], strides = [1, 1]} : vector<2x384xf32> to vector<2x128xf32>
      %81 = vector.extract_strided_slice %78 {offsets = [0, 256], sizes = [2, 128], strides = [1, 1]} : vector<2x384xf32> to vector<2x128xf32>
      %82 = vector.extract_strided_slice %72 {offsets = [0, 384], sizes = [2, 128], strides = [1, 1]} : vector<2x512xf32> to vector<2x128xf32>
      %83 = math.tanh %82 : vector<2x128xf32>
      %84 = arith.mulf %80, %65 : vector<2x128xf32>
      %85 = arith.mulf %79, %83 : vector<2x128xf32>
      %86 = arith.addf %84, %85 : vector<2x128xf32>
      %87 = math.tanh %86 : vector<2x128xf32>
      %88 = arith.mulf %81, %87 : vector<2x128xf32>
      %c2_i32_43 = arith.constant 2 : i32
      %c0_44 = arith.constant 0 : index
      %89 = arith.index_cast %c2_i32_43 : i32 to index
      %c0_45 = arith.constant 0 : index
      %90 = vector.load %arg11[%c0_44, %89, %c0_45] : memref<2x8x512xf32, #tpu.memory_space<vmem>>, vector<2x1x512xf32>
      %91 = vector.shape_cast %90 : vector<2x1x512xf32> to vector<2x512xf32>
      %cst_46 = arith.constant dense<0.000000e+00> : vector<2x512xf32>
      %92 = tpu.matmul %88, %44, %cst_46 {dimension_numbers = #tpu.dot_dimension_numbers<[1], [0], [0], [1], [0, 0, 1, 1], [], []>} : vector<2x128xf32>, vector<128x512xf32>, vector<2x512xf32> -> vector<2x512xf32>
      %93 = arith.addf %91, %92 : vector<2x512xf32>
      %94 = vector.extract_strided_slice %93 {offsets = [0, 0], sizes = [2, 384], strides = [1, 1]} : vector<2x512xf32> to vector<2x384xf32>
      %95 = arith.negf %94 : vector<2x384xf32>
      %96 = math.exp %95 : vector<2x384xf32>
      %cst_47 = arith.constant 1.000000e+00 : f32
      %97 = vector.broadcast %cst_47 : f32 to vector<2x384xf32>
      %98 = arith.addf %97, %96 : vector<2x384xf32>
      %99 = arith.divf %97, %98 : vector<2x384xf32>
      %100 = vector.extract_strided_slice %99 {offsets = [0, 0], sizes = [2, 128], strides = [1, 1]} : vector<2x384xf32> to vector<2x128xf32>
      %101 = vector.extract_strided_slice %99 {offsets = [0, 128], sizes = [2, 128], strides = [1, 1]} : vector<2x384xf32> to vector<2x128xf32>
      %102 = vector.extract_strided_slice %99 {offsets = [0, 256], sizes = [2, 128], strides = [1, 1]} : vector<2x384xf32> to vector<2x128xf32>
      %103 = vector.extract_strided_slice %93 {offsets = [0, 384], sizes = [2, 128], strides = [1, 1]} : vector<2x512xf32> to vector<2x128xf32>
      %104 = math.tanh %103 : vector<2x128xf32>
      %105 = arith.mulf %101, %86 : vector<2x128xf32>
      %106 = arith.mulf %100, %104 : vector<2x128xf32>
      %107 = arith.addf %105, %106 : vector<2x128xf32>
      %108 = math.tanh %107 : vector<2x128xf32>
      %109 = arith.mulf %102, %108 : vector<2x128xf32>
      %c3_i32 = arith.constant 3 : i32
      %c0_48 = arith.constant 0 : index
      %110 = arith.index_cast %c3_i32 : i32 to index
      %c0_49 = arith.constant 0 : index
      %111 = vector.load %arg11[%c0_48, %110, %c0_49] : memref<2x8x512xf32, #tpu.memory_space<vmem>>, vector<2x1x512xf32>
      %112 = vector.shape_cast %111 : vector<2x1x512xf32> to vector<2x512xf32>
      %cst_50 = arith.constant dense<0.000000e+00> : vector<2x512xf32>
      %113 = tpu.matmul %109, %44, %cst_50 {dimension_numbers = #tpu.dot_dimension_numbers<[1], [0], [0], [1], [0, 0, 1, 1], [], []>} : vector<2x128xf32>, vector<128x512xf32>, vector<2x512xf32> -> vector<2x512xf32>
      %114 = arith.addf %112, %113 : vector<2x512xf32>
      %115 = vector.extract_strided_slice %114 {offsets = [0, 0], sizes = [2, 384], strides = [1, 1]} : vector<2x512xf32> to vector<2x384xf32>
      %116 = arith.negf %115 : vector<2x384xf32>
      %117 = math.exp %116 : vector<2x384xf32>
      %cst_51 = arith.constant 1.000000e+00 : f32
      %118 = vector.broadcast %cst_51 : f32 to vector<2x384xf32>
      %119 = arith.addf %118, %117 : vector<2x384xf32>
      %120 = arith.divf %118, %119 : vector<2x384xf32>
      %121 = vector.extract_strided_slice %120 {offsets = [0, 0], sizes = [2, 128], strides = [1, 1]} : vector<2x384xf32> to vector<2x128xf32>
      %122 = vector.extract_strided_slice %120 {offsets = [0, 128], sizes = [2, 128], strides = [1, 1]} : vector<2x384xf32> to vector<2x128xf32>
      %123 = vector.extract_strided_slice %120 {offsets = [0, 256], sizes = [2, 128], strides = [1, 1]} : vector<2x384xf32> to vector<2x128xf32>
      %124 = vector.extract_strided_slice %114 {offsets = [0, 384], sizes = [2, 128], strides = [1, 1]} : vector<2x512xf32> to vector<2x128xf32>
      %125 = math.tanh %124 : vector<2x128xf32>
      %126 = arith.mulf %122, %107 : vector<2x128xf32>
      %127 = arith.mulf %121, %125 : vector<2x128xf32>
      %128 = arith.addf %126, %127 : vector<2x128xf32>
      %129 = math.tanh %128 : vector<2x128xf32>
      %130 = arith.mulf %123, %129 : vector<2x128xf32>
      %c4_i32 = arith.constant 4 : i32
      %c0_52 = arith.constant 0 : index
      %131 = arith.index_cast %c4_i32 : i32 to index
      %c0_53 = arith.constant 0 : index
      %132 = vector.load %arg11[%c0_52, %131, %c0_53] : memref<2x8x512xf32, #tpu.memory_space<vmem>>, vector<2x1x512xf32>
      %133 = vector.shape_cast %132 : vector<2x1x512xf32> to vector<2x512xf32>
      %cst_54 = arith.constant dense<0.000000e+00> : vector<2x512xf32>
      %134 = tpu.matmul %130, %44, %cst_54 {dimension_numbers = #tpu.dot_dimension_numbers<[1], [0], [0], [1], [0, 0, 1, 1], [], []>} : vector<2x128xf32>, vector<128x512xf32>, vector<2x512xf32> -> vector<2x512xf32>
      %135 = arith.addf %133, %134 : vector<2x512xf32>
      %136 = vector.extract_strided_slice %135 {offsets = [0, 0], sizes = [2, 384], strides = [1, 1]} : vector<2x512xf32> to vector<2x384xf32>
      %137 = arith.negf %136 : vector<2x384xf32>
      %138 = math.exp %137 : vector<2x384xf32>
      %cst_55 = arith.constant 1.000000e+00 : f32
      %139 = vector.broadcast %cst_55 : f32 to vector<2x384xf32>
      %140 = arith.addf %139, %138 : vector<2x384xf32>
      %141 = arith.divf %139, %140 : vector<2x384xf32>
      %142 = vector.extract_strided_slice %141 {offsets = [0, 0], sizes = [2, 128], strides = [1, 1]} : vector<2x384xf32> to vector<2x128xf32>
      %143 = vector.extract_strided_slice %141 {offsets = [0, 128], sizes = [2, 128], strides = [1, 1]} : vector<2x384xf32> to vector<2x128xf32>
      %144 = vector.extract_strided_slice %141 {offsets = [0, 256], sizes = [2, 128], strides = [1, 1]} : vector<2x384xf32> to vector<2x128xf32>
      %145 = vector.extract_strided_slice %135 {offsets = [0, 384], sizes = [2, 128], strides = [1, 1]} : vector<2x512xf32> to vector<2x128xf32>
      %146 = math.tanh %145 : vector<2x128xf32>
      %147 = arith.mulf %143, %128 : vector<2x128xf32>
      %148 = arith.mulf %142, %146 : vector<2x128xf32>
      %149 = arith.addf %147, %148 : vector<2x128xf32>
      %150 = math.tanh %149 : vector<2x128xf32>
      %151 = arith.mulf %144, %150 : vector<2x128xf32>
      %c5_i32 = arith.constant 5 : i32
      %c0_56 = arith.constant 0 : index
      %152 = arith.index_cast %c5_i32 : i32 to index
      %c0_57 = arith.constant 0 : index
      %153 = vector.load %arg11[%c0_56, %152, %c0_57] : memref<2x8x512xf32, #tpu.memory_space<vmem>>, vector<2x1x512xf32>
      %154 = vector.shape_cast %153 : vector<2x1x512xf32> to vector<2x512xf32>
      %cst_58 = arith.constant dense<0.000000e+00> : vector<2x512xf32>
      %155 = tpu.matmul %151, %44, %cst_58 {dimension_numbers = #tpu.dot_dimension_numbers<[1], [0], [0], [1], [0, 0, 1, 1], [], []>} : vector<2x128xf32>, vector<128x512xf32>, vector<2x512xf32> -> vector<2x512xf32>
      %156 = arith.addf %154, %155 : vector<2x512xf32>
      %157 = vector.extract_strided_slice %156 {offsets = [0, 0], sizes = [2, 384], strides = [1, 1]} : vector<2x512xf32> to vector<2x384xf32>
      %158 = arith.negf %157 : vector<2x384xf32>
      %159 = math.exp %158 : vector<2x384xf32>
      %cst_59 = arith.constant 1.000000e+00 : f32
      %160 = vector.broadcast %cst_59 : f32 to vector<2x384xf32>
      %161 = arith.addf %160, %159 : vector<2x384xf32>
      %162 = arith.divf %160, %161 : vector<2x384xf32>
      %163 = vector.extract_strided_slice %162 {offsets = [0, 0], sizes = [2, 128], strides = [1, 1]} : vector<2x384xf32> to vector<2x128xf32>
      %164 = vector.extract_strided_slice %162 {offsets = [0, 128], sizes = [2, 128], strides = [1, 1]} : vector<2x384xf32> to vector<2x128xf32>
      %165 = vector.extract_strided_slice %162 {offsets = [0, 256], sizes = [2, 128], strides = [1, 1]} : vector<2x384xf32> to vector<2x128xf32>
      %166 = vector.extract_strided_slice %156 {offsets = [0, 384], sizes = [2, 128], strides = [1, 1]} : vector<2x512xf32> to vector<2x128xf32>
      %167 = math.tanh %166 : vector<2x128xf32>
      %168 = arith.mulf %164, %149 : vector<2x128xf32>
      %169 = arith.mulf %163, %167 : vector<2x128xf32>
      %170 = arith.addf %168, %169 : vector<2x128xf32>
      %171 = math.tanh %170 : vector<2x128xf32>
      %172 = arith.mulf %165, %171 : vector<2x128xf32>
      %c6_i32 = arith.constant 6 : i32
      %c0_60 = arith.constant 0 : index
      %173 = arith.index_cast %c6_i32 : i32 to index
      %c0_61 = arith.constant 0 : index
      %174 = vector.load %arg11[%c0_60, %173, %c0_61] : memref<2x8x512xf32, #tpu.memory_space<vmem>>, vector<2x1x512xf32>
      %175 = vector.shape_cast %174 : vector<2x1x512xf32> to vector<2x512xf32>
      %cst_62 = arith.constant dense<0.000000e+00> : vector<2x512xf32>
      %176 = tpu.matmul %172, %44, %cst_62 {dimension_numbers = #tpu.dot_dimension_numbers<[1], [0], [0], [1], [0, 0, 1, 1], [], []>} : vector<2x128xf32>, vector<128x512xf32>, vector<2x512xf32> -> vector<2x512xf32>
      %177 = arith.addf %175, %176 : vector<2x512xf32>
      %178 = vector.extract_strided_slice %177 {offsets = [0, 0], sizes = [2, 384], strides = [1, 1]} : vector<2x512xf32> to vector<2x384xf32>
      %179 = arith.negf %178 : vector<2x384xf32>
      %180 = math.exp %179 : vector<2x384xf32>
      %cst_63 = arith.constant 1.000000e+00 : f32
      %181 = vector.broadcast %cst_63 : f32 to vector<2x384xf32>
      %182 = arith.addf %181, %180 : vector<2x384xf32>
      %183 = arith.divf %181, %182 : vector<2x384xf32>
      %184 = vector.extract_strided_slice %183 {offsets = [0, 0], sizes = [2, 128], strides = [1, 1]} : vector<2x384xf32> to vector<2x128xf32>
      %185 = vector.extract_strided_slice %183 {offsets = [0, 128], sizes = [2, 128], strides = [1, 1]} : vector<2x384xf32> to vector<2x128xf32>
      %186 = vector.extract_strided_slice %183 {offsets = [0, 256], sizes = [2, 128], strides = [1, 1]} : vector<2x384xf32> to vector<2x128xf32>
      %187 = vector.extract_strided_slice %177 {offsets = [0, 384], sizes = [2, 128], strides = [1, 1]} : vector<2x512xf32> to vector<2x128xf32>
      %188 = math.tanh %187 : vector<2x128xf32>
      %189 = arith.mulf %185, %170 : vector<2x128xf32>
      %190 = arith.mulf %184, %188 : vector<2x128xf32>
      %191 = arith.addf %189, %190 : vector<2x128xf32>
      %192 = math.tanh %191 : vector<2x128xf32>
      %193 = arith.mulf %186, %192 : vector<2x128xf32>
      %c7_i32 = arith.constant 7 : i32
      %c0_64 = arith.constant 0 : index
      %194 = arith.index_cast %c7_i32 : i32 to index
      %c0_65 = arith.constant 0 : index
      %195 = vector.load %arg11[%c0_64, %194, %c0_65] : memref<2x8x512xf32, #tpu.memory_space<vmem>>, vector<2x1x512xf32>
      %196 = vector.shape_cast %195 : vector<2x1x512xf32> to vector<2x512xf32>
      %cst_66 = arith.constant dense<0.000000e+00> : vector<2x512xf32>
      %197 = tpu.matmul %193, %44, %cst_66 {dimension_numbers = #tpu.dot_dimension_numbers<[1], [0], [0], [1], [0, 0, 1, 1], [], []>} : vector<2x128xf32>, vector<128x512xf32>, vector<2x512xf32> -> vector<2x512xf32>
      %198 = arith.addf %196, %197 : vector<2x512xf32>
      %199 = vector.extract_strided_slice %198 {offsets = [0, 0], sizes = [2, 384], strides = [1, 1]} : vector<2x512xf32> to vector<2x384xf32>
      %200 = arith.negf %199 : vector<2x384xf32>
      %201 = math.exp %200 : vector<2x384xf32>
      %cst_67 = arith.constant 1.000000e+00 : f32
      %202 = vector.broadcast %cst_67 : f32 to vector<2x384xf32>
      %203 = arith.addf %202, %201 : vector<2x384xf32>
      %204 = arith.divf %202, %203 : vector<2x384xf32>
      %205 = vector.extract_strided_slice %204 {offsets = [0, 0], sizes = [2, 128], strides = [1, 1]} : vector<2x384xf32> to vector<2x128xf32>
      %206 = vector.extract_strided_slice %204 {offsets = [0, 128], sizes = [2, 128], strides = [1, 1]} : vector<2x384xf32> to vector<2x128xf32>
      %207 = vector.extract_strided_slice %204 {offsets = [0, 256], sizes = [2, 128], strides = [1, 1]} : vector<2x384xf32> to vector<2x128xf32>
      %208 = vector.extract_strided_slice %198 {offsets = [0, 384], sizes = [2, 128], strides = [1, 1]} : vector<2x512xf32> to vector<2x128xf32>
      %209 = math.tanh %208 : vector<2x128xf32>
      %210 = arith.mulf %206, %191 : vector<2x128xf32>
      %211 = arith.mulf %205, %209 : vector<2x128xf32>
      %212 = arith.addf %210, %211 : vector<2x128xf32>
      %213 = math.tanh %212 : vector<2x128xf32>
      %214 = arith.mulf %207, %213 : vector<2x128xf32>
      %c8_i32 = arith.constant 8 : i32
      %c0_68 = arith.constant 0 : index
      %c0_69 = arith.constant 0 : index
      %215 = vector.load %arg9[%c0_68, %c0_69] : memref<2x128xf32, #tpu.memory_space<vmem>>, vector<2x128xf32>
      tpu.vector_store %arg9[%c0_68, %c0_69], %214 {strides = array<i32>} : memref<2x128xf32, #tpu.memory_space<vmem>>, vector<2x128xf32>,
      %c0_70 = arith.constant 0 : index
      %c0_71 = arith.constant 0 : index
      %216 = vector.load %arg10[%c0_70, %c0_71] : memref<2x128xf32, #tpu.memory_space<vmem>>, vector<2x128xf32>
      tpu.vector_store %arg10[%c0_70, %c0_71], %212 {strides = array<i32>} : memref<2x128xf32, #tpu.memory_space<vmem>>, vector<2x128xf32>,
    } else {
    }
    %c0_i32_7 = arith.constant 0 : i32
    %16 = arith.cmpi sgt, %arg1, %c0_i32_7 : i32
    %c2_i32_8 = arith.constant 2 : i32
    %c0_i32_9 = arith.constant 0 : i32
    %17 = arith.cmpi eq, %c2_i32_8, %c0_i32_9 : i32
    %c1_i32_10 = arith.constant 1 : i32
    %18 = arith.select %17, %c1_i32_10, %c2_i32_8 : i32
    %19 = arith.remsi %arg1, %18 : i32
    %c0_i32_11 = arith.constant 0 : i32
    %20 = arith.cmpi ne, %19, %c0_i32_11 : i32
    %c0_i32_12 = arith.constant 0 : i32
    %21 = arith.cmpi slt, %19, %c0_i32_12 : i32
    %c0_i32_13 = arith.constant 0 : i32
    %22 = arith.cmpi slt, %18, %c0_i32_13 : i32
    %23 = arith.xori %21, %22 : i1
    %24 = arith.andi %23, %20 : i1
    %25 = arith.addi %19, %18 : i32
    %26 = arith.select %24, %25, %19 : i32
    %c0_i32_14 = arith.constant 0 : i32
    %27 = arith.cmpi eq, %26, %c0_i32_14 : i32
    %28 = arith.andi %16, %27 : i1
    %29 = arith.extui %28 : i1 to i32
    %c0_i32_15 = arith.constant 0 : i32
    %30 = arith.cmpi ne, %29, %c0_i32_15 : i32
    scf.if %30 {
      %c0 = arith.constant 0 : index
      %c0_18 = arith.constant 0 : index
      %c0_19 = arith.constant 0 : index
      %34 = vector.load %arg2[%c0, %c0_18, %c0_19] : memref<2x8x32xf32, #tpu.memory_space<vmem>>, vector<2x8x32xf32>
      %35 = arith.truncf %34 : vector<2x8x32xf32> to vector<2x8x32xbf16>
      %36 = vector.shape_cast %35 : vector<2x8x32xbf16> to vector<16x32xbf16>
      %c0_20 = arith.constant 0 : index
      %c0_21 = arith.constant 0 : index
      %37 = vector.load %arg3[%c0_20, %c0_21] : memref<32x512xbf16, #tpu.memory_space<vmem>>, vector<32x512xbf16>
      %cst = arith.constant dense<0.000000e+00> : vector<16x512xf32>
      %38 = tpu.matmul %36, %37, %cst {dimension_numbers = #tpu.dot_dimension_numbers<[1], [0], [0], [1], [0, 0, 1, 1], [], []>} : vector<16x32xbf16>, vector<32x512xbf16>, vector<16x512xf32> -> vector<16x512xf32>
      %c0_22 = arith.constant 0 : index
      %c0_23 = arith.constant 0 : index
      %39 = vector.load %arg5[%c0_22, %c0_23] : memref<1x512xf32, #tpu.memory_space<vmem>>, vector<1x512xf32>
      %40 = vector.broadcast %39 : vector<1x512xf32> to vector<16x512xf32>
      %41 = arith.addf %38, %40 : vector<16x512xf32>
      %42 = vector.shape_cast %41 : vector<16x512xf32> to vector<2x8x512xf32>
      %c0_24 = arith.constant 0 : index
      %c0_25 = arith.constant 0 : index
      %c0_26 = arith.constant 0 : index
      %43 = vector.load %arg11[%c0_24, %c0_25, %c0_26] : memref<2x8x512xf32, #tpu.memory_space<vmem>>, vector<2x8x512xf32>
      tpu.vector_store %arg11[%c0_24, %c0_25, %c0_26], %42 {strides = array<i32>} : memref<2x8x512xf32, #tpu.memory_space<vmem>>, vector<2x8x512xf32>,
      %c0_27 = arith.constant 0 : index
      %c0_28 = arith.constant 0 : index
      %44 = vector.load %arg4[%c0_27, %c0_28] : memref<128x512xf32, #tpu.memory_space<vmem>>, vector<128x512xf32>
      %c0_29 = arith.constant 0 : index
      %c0_30 = arith.constant 0 : index
      %45 = vector.load %arg9[%c0_29, %c0_30] : memref<2x128xf32, #tpu.memory_space<vmem>>, vector<2x128xf32>
      %c0_31 = arith.constant 0 : index
      %c0_32 = arith.constant 0 : index
      %46 = vector.load %arg10[%c0_31, %c0_32] : memref<2x128xf32, #tpu.memory_space<vmem>>, vector<2x128xf32>
      %c0_i32_33 = arith.constant 0 : i32
      %c0_34 = arith.constant 0 : index
      %47 = arith.index_cast %c0_i32_33 : i32 to index
      %c0_35 = arith.constant 0 : index
      %48 = vector.load %arg12[%c0_34, %47, %c0_35] : memref<2x8x512xf32, #tpu.memory_space<vmem>>, vector<2x1x512xf32>
      %49 = vector.shape_cast %48 : vector<2x1x512xf32> to vector<2x512xf32>
      %cst_36 = arith.constant dense<0.000000e+00> : vector<2x512xf32>
      %50 = tpu.matmul %45, %44, %cst_36 {dimension_numbers = #tpu.dot_dimension_numbers<[1], [0], [0], [1], [0, 0, 1, 1], [], []>} : vector<2x128xf32>, vector<128x512xf32>, vector<2x512xf32> -> vector<2x512xf32>
      %51 = arith.addf %49, %50 : vector<2x512xf32>
      %52 = vector.extract_strided_slice %51 {offsets = [0, 0], sizes = [2, 384], strides = [1, 1]} : vector<2x512xf32> to vector<2x384xf32>
      %53 = arith.negf %52 : vector<2x384xf32>
      %54 = math.exp %53 : vector<2x384xf32>
      %cst_37 = arith.constant 1.000000e+00 : f32
      %55 = vector.broadcast %cst_37 : f32 to vector<2x384xf32>
      %56 = arith.addf %55, %54 : vector<2x384xf32>
      %57 = arith.divf %55, %56 : vector<2x384xf32>
      %58 = vector.extract_strided_slice %57 {offsets = [0, 0], sizes = [2, 128], strides = [1, 1]} : vector<2x384xf32> to vector<2x128xf32>
      %59 = vector.extract_strided_slice %57 {offsets = [0, 128], sizes = [2, 128], strides = [1, 1]} : vector<2x384xf32> to vector<2x128xf32>
      %60 = vector.extract_strided_slice %57 {offsets = [0, 256], sizes = [2, 128], strides = [1, 1]} : vector<2x384xf32> to vector<2x128xf32>
      %61 = vector.extract_strided_slice %51 {offsets = [0, 384], sizes = [2, 128], strides = [1, 1]} : vector<2x512xf32> to vector<2x128xf32>
      %62 = math.tanh %61 : vector<2x128xf32>
      %63 = arith.mulf %59, %46 : vector<2x128xf32>
      %64 = arith.mulf %58, %62 : vector<2x128xf32>
      %65 = arith.addf %63, %64 : vector<2x128xf32>
      %66 = math.tanh %65 : vector<2x128xf32>
      %67 = arith.mulf %60, %66 : vector<2x128xf32>
      %c1_i32_38 = arith.constant 1 : i32
      %c0_39 = arith.constant 0 : index
      %68 = arith.index_cast %c1_i32_38 : i32 to index
      %c0_40 = arith.constant 0 : index
      %69 = vector.load %arg12[%c0_39, %68, %c0_40] : memref<2x8x512xf32, #tpu.memory_space<vmem>>, vector<2x1x512xf32>
      %70 = vector.shape_cast %69 : vector<2x1x512xf32> to vector<2x512xf32>
      %cst_41 = arith.constant dense<0.000000e+00> : vector<2x512xf32>
      %71 = tpu.matmul %67, %44, %cst_41 {dimension_numbers = #tpu.dot_dimension_numbers<[1], [0], [0], [1], [0, 0, 1, 1], [], []>} : vector<2x128xf32>, vector<128x512xf32>, vector<2x512xf32> -> vector<2x512xf32>
      %72 = arith.addf %70, %71 : vector<2x512xf32>
      %73 = vector.extract_strided_slice %72 {offsets = [0, 0], sizes = [2, 384], strides = [1, 1]} : vector<2x512xf32> to vector<2x384xf32>
      %74 = arith.negf %73 : vector<2x384xf32>
      %75 = math.exp %74 : vector<2x384xf32>
      %cst_42 = arith.constant 1.000000e+00 : f32
      %76 = vector.broadcast %cst_42 : f32 to vector<2x384xf32>
      %77 = arith.addf %76, %75 : vector<2x384xf32>
      %78 = arith.divf %76, %77 : vector<2x384xf32>
      %79 = vector.extract_strided_slice %78 {offsets = [0, 0], sizes = [2, 128], strides = [1, 1]} : vector<2x384xf32> to vector<2x128xf32>
      %80 = vector.extract_strided_slice %78 {offsets = [0, 128], sizes = [2, 128], strides = [1, 1]} : vector<2x384xf32> to vector<2x128xf32>
      %81 = vector.extract_strided_slice %78 {offsets = [0, 256], sizes = [2, 128], strides = [1, 1]} : vector<2x384xf32> to vector<2x128xf32>
      %82 = vector.extract_strided_slice %72 {offsets = [0, 384], sizes = [2, 128], strides = [1, 1]} : vector<2x512xf32> to vector<2x128xf32>
      %83 = math.tanh %82 : vector<2x128xf32>
      %84 = arith.mulf %80, %65 : vector<2x128xf32>
      %85 = arith.mulf %79, %83 : vector<2x128xf32>
      %86 = arith.addf %84, %85 : vector<2x128xf32>
      %87 = math.tanh %86 : vector<2x128xf32>
      %88 = arith.mulf %81, %87 : vector<2x128xf32>
      %c2_i32_43 = arith.constant 2 : i32
      %c0_44 = arith.constant 0 : index
      %89 = arith.index_cast %c2_i32_43 : i32 to index
      %c0_45 = arith.constant 0 : index
      %90 = vector.load %arg12[%c0_44, %89, %c0_45] : memref<2x8x512xf32, #tpu.memory_space<vmem>>, vector<2x1x512xf32>
      %91 = vector.shape_cast %90 : vector<2x1x512xf32> to vector<2x512xf32>
      %cst_46 = arith.constant dense<0.000000e+00> : vector<2x512xf32>
      %92 = tpu.matmul %88, %44, %cst_46 {dimension_numbers = #tpu.dot_dimension_numbers<[1], [0], [0], [1], [0, 0, 1, 1], [], []>} : vector<2x128xf32>, vector<128x512xf32>, vector<2x512xf32> -> vector<2x512xf32>
      %93 = arith.addf %91, %92 : vector<2x512xf32>
      %94 = vector.extract_strided_slice %93 {offsets = [0, 0], sizes = [2, 384], strides = [1, 1]} : vector<2x512xf32> to vector<2x384xf32>
      %95 = arith.negf %94 : vector<2x384xf32>
      %96 = math.exp %95 : vector<2x384xf32>
      %cst_47 = arith.constant 1.000000e+00 : f32
      %97 = vector.broadcast %cst_47 : f32 to vector<2x384xf32>
      %98 = arith.addf %97, %96 : vector<2x384xf32>
      %99 = arith.divf %97, %98 : vector<2x384xf32>
      %100 = vector.extract_strided_slice %99 {offsets = [0, 0], sizes = [2, 128], strides = [1, 1]} : vector<2x384xf32> to vector<2x128xf32>
      %101 = vector.extract_strided_slice %99 {offsets = [0, 128], sizes = [2, 128], strides = [1, 1]} : vector<2x384xf32> to vector<2x128xf32>
      %102 = vector.extract_strided_slice %99 {offsets = [0, 256], sizes = [2, 128], strides = [1, 1]} : vector<2x384xf32> to vector<2x128xf32>
      %103 = vector.extract_strided_slice %93 {offsets = [0, 384], sizes = [2, 128], strides = [1, 1]} : vector<2x512xf32> to vector<2x128xf32>
      %104 = math.tanh %103 : vector<2x128xf32>
      %105 = arith.mulf %101, %86 : vector<2x128xf32>
      %106 = arith.mulf %100, %104 : vector<2x128xf32>
      %107 = arith.addf %105, %106 : vector<2x128xf32>
      %108 = math.tanh %107 : vector<2x128xf32>
      %109 = arith.mulf %102, %108 : vector<2x128xf32>
      %c3_i32 = arith.constant 3 : i32
      %c0_48 = arith.constant 0 : index
      %110 = arith.index_cast %c3_i32 : i32 to index
      %c0_49 = arith.constant 0 : index
      %111 = vector.load %arg12[%c0_48, %110, %c0_49] : memref<2x8x512xf32, #tpu.memory_space<vmem>>, vector<2x1x512xf32>
      %112 = vector.shape_cast %111 : vector<2x1x512xf32> to vector<2x512xf32>
      %cst_50 = arith.constant dense<0.000000e+00> : vector<2x512xf32>
      %113 = tpu.matmul %109, %44, %cst_50 {dimension_numbers = #tpu.dot_dimension_numbers<[1], [0], [0], [1], [0, 0, 1, 1], [], []>} : vector<2x128xf32>, vector<128x512xf32>, vector<2x512xf32> -> vector<2x512xf32>
      %114 = arith.addf %112, %113 : vector<2x512xf32>
      %115 = vector.extract_strided_slice %114 {offsets = [0, 0], sizes = [2, 384], strides = [1, 1]} : vector<2x512xf32> to vector<2x384xf32>
      %116 = arith.negf %115 : vector<2x384xf32>
      %117 = math.exp %116 : vector<2x384xf32>
      %cst_51 = arith.constant 1.000000e+00 : f32
      %118 = vector.broadcast %cst_51 : f32 to vector<2x384xf32>
      %119 = arith.addf %118, %117 : vector<2x384xf32>
      %120 = arith.divf %118, %119 : vector<2x384xf32>
      %121 = vector.extract_strided_slice %120 {offsets = [0, 0], sizes = [2, 128], strides = [1, 1]} : vector<2x384xf32> to vector<2x128xf32>
      %122 = vector.extract_strided_slice %120 {offsets = [0, 128], sizes = [2, 128], strides = [1, 1]} : vector<2x384xf32> to vector<2x128xf32>
      %123 = vector.extract_strided_slice %120 {offsets = [0, 256], sizes = [2, 128], strides = [1, 1]} : vector<2x384xf32> to vector<2x128xf32>
      %124 = vector.extract_strided_slice %114 {offsets = [0, 384], sizes = [2, 128], strides = [1, 1]} : vector<2x512xf32> to vector<2x128xf32>
      %125 = math.tanh %124 : vector<2x128xf32>
      %126 = arith.mulf %122, %107 : vector<2x128xf32>
      %127 = arith.mulf %121, %125 : vector<2x128xf32>
      %128 = arith.addf %126, %127 : vector<2x128xf32>
      %129 = math.tanh %128 : vector<2x128xf32>
      %130 = arith.mulf %123, %129 : vector<2x128xf32>
      %c4_i32 = arith.constant 4 : i32
      %c0_52 = arith.constant 0 : index
      %131 = arith.index_cast %c4_i32 : i32 to index
      %c0_53 = arith.constant 0 : index
      %132 = vector.load %arg12[%c0_52, %131, %c0_53] : memref<2x8x512xf32, #tpu.memory_space<vmem>>, vector<2x1x512xf32>
      %133 = vector.shape_cast %132 : vector<2x1x512xf32> to vector<2x512xf32>
      %cst_54 = arith.constant dense<0.000000e+00> : vector<2x512xf32>
      %134 = tpu.matmul %130, %44, %cst_54 {dimension_numbers = #tpu.dot_dimension_numbers<[1], [0], [0], [1], [0, 0, 1, 1], [], []>} : vector<2x128xf32>, vector<128x512xf32>, vector<2x512xf32> -> vector<2x512xf32>
      %135 = arith.addf %133, %134 : vector<2x512xf32>
      %136 = vector.extract_strided_slice %135 {offsets = [0, 0], sizes = [2, 384], strides = [1, 1]} : vector<2x512xf32> to vector<2x384xf32>
      %137 = arith.negf %136 : vector<2x384xf32>
      %138 = math.exp %137 : vector<2x384xf32>
      %cst_55 = arith.constant 1.000000e+00 : f32
      %139 = vector.broadcast %cst_55 : f32 to vector<2x384xf32>
      %140 = arith.addf %139, %138 : vector<2x384xf32>
      %141 = arith.divf %139, %140 : vector<2x384xf32>
      %142 = vector.extract_strided_slice %141 {offsets = [0, 0], sizes = [2, 128], strides = [1, 1]} : vector<2x384xf32> to vector<2x128xf32>
      %143 = vector.extract_strided_slice %141 {offsets = [0, 128], sizes = [2, 128], strides = [1, 1]} : vector<2x384xf32> to vector<2x128xf32>
      %144 = vector.extract_strided_slice %141 {offsets = [0, 256], sizes = [2, 128], strides = [1, 1]} : vector<2x384xf32> to vector<2x128xf32>
      %145 = vector.extract_strided_slice %135 {offsets = [0, 384], sizes = [2, 128], strides = [1, 1]} : vector<2x512xf32> to vector<2x128xf32>
      %146 = math.tanh %145 : vector<2x128xf32>
      %147 = arith.mulf %143, %128 : vector<2x128xf32>
      %148 = arith.mulf %142, %146 : vector<2x128xf32>
      %149 = arith.addf %147, %148 : vector<2x128xf32>
      %150 = math.tanh %149 : vector<2x128xf32>
      %151 = arith.mulf %144, %150 : vector<2x128xf32>
      %c5_i32 = arith.constant 5 : i32
      %c0_56 = arith.constant 0 : index
      %152 = arith.index_cast %c5_i32 : i32 to index
      %c0_57 = arith.constant 0 : index
      %153 = vector.load %arg12[%c0_56, %152, %c0_57] : memref<2x8x512xf32, #tpu.memory_space<vmem>>, vector<2x1x512xf32>
      %154 = vector.shape_cast %153 : vector<2x1x512xf32> to vector<2x512xf32>
      %cst_58 = arith.constant dense<0.000000e+00> : vector<2x512xf32>
      %155 = tpu.matmul %151, %44, %cst_58 {dimension_numbers = #tpu.dot_dimension_numbers<[1], [0], [0], [1], [0, 0, 1, 1], [], []>} : vector<2x128xf32>, vector<128x512xf32>, vector<2x512xf32> -> vector<2x512xf32>
      %156 = arith.addf %154, %155 : vector<2x512xf32>
      %157 = vector.extract_strided_slice %156 {offsets = [0, 0], sizes = [2, 384], strides = [1, 1]} : vector<2x512xf32> to vector<2x384xf32>
      %158 = arith.negf %157 : vector<2x384xf32>
      %159 = math.exp %158 : vector<2x384xf32>
      %cst_59 = arith.constant 1.000000e+00 : f32
      %160 = vector.broadcast %cst_59 : f32 to vector<2x384xf32>
      %161 = arith.addf %160, %159 : vector<2x384xf32>
      %162 = arith.divf %160, %161 : vector<2x384xf32>
      %163 = vector.extract_strided_slice %162 {offsets = [0, 0], sizes = [2, 128], strides = [1, 1]} : vector<2x384xf32> to vector<2x128xf32>
      %164 = vector.extract_strided_slice %162 {offsets = [0, 128], sizes = [2, 128], strides = [1, 1]} : vector<2x384xf32> to vector<2x128xf32>
      %165 = vector.extract_strided_slice %162 {offsets = [0, 256], sizes = [2, 128], strides = [1, 1]} : vector<2x384xf32> to vector<2x128xf32>
      %166 = vector.extract_strided_slice %156 {offsets = [0, 384], sizes = [2, 128], strides = [1, 1]} : vector<2x512xf32> to vector<2x128xf32>
      %167 = math.tanh %166 : vector<2x128xf32>
      %168 = arith.mulf %164, %149 : vector<2x128xf32>
      %169 = arith.mulf %163, %167 : vector<2x128xf32>
      %170 = arith.addf %168, %169 : vector<2x128xf32>
      %171 = math.tanh %170 : vector<2x128xf32>
      %172 = arith.mulf %165, %171 : vector<2x128xf32>
      %c6_i32 = arith.constant 6 : i32
      %c0_60 = arith.constant 0 : index
      %173 = arith.index_cast %c6_i32 : i32 to index
      %c0_61 = arith.constant 0 : index
      %174 = vector.load %arg12[%c0_60, %173, %c0_61] : memref<2x8x512xf32, #tpu.memory_space<vmem>>, vector<2x1x512xf32>
      %175 = vector.shape_cast %174 : vector<2x1x512xf32> to vector<2x512xf32>
      %cst_62 = arith.constant dense<0.000000e+00> : vector<2x512xf32>
      %176 = tpu.matmul %172, %44, %cst_62 {dimension_numbers = #tpu.dot_dimension_numbers<[1], [0], [0], [1], [0, 0, 1, 1], [], []>} : vector<2x128xf32>, vector<128x512xf32>, vector<2x512xf32> -> vector<2x512xf32>
      %177 = arith.addf %175, %176 : vector<2x512xf32>
      %178 = vector.extract_strided_slice %177 {offsets = [0, 0], sizes = [2, 384], strides = [1, 1]} : vector<2x512xf32> to vector<2x384xf32>
      %179 = arith.negf %178 : vector<2x384xf32>
      %180 = math.exp %179 : vector<2x384xf32>
      %cst_63 = arith.constant 1.000000e+00 : f32
      %181 = vector.broadcast %cst_63 : f32 to vector<2x384xf32>
      %182 = arith.addf %181, %180 : vector<2x384xf32>
      %183 = arith.divf %181, %182 : vector<2x384xf32>
      %184 = vector.extract_strided_slice %183 {offsets = [0, 0], sizes = [2, 128], strides = [1, 1]} : vector<2x384xf32> to vector<2x128xf32>
      %185 = vector.extract_strided_slice %183 {offsets = [0, 128], sizes = [2, 128], strides = [1, 1]} : vector<2x384xf32> to vector<2x128xf32>
      %186 = vector.extract_strided_slice %183 {offsets = [0, 256], sizes = [2, 128], strides = [1, 1]} : vector<2x384xf32> to vector<2x128xf32>
      %187 = vector.extract_strided_slice %177 {offsets = [0, 384], sizes = [2, 128], strides = [1, 1]} : vector<2x512xf32> to vector<2x128xf32>
      %188 = math.tanh %187 : vector<2x128xf32>
      %189 = arith.mulf %185, %170 : vector<2x128xf32>
      %190 = arith.mulf %184, %188 : vector<2x128xf32>
      %191 = arith.addf %189, %190 : vector<2x128xf32>
      %192 = math.tanh %191 : vector<2x128xf32>
      %193 = arith.mulf %186, %192 : vector<2x128xf32>
      %c7_i32 = arith.constant 7 : i32
      %c0_64 = arith.constant 0 : index
      %194 = arith.index_cast %c7_i32 : i32 to index
      %c0_65 = arith.constant 0 : index
      %195 = vector.load %arg12[%c0_64, %194, %c0_65] : memref<2x8x512xf32, #tpu.memory_space<vmem>>, vector<2x1x512xf32>
      %196 = vector.shape_cast %195 : vector<2x1x512xf32> to vector<2x512xf32>
      %cst_66 = arith.constant dense<0.000000e+00> : vector<2x512xf32>
      %197 = tpu.matmul %193, %44, %cst_66 {dimension_numbers = #tpu.dot_dimension_numbers<[1], [0], [0], [1], [0, 0, 1, 1], [], []>} : vector<2x128xf32>, vector<128x512xf32>, vector<2x512xf32> -> vector<2x512xf32>
      %198 = arith.addf %196, %197 : vector<2x512xf32>
      %199 = vector.extract_strided_slice %198 {offsets = [0, 0], sizes = [2, 384], strides = [1, 1]} : vector<2x512xf32> to vector<2x384xf32>
      %200 = arith.negf %199 : vector<2x384xf32>
      %201 = math.exp %200 : vector<2x384xf32>
      %cst_67 = arith.constant 1.000000e+00 : f32
      %202 = vector.broadcast %cst_67 : f32 to vector<2x384xf32>
      %203 = arith.addf %202, %201 : vector<2x384xf32>
      %204 = arith.divf %202, %203 : vector<2x384xf32>
      %205 = vector.extract_strided_slice %204 {offsets = [0, 0], sizes = [2, 128], strides = [1, 1]} : vector<2x384xf32> to vector<2x128xf32>
      %206 = vector.extract_strided_slice %204 {offsets = [0, 128], sizes = [2, 128], strides = [1, 1]} : vector<2x384xf32> to vector<2x128xf32>
      %207 = vector.extract_strided_slice %204 {offsets = [0, 256], sizes = [2, 128], strides = [1, 1]} : vector<2x384xf32> to vector<2x128xf32>
      %208 = vector.extract_strided_slice %198 {offsets = [0, 384], sizes = [2, 128], strides = [1, 1]} : vector<2x512xf32> to vector<2x128xf32>
      %209 = math.tanh %208 : vector<2x128xf32>
      %210 = arith.mulf %206, %191 : vector<2x128xf32>
      %211 = arith.mulf %205, %209 : vector<2x128xf32>
      %212 = arith.addf %210, %211 : vector<2x128xf32>
      %213 = math.tanh %212 : vector<2x128xf32>
      %214 = arith.mulf %207, %213 : vector<2x128xf32>
      %c8_i32 = arith.constant 8 : i32
      %c0_68 = arith.constant 0 : index
      %c0_69 = arith.constant 0 : index
      %215 = vector.load %arg9[%c0_68, %c0_69] : memref<2x128xf32, #tpu.memory_space<vmem>>, vector<2x128xf32>
      tpu.vector_store %arg9[%c0_68, %c0_69], %214 {strides = array<i32>} : memref<2x128xf32, #tpu.memory_space<vmem>>, vector<2x128xf32>,
      %c0_70 = arith.constant 0 : index
      %c0_71 = arith.constant 0 : index
      %216 = vector.load %arg10[%c0_70, %c0_71] : memref<2x128xf32, #tpu.memory_space<vmem>>, vector<2x128xf32>
      tpu.vector_store %arg10[%c0_70, %c0_71], %212 {strides = array<i32>} : memref<2x128xf32, #tpu.memory_space<vmem>>, vector<2x128xf32>,
    } else {
    }
    %c1_i32_16 = arith.constant 1 : i32
    %31 = arith.cmpi eq, %arg1, %c1_i32_16 : i32
    %32 = arith.extui %31 : i1 to i32
    %c0_i32_17 = arith.constant 0 : i32
    %33 = arith.cmpi ne, %32, %c0_i32_17 : i32
    scf.if %33 {
      %c0 = arith.constant 0 : index
      %c0_18 = arith.constant 0 : index
      %34 = vector.load %arg9[%c0, %c0_18] : memref<2x128xf32, #tpu.memory_space<vmem>>, vector<2x128xf32>
      %35 = arith.truncf %34 : vector<2x128xf32> to vector<2x128xbf16>
      %c0_19 = arith.constant 0 : index
      %c0_20 = arith.constant 0 : index
      %36 = vector.load %arg6[%c0_19, %c0_20] : memref<128x32xbf16, #tpu.memory_space<vmem>>, vector<128x32xbf16>
      %cst = arith.constant dense<0.000000e+00> : vector<2x32xf32>
      %37 = tpu.matmul %35, %36, %cst {dimension_numbers = #tpu.dot_dimension_numbers<[1], [0], [0], [1], [0, 0, 1, 1], [], []>} : vector<2x128xbf16>, vector<128x32xbf16>, vector<2x32xf32> -> vector<2x32xf32>
      %c0_21 = arith.constant 0 : index
      %c0_22 = arith.constant 0 : index
      %38 = vector.load %arg7[%c0_21, %c0_22] : memref<1x32xf32, #tpu.memory_space<vmem>>, vector<1x32xf32>
      %39 = vector.broadcast %38 : vector<1x32xf32> to vector<2x32xf32>
      %40 = arith.addf %37, %39 : vector<2x32xf32>
      %c0_23 = arith.constant 0 : index
      %c0_24 = arith.constant 0 : index
      %41 = vector.load %arg8[%c0_23, %c0_24] : memref<2x32xf32, #tpu.memory_space<vmem>>, vector<2x32xf32>
      tpu.vector_store %arg8[%c0_23, %c0_24], %40 {strides = array<i32>} : memref<2x32xf32, #tpu.memory_space<vmem>>, vector<2x32xf32>,
    } else {
    }
    return
  }
  func.func @transform_0(%arg0: i32, %arg1: i32) -> (i32, i32, i32) {
    %c0_i32 = arith.constant 0 : i32
    %0 = arith.minsi %arg1, %c0_i32 : i32
    %c0_i32_0 = arith.constant 0 : i32
    %c0_i32_1 = arith.constant 0 : i32
    return %arg0, %0, %c0_i32_0 : i32, i32, i32
  }
  func.func @transform_1(%arg0: i32, %arg1: i32) -> (i32, i32) {
    %c0_i32 = arith.constant 0 : i32
    %c0_i32_0 = arith.constant 0 : i32
    %c0_i32_1 = arith.constant 0 : i32
    return %c0_i32, %c0_i32_0 : i32, i32
  }
  func.func @transform_2(%arg0: i32, %arg1: i32) -> (i32, i32) {
    %c0_i32 = arith.constant 0 : i32
    %c0_i32_0 = arith.constant 0 : i32
    %c0_i32_1 = arith.constant 0 : i32
    return %c0_i32, %c0_i32_0 : i32, i32
  }
  func.func @transform_3(%arg0: i32, %arg1: i32) -> (i32, i32) {
    %c0_i32 = arith.constant 0 : i32
    %c0_i32_0 = arith.constant 0 : i32
    %c0_i32_1 = arith.constant 0 : i32
    return %c0_i32, %c0_i32_0 : i32, i32
  }
  func.func @transform_4(%arg0: i32, %arg1: i32) -> (i32, i32) {
    %c0_i32 = arith.constant 0 : i32
    %c0_i32_0 = arith.constant 0 : i32
    %c0_i32_1 = arith.constant 0 : i32
    return %c0_i32, %c0_i32_0 : i32, i32
  }
  func.func @transform_5(%arg0: i32, %arg1: i32) -> (i32, i32) {
    %c0_i32 = arith.constant 0 : i32
    %c0_i32_0 = arith.constant 0 : i32
    %c0_i32_1 = arith.constant 0 : i32
    return %c0_i32, %c0_i32_0 : i32, i32
  }
  func.func @transform_6(%arg0: i32, %arg1: i32) -> (i32, i32) {
    %c0_i32 = arith.constant 0 : i32
    %c0_i32_0 = arith.constant 0 : i32
    return %arg0, %c0_i32 : i32, i32
  }
}

</mosaic_0001>

<llo_original>
// kernel: tpu_custom_call.1
$region0: #{tpu_custom_call.1}
  #allocation0 [shape = 'u32[]', space=smem, size = 0x4, offset = 0x4, fixed_abs, tag = 'smem constant byte address 0x4 - core index']
  #allocation1 [shape = 'u32[72,128]{1,0:T(1,128)}', space=vmem, size = 0x9000, scoped, tag = 'internal scratch']
  #allocation2 [shape = 'f32[2,128]{1,0:T(2,128)}', space=vmem, size = 0x400, scoped, tag = 'scratch operand']
  #allocation3 [shape = 'f32[2,128]{1,0:T(2,128)}', space=vmem, size = 0x400, scoped, tag = 'scratch operand']
  #allocation4 [shape = 'f32[2,8,512]{2,1,0:T(8,128)}', space=vmem, size = 0x8000, scoped, tag = 'scratch operand']
  #allocation5 [shape = 'f32[2,8,512]{2,1,0:T(8,128)}', space=vmem, size = 0x8000, scoped, tag = 'scratch operand']
  %s0 = inlined_call_operand.vmem [shape: f32[2,8,32], index: 0, kind: input, shape index: {}]
  %s1 = inlined_call_operand.vmem [shape: bf16[32,512], index: 1, kind: input, shape index: {}]
  %s2 = inlined_call_operand.hbm [shape: f32[128,512], index: 2, kind: input, shape index: {}]
  %s3 = inlined_call_operand.hbm [shape: f32[1,512], index: 3, kind: input, shape index: {}]
  %s4 = inlined_call_operand.vmem [shape: bf16[128,32], index: 4, kind: input, shape index: {}]
  %s5 = inlined_call_operand.vmem [shape: f32[1,32], index: 5, kind: input, shape index: {}]
  %s6 = inlined_call_operand.hbm [shape: f32[2,32], index: 6, kind: output, shape index: {}]
  %s7 = sld [smem:[#allocation0]]
  $region81: #{tpu_custom_call.1} parent=0
    _
  %s9 = ssub.s32 1, %s7
  %s10 = scalar_select 0, %s9, %s7
  $region1: #{tpu_custom_call.1} parent=0
    #allocation6 [shape = 'u8[262144]{0}', space=vmem, size = 0x40000, scoped, tag = 'input window, operand 2, single buffered']
    #allocation7 [shape = 's32[2]{0}', space=sflag, size = 0x8, scoped, tag = 'scoped memory for tpu_custom_call.1']
    #allocation8 [shape = 's32[2]{0}', space=sflag, size = 0x8, scoped, tag = 'scoped memory for tpu_custom_call.1']
    #allocation9 [shape = 'u8[2048]{0}', space=vmem, size = 0x800, scoped, tag = 'input window, operand 3, single buffered']
    #allocation10 [shape = 's32[1]{0}', space=sflag, size = 0x4, scoped, tag = 'scoped memory for tpu_custom_call.1']
    #allocation11 [shape = 'u8[1024]{0}', space=vmem, size = 0x400, scoped, tag = 'output window, operand 0, single buffered']
    %11 = vsyncpa [#allocation7], 0
    %12 = vsyncpa [#allocation10], 0
    %13 = vsyncpa [#allocation8], 0
    loop: start=0, step=1, limit=4
    $region2: #{tpu_custom_call.1} parent=1 // loop_pre_header
      _
    $region3: #{tpu_custom_call.1} parent=1 // loop_header
      %s15 = sphi 0, %s19
      %p16 = scmp.ge.s32.totalorder %s15, 4
      %s22 = sphi 0, %s34
      %s23 = sphi 0, %s30
      %s24 = sphi 0, %s22
      %s25 = sphi 0, %s23
      %s26 = sphi 0, %s24
      %s27 = sphi 0, %s25
      %s43 = sphi 0, %s45
      %s46 = sphi 0, %s43
      %s47 = sphi 0, %s46
      %s63 = sphi 0, %s47
      %s67 = sphi 0, %s67
      %s69 = sphi 0, %s67
      %s70 = sphi 0, %s69
      %s84 = sphi 0, %s70
      %s88 = sphi 0, %s88
      %s90 = sphi 0, %s88
      %s91 = sphi 0, %s90
      %s105 = sphi 0, %s91
      %s109 = sphi 0, %s109
      %s111 = sphi 0, %s109
      %s112 = sphi 0, %s111
      %s126 = sphi 0, %s112
      %s130 = sphi 0, %s130
      %s132 = sphi 0, %s130
      %s133 = sphi 0, %s132
      %s147 = sphi 0, %s133
      %s151 = sphi 0, %s151
      %s153 = sphi 0, %s151
      %s154 = sphi 0, %s153
      %s168 = sphi 0, %s154
      %s174 = sphi 0, %s176
      %s177 = sphi 0, %s174
      %s178 = sphi 0, %s177
      %s194 = sphi 0, %s178
    $region4: #{tpu_custom_call.1} parent=1 // loop_header_branch
      %18 = sbr.rel (%p16) target = $region8
    $region5: #{tpu_custom_call.1} parent=1 // loop_body
      %s20 = ssub.s32 %s15, 1
      %s21 = ssub.s32 %s15, 2
      %s28 = sadd.s32 1, %s23
      %p29 = scmp.ge.s32.totalorder %s28, 2
      %s30 = scalar_select %p29, 0, %s28
      %s31 = sadd.s32 1, %s22
      %s32 = scalar_select %p29, %s31, %s22
      %p33 = scmp.ge.s32.totalorder %s32, 1
      %s34 = scalar_select %p33, 0, %s32
      %p35 = scmp.lt.s32.totalorder %s23, 0
      %s36 = scalar_select %p35, %s23, 0
      %p37 = scmp.lt.s32.totalorder %s30, 0
      %s38 = scalar_select %p37, %s30, 0
      %s39 = ssub.s32 %s22, %s34
      %s40 = ssub.s32 %s36, %s38
      %s41 = sor.u32 %s39, %s40
      %p42 = scmp.eq.s32.totalorder %s41, 0
      %s44 = sadd.s32 %s43, 1
      %s45 = scalar_select %p42, %s43, %s44
      %p48 = pneg %p42
      %p49 = scmp.eq.s32.totalorder %s15, 1
      %p50 = por %p48, %p49
      %p51 = scmp.ne.s32.totalorder %s43, %s46
      %p52 = scmp.eq.s32.totalorder %s15, 0
      %p53 = por %p51, %p52
      %p54 = scmp.ne.s32.totalorder %s43, %s46
      %p55 = scmp.eq.s32.totalorder %s20, 1
      %p56 = por %p54, %p55
      %p57 = scmp.ne.s32.totalorder %s46, %s47
      %p58 = scmp.eq.s32.totalorder %s20, 0
      %p59 = por %p57, %p58
      %p60 = scmp.ne.s32.totalorder %s46, %s47
      %p61 = scmp.eq.s32.totalorder %s21, 1
      %p62 = por %p60, %p61
      %p64 = scmp.ne.s32.totalorder %s47, %s63
      %p65 = scmp.eq.s32.totalorder %s21, 0
      %p66 = por %p64, %p65
      %s68 = sadd.s32 %s67, 1
      %p71 = scmp.eq.s32.totalorder %s15, 1
      %p72 = scmp.ne.s32.totalorder %s67, %s69
      %p73 = scmp.eq.s32.totalorder %s15, 0
      %p74 = por %p72, %p73
      %p75 = scmp.ne.s32.totalorder %s67, %s69
      %p76 = scmp.eq.s32.totalorder %s20, 1
      %p77 = por %p75, %p76
      %p78 = scmp.ne.s32.totalorder %s69, %s70
      %p79 = scmp.eq.s32.totalorder %s20, 0
      %p80 = por %p78, %p79
      %p81 = scmp.ne.s32.totalorder %s69, %s70
      %p82 = scmp.eq.s32.totalorder %s21, 1
      %p83 = por %p81, %p82
      %p85 = scmp.ne.s32.totalorder %s70, %s84
      %p86 = scmp.eq.s32.totalorder %s21, 0
      %p87 = por %p85, %p86
      %s89 = sadd.s32 %s88, 1
      %p92 = scmp.eq.s32.totalorder %s15, 1
      %p93 = scmp.ne.s32.totalorder %s88, %s90
      %p94 = scmp.eq.s32.totalorder %s15, 0
      %p95 = por %p93, %p94
      %p96 = scmp.ne.s32.totalorder %s88, %s90
      %p97 = scmp.eq.s32.totalorder %s20, 1
      %p98 = por %p96, %p97
      %p99 = scmp.ne.s32.totalorder %s90, %s91
      %p100 = scmp.eq.s32.totalorder %s20, 0
      %p101 = por %p99, %p100
      %p102 = scmp.ne.s32.totalorder %s90, %s91
      %p103 = scmp.eq.s32.totalorder %s21, 1
      %p104 = por %p102, %p103
      %p106 = scmp.ne.s32.totalorder %s91, %s105
      %p107 = scmp.eq.s32.totalorder %s21, 0
      %p108 = por %p106, %p107
      %s110 = sadd.s32 %s109, 1
      %p113 = scmp.eq.s32.totalorder %s15, 1
      %p114 = scmp.ne.s32.totalorder %s109, %s111
      %p115 = scmp.eq.s32.totalorder %s15, 0
      %p116 = por %p114, %p115
      %p117 = scmp.ne.s32.totalorder %s109, %s111
      %p118 = scmp.eq.s32.totalorder %s20, 1
      %p119 = por %p117, %p118
      %p120 = scmp.ne.s32.totalorder %s111, %s112
      %p121 = scmp.eq.s32.totalorder %s20, 0
      %p122 = por %p120, %p121
      %p123 = scmp.ne.s32.totalorder %s111, %s112
      %p124 = scmp.eq.s32.totalorder %s21, 1
      %p125 = por %p123, %p124
      %p127 = scmp.ne.s32.totalorder %s112, %s126
      %p128 = scmp.eq.s32.totalorder %s21, 0
      %p129 = por %p127, %p128
      %s131 = sadd.s32 %s130, 1
      %p134 = scmp.eq.s32.totalorder %s15, 1
      %p135 = scmp.ne.s32.totalorder %s130, %s132
      %p136 = scmp.eq.s32.totalorder %s15, 0
      %p137 = por %p135, %p136
      %p138 = scmp.ne.s32.totalorder %s130, %s132
      %p139 = scmp.eq.s32.totalorder %s20, 1
      %p140 = por %p138, %p139
      %p141 = scmp.ne.s32.totalorder %s132, %s133
      %p142 = scmp.eq.s32.totalorder %s20, 0
      %p143 = por %p141, %p142
      %p144 = scmp.ne.s32.totalorder %s132, %s133
      %p145 = scmp.eq.s32.totalorder %s21, 1
      %p146 = por %p144, %p145
      %p148 = scmp.ne.s32.totalorder %s133, %s147
      %p149 = scmp.eq.s32.totalorder %s21, 0
      %p150 = por %p148, %p149
      %s152 = sadd.s32 %s151, 1
      %p155 = scmp.eq.s32.totalorder %s15, 1
      %p156 = scmp.ne.s32.totalorder %s151, %s153
      %p157 = scmp.eq.s32.totalorder %s15, 0
      %p158 = por %p156, %p157
      %p159 = scmp.ne.s32.totalorder %s151, %s153
      %p160 = scmp.eq.s32.totalorder %s20, 1
      %p161 = por %p159, %p160
      %p162 = scmp.ne.s32.totalorder %s153, %s154
      %p163 = scmp.eq.s32.totalorder %s20, 0
      %p164 = por %p162, %p163
      %p165 = scmp.ne.s32.totalorder %s153, %s154
      %p166 = scmp.eq.s32.totalorder %s21, 1
      %p167 = por %p165, %p166
      %p169 = scmp.ne.s32.totalorder %s154, %s168
      %p170 = scmp.eq.s32.totalorder %s21, 0
      %p171 = por %p169, %p170
      %s172 = ssub.s32 %s22, %s34
      %p173 = scmp.eq.s32.totalorder %s172, 0
      %s175 = sadd.s32 %s174, 1
      %s176 = scalar_select %p173, %s174, %s175
      %p179 = pneg %p173
      %p180 = scmp.eq.s32.totalorder %s15, 1
      %p181 = por %p179, %p180
      %p182 = scmp.ne.s32.totalorder %s174, %s177
      %p183 = scmp.eq.s32.totalorder %s15, 0
      %p184 = por %p182, %p183
      %p185 = scmp.ne.s32.totalorder %s174, %s177
      %p186 = scmp.eq.s32.totalorder %s20, 1
      %p187 = por %p185, %p186
      %p188 = scmp.ne.s32.totalorder %s177, %s178
      %p189 = scmp.eq.s32.totalorder %s20, 0
      %p190 = por %p188, %p189
      %p191 = scmp.ne.s32.totalorder %s177, %s178
      %p192 = scmp.eq.s32.totalorder %s21, 1
      %p193 = por %p191, %p192
      %p195 = scmp.ne.s32.totalorder %s178, %s194
      %p196 = scmp.eq.s32.totalorder %s21, 0
      %p197 = por %p195, %p196
      %p198 = scmp.le.s32.totalorder 1, %s15
      %p199 = scmp.lt.s32.totalorder %s15, 3
      %p200 = pnand %p198, %p199
      %p201 = pneg %p200
      // Predicated region
      $region9: #{tpu_custom_call.1} parent=5 // pred_check
        _
      $region10: #{tpu_custom_call.1} parent=5 // pred_check_branch
        %203 = sbr.rel (%p200) target = $region12
      $region11: #{tpu_custom_call.1} parent=5 // pred_region
        %s204 = ssub.s32 %s15, 1
        // Predicated region
        $region13: #{tpu_custom_call.1} parent=11 // pred_check
          %p205 = pneg %p80
        $region14: #{tpu_custom_call.1} parent=11 // pred_check_branch
          %207 = sbr.rel (%p205) target = $region16
        $region15: #{tpu_custom_call.1} parent=11 // pred_region
          _
        $region16: #{tpu_custom_call.1} parent=11 // pred_fallthru
          _
        // Predicated region
        $region17: #{tpu_custom_call.1} parent=11 // pred_check
          %p208 = pneg %p101
        $region18: #{tpu_custom_call.1} parent=11 // pred_check_branch
          %210 = sbr.rel (%p208) target = $region20
        $region19: #{tpu_custom_call.1} parent=11 // pred_region
          %212 = vsyncadd [#allocation7], 0
          %s213 = sshll.u32 %s2, 4
          %s214 = int_to_ptr.hbm [resolvable:$true] %s213
          %s215 = sshll.u32 [#allocation6], 4
          %s216 = int_to_ptr.vmem [resolvable:$true] %s215
          %221 = dma.hbm_to_vmem [thread:$0]  %s214, 8192, %s216, [#allocation7], 512, 512, 32
        $region20: #{tpu_custom_call.1} parent=11 // pred_fallthru
          _
        // Predicated region
        $region21: #{tpu_custom_call.1} parent=11 // pred_check
          %p222 = pneg %p122
        $region22: #{tpu_custom_call.1} parent=11 // pred_check_branch
          %224 = sbr.rel (%p222) target = $region24
        $region23: #{tpu_custom_call.1} parent=11 // pred_region
          %226 = vsyncadd [#allocation10], 0
          %s228 = sshll.u32 %s3, 4
          %s229 = int_to_ptr.hbm [resolvable:$true] %s228
          %s230 = sshll.u32 [#allocation9], 4
          %s231 = int_to_ptr.vmem [resolvable:$true] %s230
          %233 = dma.hbm_to_vmem [thread:$0]  %s229, 64, %s231, [#allocation10]
        $region24: #{tpu_custom_call.1} parent=11 // pred_fallthru
          _
        // Predicated region
        $region25: #{tpu_custom_call.1} parent=11 // pred_check
          %p234 = pneg %p143
        $region26: #{tpu_custom_call.1} parent=11 // pred_check_branch
          %236 = sbr.rel (%p234) target = $region28
        $region27: #{tpu_custom_call.1} parent=11 // pred_region
          _
        $region28: #{tpu_custom_call.1} parent=11 // pred_fallthru
          _
        // Predicated region
        $region29: #{tpu_custom_call.1} parent=11 // pred_check
          %p237 = pneg %p164
        $region30: #{tpu_custom_call.1} parent=11 // pred_check_branch
          %239 = sbr.rel (%p237) target = $region32
        $region31: #{tpu_custom_call.1} parent=11 // pred_region
          _
        $region32: #{tpu_custom_call.1} parent=11 // pred_fallthru
          _
      $region12: #{tpu_custom_call.1} parent=5 // pred_fallthru
        _
      %p240 = scmp.lt.s32.totalorder %s15, 2
      // Predicated region
      $region33: #{tpu_custom_call.1} parent=5 // pred_check
        %p241 = pneg %p240
      $region34: #{tpu_custom_call.1} parent=5 // pred_check_branch
        %243 = sbr.rel (%p241) target = $region36
      $region35: #{tpu_custom_call.1} parent=5 // pred_region
        // Predicated region
        $region37: #{tpu_custom_call.1} parent=35 // pred_check
          %p244 = pneg %p53
        $region38: #{tpu_custom_call.1} parent=35 // pred_check_branch
          %246 = sbr.rel (%p244) target = $region40
        $region39: #{tpu_custom_call.1} parent=35 // pred_region
          %p247 = scmp.lt.s32.totalorder %s23, 0
          %s248 = scalar_select %p247, %s23, 0
          %s249 = smul.u32 2, %s22
          %p250 = scmp.lt.s32.totalorder %s249, 1
          %s251 = scalar_select %p250, %s249, 1
          %p252 = scmp.lt.s32.totalorder %s248, 0
          %s253 = scalar_select %p252, %s248, 0
          %s254 = sadd.s32 %s253, %s251
          %s255 = smul.addr %s254, 8
          %s256 = scalar_lea.vmem %s0, %s255
          %p257 = scmp.lt.s32.totalorder %s23, 0
          %s258 = scalar_select %p257, %s23, 0
          %s259 = smul.u32 2, %s22
        $region40: #{tpu_custom_call.1} parent=35 // pred_fallthru
          _
      $region36: #{tpu_custom_call.1} parent=5 // pred_fallthru
        _
      %p260 = scmp.le.s32.totalorder 1, %s15
      %p261 = scmp.lt.s32.totalorder %s15, 3
      %p262 = pnand %p260, %p261
      %p263 = pneg %p262
      // Predicated region
      $region41: #{tpu_custom_call.1} parent=5 // pred_check
        _
      $region42: #{tpu_custom_call.1} parent=5 // pred_check_branch
        %265 = sbr.rel (%p262) target = $region44
      $region43: #{tpu_custom_call.1} parent=5 // pred_region
        %s266 = ssub.s32 %s15, 1
        // Predicated region
        $region45: #{tpu_custom_call.1} parent=43 // pred_check
          %p267 = pneg %p101
        $region46: #{tpu_custom_call.1} parent=43 // pred_check_branch
          %269 = sbr.rel (%p267) target = $region48
        $region47: #{tpu_custom_call.1} parent=43 // pred_region
          %271 = dma.done [#allocation7], 8192
        $region48: #{tpu_custom_call.1} parent=43 // pred_fallthru
          _
        // Predicated region
        $region49: #{tpu_custom_call.1} parent=43 // pred_check
          %p272 = pneg %p122
        $region50: #{tpu_custom_call.1} parent=43 // pred_check_branch
          %274 = sbr.rel (%p272) target = $region52
        $region51: #{tpu_custom_call.1} parent=43 // pred_region
          %276 = dma.done [#allocation10], 64
        $region52: #{tpu_custom_call.1} parent=43 // pred_fallthru
          _
        %p277 = scmp.lt.s32.totalorder %s25, 0
        %s278 = scalar_select %p277, %s25, 0
        %s279 = smul.u32 2, %s24
        %p280 = scmp.lt.s32.totalorder %s279, 1
        %s281 = scalar_select %p280, %s279, 1
        %p282 = scmp.lt.s32.totalorder %s278, 0
        %s283 = scalar_select %p282, %s278, 0
        %s284 = sadd.s32 %s283, %s281
        %s285 = smul.addr %s284, 8
        %s286 = scalar_lea.vmem %s0, %s285
        %p287 = pneg %p59
        %p288 = pneg %p56
        %p289 = pneg %p80
        %p290 = pneg %p77
        %p291 = pneg %p101
        %p292 = pneg %p98
        %p293 = pneg %p122
        %p294 = pneg %p119
        %p295 = pneg %p143
        %p296 = pneg %p140
        %p297 = pneg %p164
        %p298 = pneg %p161
        %p299 = pneg %p190
        %p300 = pneg %p187
        %p301 = scmp.lt.s32.totalorder %s25, 0
        %s302 = scalar_select %p301, %s25, 0
        %s303 = smul.u32 2, %s24
        %p304 = scmp.lt.s32.totalorder %s303, 1
        %s305 = scalar_select %p304, %s303, 1
        %p306 = scmp.lt.s32.totalorder %s302, 0
        %s307 = scalar_select %p306, %s302, 0
        %s308 = sadd.s32 %s307, %s305
        %s309 = smul.addr %s308, 8
        %s310 = scalar_lea.vmem %s0, %s309
        %p311 = scmp.lt.s32.totalorder %s25, 0
        %s312 = scalar_select %p311, %s25, 0
        %s313 = smul.u32 2, %s24
        %p315 = scmp.eq.s32.totalorder %s25, 0
        // Predicated region
        $region53: #{tpu_custom_call.1} parent=43 // pred_check
          %p316 = pneg %p315
        $region54: #{tpu_custom_call.1} parent=43 // pred_check_branch
          %318 = sbr.rel (%p316) target = $region56
        $region55: #{tpu_custom_call.1} parent=43 // pred_region
          %319 = vst [vmem:[#allocation2] sm:$0x3] 0.0
          %320 = vst [vmem:[#allocation3] sm:$0x3] 0.0
          %v321 = vld [vmem:[%s310] sm:$0xff]
          %v322 = vld [vmem:[%s310 + $0x8] sm:$0xff]
          %v323 = vpack.c.bf16 %v321, %v321
          %v324 = vpack.c.bf16 %v322, %v322
          %v325 = vld [vmem:[%s1] sm:$0xff]
          %v326 = vld [vmem:[%s1 + $0x8] sm:$0xff]
          %v327 = vld [vmem:[%s1 + $0x10] sm:$0xff]
          %v328 = vld [vmem:[%s1 + $0x18] sm:$0xff]
          %v329 = vld [vmem:[%s1 + $0x20] sm:$0xff]
          %v330 = vld [vmem:[%s1 + $0x28] sm:$0xff]
          %v331 = vld [vmem:[%s1 + $0x30] sm:$0xff]
          %v332 = vld [vmem:[%s1 + $0x38] sm:$0xff]
          %v333 = vld [vmem:[#allocation9] sm:$0xf]
          %v335 = vperm.slane %v333, 0
          %v336 = vperm.slane %v333, 1
          %v337 = vperm.slane %v333, 2
          %v338 = vperm.slane %v333, 3
          %v345 = vunpack.c.l.b16 %v323
          %v346 = vunpack.c.l.b16 %v324
          %v347 = vpack.c.b16 %v346, %v345
          %v356 = vunpack.c.l.b16 %v325
          %v357 = vunpack.c.h.b16 %v325
          %v358 = vunpack.c.l.b16 %v326
          %v359 = vunpack.c.h.b16 %v326
          %v360 = vunpack.c.l.b16 %v327
          %v361 = vunpack.c.h.b16 %v327
          %v362 = vunpack.c.l.b16 %v328
          %v363 = vunpack.c.h.b16 %v328
          %v364 = vunpack.c.l.b16 %v329
          %v365 = vunpack.c.h.b16 %v329
          %v366 = vunpack.c.l.b16 %v330
          %v367 = vunpack.c.h.b16 %v330
          %v368 = vunpack.c.l.b16 %v331
          %v369 = vunpack.c.h.b16 %v331
          %v370 = vunpack.c.l.b16 %v332
          %v371 = vunpack.c.h.b16 %v332
          %v372 = vpack.c.b16 %v360, %v356
          %v373 = vpack.c.b16 %v361, %v357
          %v374 = vpack.c.b16 %v362, %v358
          %v375 = vpack.c.b16 %v363, %v359
          %v376 = vpack.c.b16 %v368, %v364
          %v377 = vpack.c.b16 %v369, %v365
          %v378 = vpack.c.b16 %v370, %v366
          %v379 = vpack.c.b16 %v371, %v367
          %vm388 = vcmask 261120
          %v390 = vsel %vm388, %v347, 0
          %392 = vmatpush.bf16.msra.mxu0 0
          %393 = vmatpush.bf16.msra.mxu0 0
          %394 = vmatpush.bf16.msra.mxu0 0
          %395 = vmatpush.bf16.msra.mxu0 0
          %396 = vmatpush.bf16.msra.mxu0 0
          %397 = vmatpush.bf16.msra.mxu0 0
          %398 = vmatpush.bf16.msra.mxu0 %v376
          %399 = vmatpush.bf16.msra.mxu0 %v372
          %400 = vmatmul.bf16.gmra.mxu0 %v390
          %v401 = vpop.f32.mrf.mxu0
          %v402 = vadd.f32 %v335, %v401
          %v403 = vpop.f32.mrf.mxu0
          %v404 = vadd.f32 %v335, %v403
          %405 = vdwg.mxu0
          %406 = vmatpush.bf16.msra.mxu0 0
          %407 = vmatpush.bf16.msra.mxu0 0
          %408 = vmatpush.bf16.msra.mxu0 0
          %409 = vmatpush.bf16.msra.mxu0 0
          %410 = vmatpush.bf16.msra.mxu0 0
          %411 = vmatpush.bf16.msra.mxu0 0
          %412 = vmatpush.bf16.msra.mxu0 %v377
          %413 = vmatpush.bf16.msra.mxu0 %v373
          %414 = vmatmul.bf16.gmra.mxu0 %v390
          %v415 = vpop.f32.mrf.mxu0
          %v416 = vadd.f32 %v336, %v415
          %v417 = vpop.f32.mrf.mxu0
          %v418 = vadd.f32 %v336, %v417
          %419 = vdwg.mxu0
          %420 = vmatpush.bf16.msra.mxu0 0
          %421 = vmatpush.bf16.msra.mxu0 0
          %422 = vmatpush.bf16.msra.mxu0 0
          %423 = vmatpush.bf16.msra.mxu0 0
          %424 = vmatpush.bf16.msra.mxu0 0
          %425 = vmatpush.bf16.msra.mxu0 0
          %426 = vmatpush.bf16.msra.mxu0 %v378
          %427 = vmatpush.bf16.msra.mxu0 %v374
          %428 = vmatmul.bf16.gmra.mxu0 %v390
          %v429 = vpop.f32.mrf.mxu0
          %v430 = vadd.f32 %v337, %v429
          %v431 = vpop.f32.mrf.mxu0
          %v432 = vadd.f32 %v337, %v431
          %433 = vdwg.mxu0
          %434 = vmatpush.bf16.msra.mxu0 0
          %435 = vmatpush.bf16.msra.mxu0 0
          %436 = vmatpush.bf16.msra.mxu0 0
          %437 = vmatpush.bf16.msra.mxu0 0
          %438 = vmatpush.bf16.msra.mxu0 0
          %439 = vmatpush.bf16.msra.mxu0 0
          %440 = vmatpush.bf16.msra.mxu0 %v379
          %441 = vmatpush.bf16.msra.mxu0 %v375
          %442 = vmatmul.bf16.gmra.mxu0 %v390
          %v443 = vpop.f32.mrf.mxu0
          %v444 = vadd.f32 %v338, %v443
          %v445 = vpop.f32.mrf.mxu0
          %v446 = vadd.f32 %v338, %v445
          %447 = vdwg.mxu0
          %448 = vst [vmem:[#allocation4] sm:$0xff] %v402
          %449 = vst [vmem:[#allocation4 + $0x8] sm:$0xff] %v416
          %450 = vst [vmem:[#allocation4 + $0x10] sm:$0xff] %v430
          %451 = vst [vmem:[#allocation4 + $0x18] sm:$0xff] %v444
          %452 = vst [vmem:[#allocation4 + $0x20] sm:$0xff] %v404
          %453 = vst [vmem:[#allocation4 + $0x28] sm:$0xff] %v418
          %454 = vst [vmem:[#allocation4 + $0x30] sm:$0xff] %v432
          %455 = vst [vmem:[#allocation4 + $0x38] sm:$0xff] %v446
        $region56: #{tpu_custom_call.1} parent=43 // pred_fallthru
          _
        %p456 = scmp.lt.s32.totalorder %s25, 0
        %s457 = ssub.s32 0, %s25
        %s458 = scalar_select %p456, %s457, %s25
        %s459 = sand.u32 %s458, 1
        %s460 = ssub.s32 0, %s459
        %s461 = scalar_select %p456, %s460, %s459
        %p462 = scmp.ne.s32.totalorder %s461, 0
        %p463 = scmp.lt.s32.totalorder %s461, 0
        %p464 = pnand %p463, %p462
        %p465 = pneg %p464
        %s466 = sadd.s32 %s461, 2
        %s467 = scalar_select %p465, %s466, %s461
        %p468 = scmp.eq.s32.totalorder %s467, 1
        // Predicated region
        $region57: #{tpu_custom_call.1} parent=43 // pred_check
          %p469 = pneg %p468
        $region58: #{tpu_custom_call.1} parent=43 // pred_check_branch
          %471 = sbr.rel (%p469) target = $region60
        $region59: #{tpu_custom_call.1} parent=43 // pred_region
          %v472 = vld [vmem:[%s310] sm:$0xff]
          %v473 = vld [vmem:[%s310 + $0x8] sm:$0xff]
          %v474 = vpack.c.bf16 %v472, %v472
          %v475 = vpack.c.bf16 %v473, %v473
          %v476 = vld [vmem:[%s1] sm:$0xff]
          %v477 = vld [vmem:[%s1 + $0x8] sm:$0xff]
          %v478 = vld [vmem:[%s1 + $0x10] sm:$0xff]
          %v479 = vld [vmem:[%s1 + $0x18] sm:$0xff]
          %v480 = vld [vmem:[%s1 + $0x20] sm:$0xff]
          %v481 = vld [vmem:[%s1 + $0x28] sm:$0xff]
          %v482 = vld [vmem:[%s1 + $0x30] sm:$0xff]
          %v483 = vld [vmem:[%s1 + $0x38] sm:$0xff]
          %v484 = vld [vmem:[#allocation9] sm:$0xf]
          %v486 = vperm.slane %v484, 0
          %v487 = vperm.slane %v484, 1
          %v488 = vperm.slane %v484, 2
          %v489 = vperm.slane %v484, 3
          %v496 = vunpack.c.l.b16 %v474
          %v497 = vunpack.c.l.b16 %v475
          %v498 = vpack.c.b16 %v497, %v496
          %v507 = vunpack.c.l.b16 %v476
          %v508 = vunpack.c.h.b16 %v476
          %v509 = vunpack.c.l.b16 %v477
          %v510 = vunpack.c.h.b16 %v477
          %v511 = vunpack.c.l.b16 %v478
          %v512 = vunpack.c.h.b16 %v478
          %v513 = vunpack.c.l.b16 %v479
          %v514 = vunpack.c.h.b16 %v479
          %v515 = vunpack.c.l.b16 %v480
          %v516 = vunpack.c.h.b16 %v480
          %v517 = vunpack.c.l.b16 %v481
          %v518 = vunpack.c.h.b16 %v481
          %v519 = vunpack.c.l.b16 %v482
          %v520 = vunpack.c.h.b16 %v482
          %v521 = vunpack.c.l.b16 %v483
          %v522 = vunpack.c.h.b16 %v483
          %v523 = vpack.c.b16 %v511, %v507
          %v524 = vpack.c.b16 %v512, %v508
          %v525 = vpack.c.b16 %v513, %v509
          %v526 = vpack.c.b16 %v514, %v510
          %v527 = vpack.c.b16 %v519, %v515
          %v528 = vpack.c.b16 %v520, %v516
          %v529 = vpack.c.b16 %v521, %v517
          %v530 = vpack.c.b16 %v522, %v518
          %vm539 = vcmask 261120
          %v541 = vsel %vm539, %v498, 0
          %543 = vmatpush.bf16.msra.mxu0 0
          %544 = vmatpush.bf16.msra.mxu0 0
          %545 = vmatpush.bf16.msra.mxu0 0
          %546 = vmatpush.bf16.msra.mxu0 0
          %547 = vmatpush.bf16.msra.mxu0 0
          %548 = vmatpush.bf16.msra.mxu0 0
          %549 = vmatpush.bf16.msra.mxu0 %v527
          %550 = vmatpush.bf16.msra.mxu0 %v523
          %551 = vmatmul.bf16.gmra.mxu0 %v541
          %v552 = vpop.f32.mrf.mxu0
          %v553 = vadd.f32 %v486, %v552
          %v554 = vpop.f32.mrf.mxu0
          %v555 = vadd.f32 %v486, %v554
          %556 = vdwg.mxu0
          %557 = vmatpush.bf16.msra.mxu0 0
          %558 = vmatpush.bf16.msra.mxu0 0
          %559 = vmatpush.bf16.msra.mxu0 0
          %560 = vmatpush.bf16.msra.mxu0 0
          %561 = vmatpush.bf16.msra.mxu0 0
          %562 = vmatpush.bf16.msra.mxu0 0
          %563 = vmatpush.bf16.msra.mxu0 %v528
          %564 = vmatpush.bf16.msra.mxu0 %v524
          %565 = vmatmul.bf16.gmra.mxu0 %v541
          %v566 = vpop.f32.mrf.mxu0
          %v567 = vadd.f32 %v487, %v566
          %v568 = vpop.f32.mrf.mxu0
          %v569 = vadd.f32 %v487, %v568
          %570 = vdwg.mxu0
          %571 = vmatpush.bf16.msra.mxu0 0
          %572 = vmatpush.bf16.msra.mxu0 0
          %573 = vmatpush.bf16.msra.mxu0 0
          %574 = vmatpush.bf16.msra.mxu0 0
          %575 = vmatpush.bf16.msra.mxu0 0
          %576 = vmatpush.bf16.msra.mxu0 0
          %577 = vmatpush.bf16.msra.mxu0 %v529
          %578 = vmatpush.bf16.msra.mxu0 %v525
          %579 = vmatmul.bf16.gmra.mxu0 %v541
          %v580 = vpop.f32.mrf.mxu0
          %v581 = vadd.f32 %v488, %v580
          %v582 = vpop.f32.mrf.mxu0
          %v583 = vadd.f32 %v488, %v582
          %584 = vdwg.mxu0
          %585 = vmatpush.bf16.msra.mxu0 0
          %586 = vmatpush.bf16.msra.mxu0 0
          %587 = vmatpush.bf16.msra.mxu0 0
          %588 = vmatpush.bf16.msra.mxu0 0
          %589 = vmatpush.bf16.msra.mxu0 0
          %590 = vmatpush.bf16.msra.mxu0 0
          %591 = vmatpush.bf16.msra.mxu0 %v530
          %592 = vmatpush.bf16.msra.mxu0 %v526
          %593 = vmatmul.bf16.gmra.mxu0 %v541
          %v594 = vpop.f32.mrf.mxu0
          %v595 = vadd.f32 %v489, %v594
          %v596 = vpop.f32.mrf.mxu0
          %v597 = vadd.f32 %v489, %v596
          %598 = vdwg.mxu0
          %599 = vst [vmem:[#allocation5] sm:$0xff] %v553
          %600 = vst [vmem:[#allocation5 + $0x8] sm:$0xff] %v567
          %601 = vst [vmem:[#allocation5 + $0x10] sm:$0xff] %v581
          %602 = vst [vmem:[#allocation5 + $0x18] sm:$0xff] %v595
          %603 = vst [vmem:[#allocation5 + $0x20] sm:$0xff] %v555
          %604 = vst [vmem:[#allocation5 + $0x28] sm:$0xff] %v569
          %605 = vst [vmem:[#allocation5 + $0x30] sm:$0xff] %v583
          %606 = vst [vmem:[#allocation5 + $0x38] sm:$0xff] %v597
          %v607 = vld [vmem:[#allocation6] sm:$0xff]
          %v608 = vld [vmem:[#allocation6 + $0x8] sm:$0xff]
          %v609 = vld [vmem:[#allocation6 + $0x10] sm:$0xff]
          %v610 = vld [vmem:[#allocation6 + $0x18] sm:$0xff]
          %v611 = vld [vmem:[#allocation6 + $0x20] sm:$0xff]
          %v612 = vld [vmem:[#allocation6 + $0x28] sm:$0xff]
          %v613 = vld [vmem:[#allocation6 + $0x30] sm:$0xff]
          %v614 = vld [vmem:[#allocation6 + $0x38] sm:$0xff]
          %v615 = vld [vmem:[#allocation6 + $0x40] sm:$0xff]
          %v616 = vld [vmem:[#allocation6 + $0x48] sm:$0xff]
          %v617 = vld [vmem:[#allocation6 + $0x50] sm:$0xff]
          %v618 = vld [vmem:[#allocation6 + $0x58] sm:$0xff]
          %v619 = vld [vmem:[#allocation6 + $0x60] sm:$0xff]
          %v620 = vld [vmem:[#allocation6 + $0x68] sm:$0xff]
          %v621 = vld [vmem:[#allocation6 + $0x70] sm:$0xff]
          %v622 = vld [vmem:[#allocation6 + $0x78] sm:$0xff]
          %v623 = vld [vmem:[#allocation6 + $0x80] sm:$0xff]
          %v624 = vld [vmem:[#allocation6 + $0x88] sm:$0xff]
          %v625 = vld [vmem:[#allocation6 + $0x90] sm:$0xff]
          %v626 = vld [vmem:[#allocation6 + $0x98] sm:$0xff]
          %v627 = vld [vmem:[#allocation6 + $0xa0] sm:$0xff]
          %v628 = vld [vmem:[#allocation6 + $0xa8] sm:$0xff]
          %v629 = vld [vmem:[#allocation6 + $0xb0] sm:$0xff]
          %v630 = vld [vmem:[#allocation6 + $0xb8] sm:$0xff]
          %v631 = vld [vmem:[#allocation6 + $0xc0] sm:$0xff]
          %v632 = vld [vmem:[#allocation6 + $0xc8] sm:$0xff]
          %v633 = vld [vmem:[#allocation6 + $0xd0] sm:$0xff]
          %v634 = vld [vmem:[#allocation6 + $0xd8] sm:$0xff]
          %v635 = vld [vmem:[#allocation6 + $0xe0] sm:$0xff]
          %v636 = vld [vmem:[#allocation6 + $0xe8] sm:$0xff]
          %v637 = vld [vmem:[#allocation6 + $0xf0] sm:$0xff]
          %v638 = vld [vmem:[#allocation6 + $0xf8] sm:$0xff]
          %v639 = vld [vmem:[#allocation6 + $0x100] sm:$0xff]
          %v640 = vld [vmem:[#allocation6 + $0x108] sm:$0xff]
          %v641 = vld [vmem:[#allocation6 + $0x110] sm:$0xff]
          %v642 = vld [vmem:[#allocation6 + $0x118] sm:$0xff]
          %v643 = vld [vmem:[#allocation6 + $0x120] sm:$0xff]
          %v644 = vld [vmem:[#allocation6 + $0x128] sm:$0xff]
          %v645 = vld [vmem:[#allocation6 + $0x130] sm:$0xff]
          %v646 = vld [vmem:[#allocation6 + $0x138] sm:$0xff]
          %v647 = vld [vmem:[#allocation6 + $0x140] sm:$0xff]
          %v648 = vld [vmem:[#allocation6 + $0x148] sm:$0xff]
          %v649 = vld [vmem:[#allocation6 + $0x150] sm:$0xff]
          %v650 = vld [vmem:[#allocation6 + $0x158] sm:$0xff]
          %v651 = vld [vmem:[#allocation6 + $0x160] sm:$0xff]
          %v652 = vld [vmem:[#allocation6 + $0x168] sm:$0xff]
          %v653 = vld [vmem:[#allocation6 + $0x170] sm:$0xff]
          %v654 = vld [vmem:[#allocation6 + $0x178] sm:$0xff]
          %v655 = vld [vmem:[#allocation6 + $0x180] sm:$0xff]
          %v656 = vld [vmem:[#allocation6 + $0x188] sm:$0xff]
          %v657 = vld [vmem:[#allocation6 + $0x190] sm:$0xff]
          %v658 = vld [vmem:[#allocation6 + $0x198] sm:$0xff]
          %v659 = vld [vmem:[#allocation6 + $0x1a0] sm:$0xff]
          %v660 = vld [vmem:[#allocation6 + $0x1a8] sm:$0xff]
          %v661 = vld [vmem:[#allocation6 + $0x1b0] sm:$0xff]
          %v662 = vld [vmem:[#allocation6 + $0x1b8] sm:$0xff]
          %v663 = vld [vmem:[#allocation6 + $0x1c0] sm:$0xff]
          %v664 = vld [vmem:[#allocation6 + $0x1c8] sm:$0xff]
          %v665 = vld [vmem:[#allocation6 + $0x1d0] sm:$0xff]
          %v666 = vld [vmem:[#allocation6 + $0x1d8] sm:$0xff]
          %v667 = vld [vmem:[#allocation6 + $0x1e0] sm:$0xff]
          %v668 = vld [vmem:[#allocation6 + $0x1e8] sm:$0xff]
          %v669 = vld [vmem:[#allocation6 + $0x1f0] sm:$0xff]
          %v670 = vld [vmem:[#allocation6 + $0x1f8] sm:$0xff]
          %v671 = vld [vmem:[#allocation2] sm:$0x3]
          %v672 = vld [vmem:[#allocation3] sm:$0x3]
          %v673 = vld [vmem:[#allocation4] ss:$8 sm:$0xf]
          %s674 = scalar_lea.vmem [#allocation4], 32
          %v675 = vld [vmem:[%s674] ss:$8 sm:$0xf]
          %676 = vmatpush.msra.mxu0 %v667
          %677 = vmatpush.msra.mxu0 %v663
          %678 = vmatpush.msra.mxu0 %v659
          %679 = vmatpush.msra.mxu0 %v655
          %680 = vmatpush.msra.mxu0 %v651
          %681 = vmatpush.msra.mxu0 %v647
          %682 = vmatpush.msra.mxu0 %v643
          %683 = vmatpush.msra.mxu0 %v639
          %684 = vmatpush.msra.mxu0 %v635
          %685 = vmatpush.msra.mxu0 %v631
          %686 = vmatpush.msra.mxu0 %v627
          %687 = vmatpush.msra.mxu0 %v623
          %688 = vmatpush.msra.mxu0 %v619
          %689 = vmatpush.msra.mxu0 %v615
          %690 = vmatpush.msra.mxu0 %v611
          %691 = vmatpush.msra.mxu0 %v607
          %692 = vmatmul.f32.gmra.mxu0 %v671
          %v693 = vpop.f32.mrf.mxu0
          %v694 = vadd.f32 0.0, %v693
          %695 = vdwg.mxu0
          %696 = vmatpush.msra.mxu0 %v668
          %697 = vmatpush.msra.mxu0 %v664
          %698 = vmatpush.msra.mxu0 %v660
          %699 = vmatpush.msra.mxu0 %v656
          %700 = vmatpush.msra.mxu0 %v652
          %701 = vmatpush.msra.mxu0 %v648
          %702 = vmatpush.msra.mxu0 %v644
          %703 = vmatpush.msra.mxu0 %v640
          %704 = vmatpush.msra.mxu0 %v636
          %705 = vmatpush.msra.mxu0 %v632
          %706 = vmatpush.msra.mxu0 %v628
          %707 = vmatpush.msra.mxu0 %v624
          %708 = vmatpush.msra.mxu0 %v620
          %709 = vmatpush.msra.mxu0 %v616
          %710 = vmatpush.msra.mxu0 %v612
          %711 = vmatpush.msra.mxu0 %v608
          %712 = vmatmul.f32.gmra.mxu0 %v671
          %v713 = vpop.f32.mrf.mxu0
          %v714 = vadd.f32 0.0, %v713
          %715 = vdwg.mxu0
          %716 = vmatpush.msra.mxu0 %v669
          %717 = vmatpush.msra.mxu0 %v665
          %718 = vmatpush.msra.mxu0 %v661
          %719 = vmatpush.msra.mxu0 %v657
          %720 = vmatpush.msra.mxu0 %v653
          %721 = vmatpush.msra.mxu0 %v649
          %722 = vmatpush.msra.mxu0 %v645
          %723 = vmatpush.msra.mxu0 %v641
          %724 = vmatpush.msra.mxu0 %v637
          %725 = vmatpush.msra.mxu0 %v633
          %726 = vmatpush.msra.mxu0 %v629
          %727 = vmatpush.msra.mxu0 %v625
          %728 = vmatpush.msra.mxu0 %v621
          %729 = vmatpush.msra.mxu0 %v617
          %730 = vmatpush.msra.mxu0 %v613
          %731 = vmatpush.msra.mxu0 %v609
          %732 = vmatmul.f32.gmra.mxu0 %v671
          %v733 = vpop.f32.mrf.mxu0
          %v734 = vadd.f32 0.0, %v733
          %735 = vdwg.mxu0
          %736 = vmatpush.msra.mxu0 %v670
          %737 = vmatpush.msra.mxu0 %v666
          %738 = vmatpush.msra.mxu0 %v662
          %739 = vmatpush.msra.mxu0 %v658
          %740 = vmatpush.msra.mxu0 %v654
          %741 = vmatpush.msra.mxu0 %v650
          %742 = vmatpush.msra.mxu0 %v646
          %743 = vmatpush.msra.mxu0 %v642
          %744 = vmatpush.msra.mxu0 %v638
          %745 = vmatpush.msra.mxu0 %v634
          %746 = vmatpush.msra.mxu0 %v630
          %747 = vmatpush.msra.mxu0 %v626
          %748 = vmatpush.msra.mxu0 %v622
          %749 = vmatpush.msra.mxu0 %v618
          %750 = vmatpush.msra.mxu0 %v614
          %751 = vmatpush.msra.mxu0 %v610
          %752 = vmatmul.f32.gmra.mxu0 %v671
          %v753 = vpop.f32.mrf.mxu0
          %v754 = vadd.f32 0.0, %v753
          %755 = vdwg.mxu0
          %v760 = vrot.slane %v714, 7
          %v761 = vrot.slane %v734, 6
          %v762 = vrot.slane %v754, 5
          %vm763 = vcmask 1040384
          %v764 = vsel %vm763, %v694, %v760
          %vm765 = vcmask 1042434
          %v766 = vsel %vm765, %v761, %v762
          %vm767 = vcmask 1041408
          %v768 = vsel %vm767, %v764, %v766
          %vm769 = vcmask 1041409
          %v770 = vsel %vm769, %v694, %v760
          %vm771 = vcmask 1043459
          %v772 = vsel %vm771, %v761, %v762
          %vm773 = vcmask 1042433
          %v774 = vsel %vm773, %v770, %v772
          %v775 = vrot.slane %v774, 1
          %v778 = vadd.f32 %v673, %v768
          %v779 = vadd.f32 %v675, %v775
          %v780 = vxor.u32 %v778, 2147483648
          %v781 = vxor.u32 %v779, 2147483648
          %v782 = vmul.f32 %v780, 1.442695
          %v783 = vpow.pop %v782
          %v784 = vmul.f32 %v781, 1.442695
          %v785 = vpow.pop %v784
          %v786 = vadd.f32 %v783, 1.0
          %v787 = vadd.f32 %v785, 1.0
          %v788 = vrcp.pop %v786
          %v789 = vmul.f32 %v786, %v788
          %v790 = vsub.f32 1.0, %v789
          %v791 = vmul.f32 %v788, %v790
          %v792 = vadd.f32 %v788, %v791
          %vm793 = vweird.f32 %v786
          %vm794 = vweird.f32 %v788
          %vm795 = vmor %vm793, %vm794
          %v796 = vsel %vm795, %v788, %v792
          %v797 = vand.u32 2147483647, %v786
          %vm798 = vcmp.eq.f32.partialorder %v797, 8.507059e+37
          %v799 = vand.u32 %v786, 2147483648
          %v800 = vor.u32 1.1754944e-38, %v799
          %v801 = vsel %vm798, %v800, %v796
          %v802 = vmul.f32 1.0, %v801
          %v803 = vrcp.pop %v787
          %v804 = vmul.f32 %v787, %v803
          %v805 = vsub.f32 1.0, %v804
          %v806 = vmul.f32 %v803, %v805
          %v807 = vadd.f32 %v803, %v806
          %vm808 = vweird.f32 %v787
          %vm809 = vweird.f32 %v803
          %vm810 = vmor %vm808, %vm809
          %v811 = vsel %vm810, %v803, %v807
          %v812 = vand.u32 2147483647, %v787
          %vm813 = vcmp.eq.f32.partialorder %v812, 8.507059e+37
          %v814 = vand.u32 %v787, 2147483648
          %v815 = vor.u32 1.1754944e-38, %v814
          %v816 = vsel %vm813, %v815, %v811
          %v817 = vmul.f32 1.0, %v816
          %v820 = vrot.slane %v778, 3
          %v821 = vrot.slane %v779, 3
          %v824 = vtanh.pop %v820
          %v825 = vtanh.pop %v821
          %v828 = vrot.slane %v802, 1
          %v829 = vrot.slane %v817, 1
          %v833 = vrot.slane %v672, 1
          %v835 = vmul.f32 %v828, %v672
          %v836 = vmul.f32 %v829, %v833
          %v837 = vmul.f32 %v802, %v824
          %v838 = vmul.f32 %v817, %v825
          %v839 = vadd.f32 %v835, %v837
          %v840 = vadd.f32 %v836, %v838
          %v841 = vtanh.pop %v839
          %v842 = vtanh.pop %v840
          %v843 = vrot.slane %v802, 2
          %v844 = vrot.slane %v817, 2
          %v847 = vmul.f32 %v843, %v841
          %v848 = vmul.f32 %v844, %v842
          %s849 = scalar_lea.vmem [#allocation4], 1
          %v850 = vld [vmem:[%s849] ss:$8 sm:$0xf]
          %s851 = scalar_lea.vmem [#allocation4], 33
          %v852 = vld [vmem:[%s851] ss:$8 sm:$0xf]
          %855 = vst [vmem:[#allocation1] ss:$9 sm:$0xff] %v847
          %s856 = scalar_lea.vmem [#allocation1], 1
          %857 = vst [vmem:[%s856] ss:$9 sm:$0xff] %v848
          %v858 = vld [vmem:[#allocation1] sm:$0xff]
          %860 = vmatpush.msra.mxu0 %v667
          %861 = vmatpush.msra.mxu0 %v663
          %862 = vmatpush.msra.mxu0 %v659
          %863 = vmatpush.msra.mxu0 %v655
          %864 = vmatpush.msra.mxu0 %v651
          %865 = vmatpush.msra.mxu0 %v647
          %866 = vmatpush.msra.mxu0 %v643
          %867 = vmatpush.msra.mxu0 %v639
          %868 = vmatpush.msra.mxu0 %v635
          %869 = vmatpush.msra.mxu0 %v631
          %870 = vmatpush.msra.mxu0 %v627
          %871 = vmatpush.msra.mxu0 %v623
          %872 = vmatpush.msra.mxu0 %v619
          %873 = vmatpush.msra.mxu0 %v615
          %874 = vmatpush.msra.mxu0 %v611
          %875 = vmatpush.msra.mxu0 %v607
          %876 = vmatmul.f32.gmra.mxu0 %v858
          %v877 = vpop.f32.mrf.mxu0
          %v878 = vadd.f32 0.0, %v877
          %879 = vdwg.mxu0
          %880 = vmatpush.msra.mxu0 %v668
          %881 = vmatpush.msra.mxu0 %v664
          %882 = vmatpush.msra.mxu0 %v660
          %883 = vmatpush.msra.mxu0 %v656
          %884 = vmatpush.msra.mxu0 %v652
          %885 = vmatpush.msra.mxu0 %v648
          %886 = vmatpush.msra.mxu0 %v644
          %887 = vmatpush.msra.mxu0 %v640
          %888 = vmatpush.msra.mxu0 %v636
          %889 = vmatpush.msra.mxu0 %v632
          %890 = vmatpush.msra.mxu0 %v628
          %891 = vmatpush.msra.mxu0 %v624
          %892 = vmatpush.msra.mxu0 %v620
          %893 = vmatpush.msra.mxu0 %v616
          %894 = vmatpush.msra.mxu0 %v612
          %895 = vmatpush.msra.mxu0 %v608
          %896 = vmatmul.f32.gmra.mxu0 %v858
          %v897 = vpop.f32.mrf.mxu0
          %v898 = vadd.f32 0.0, %v897
          %899 = vdwg.mxu0
          %900 = vmatpush.msra.mxu0 %v669
          %901 = vmatpush.msra.mxu0 %v665
          %902 = vmatpush.msra.mxu0 %v661
          %903 = vmatpush.msra.mxu0 %v657
          %904 = vmatpush.msra.mxu0 %v653
          %905 = vmatpush.msra.mxu0 %v649
          %906 = vmatpush.msra.mxu0 %v645
          %907 = vmatpush.msra.mxu0 %v641
          %908 = vmatpush.msra.mxu0 %v637
          %909 = vmatpush.msra.mxu0 %v633
          %910 = vmatpush.msra.mxu0 %v629
          %911 = vmatpush.msra.mxu0 %v625
          %912 = vmatpush.msra.mxu0 %v621
          %913 = vmatpush.msra.mxu0 %v617
          %914 = vmatpush.msra.mxu0 %v613
          %915 = vmatpush.msra.mxu0 %v609
          %916 = vmatmul.f32.gmra.mxu0 %v858
          %v917 = vpop.f32.mrf.mxu0
          %v918 = vadd.f32 0.0, %v917
          %919 = vdwg.mxu0
          %920 = vmatpush.msra.mxu0 %v670
          %921 = vmatpush.msra.mxu0 %v666
          %922 = vmatpush.msra.mxu0 %v662
          %923 = vmatpush.msra.mxu0 %v658
          %924 = vmatpush.msra.mxu0 %v654
          %925 = vmatpush.msra.mxu0 %v650
          %926 = vmatpush.msra.mxu0 %v646
          %927 = vmatpush.msra.mxu0 %v642
          %928 = vmatpush.msra.mxu0 %v638
          %929 = vmatpush.msra.mxu0 %v634
          %930 = vmatpush.msra.mxu0 %v630
          %931 = vmatpush.msra.mxu0 %v626
          %932 = vmatpush.msra.mxu0 %v622
          %933 = vmatpush.msra.mxu0 %v618
          %934 = vmatpush.msra.mxu0 %v614
          %935 = vmatpush.msra.mxu0 %v610
          %936 = vmatmul.f32.gmra.mxu0 %v858
          %v937 = vpop.f32.mrf.mxu0
          %v938 = vadd.f32 0.0, %v937
          %939 = vdwg.mxu0
          %v944 = vrot.slane %v898, 7
          %v945 = vrot.slane %v918, 6
          %v946 = vrot.slane %v938, 5
          %v947 = vsel %vm763, %v878, %v944
          %v948 = vsel %vm765, %v945, %v946
          %v949 = vsel %vm767, %v947, %v948
          %v950 = vsel %vm769, %v878, %v944
          %v951 = vsel %vm771, %v945, %v946
          %v952 = vsel %vm773, %v950, %v951
          %v953 = vrot.slane %v952, 1
          %v956 = vadd.f32 %v850, %v949
          %v957 = vadd.f32 %v852, %v953
          %v958 = vxor.u32 %v956, 2147483648
          %v959 = vxor.u32 %v957, 2147483648
          %v960 = vmul.f32 %v958, 1.442695
          %v961 = vpow.pop %v960
          %v962 = vmul.f32 %v959, 1.442695
          %v963 = vpow.pop %v962
          %v964 = vadd.f32 %v961, 1.0
          %v965 = vadd.f32 %v963, 1.0
          %v966 = vrcp.pop %v964
          %v967 = vmul.f32 %v964, %v966
          %v968 = vsub.f32 1.0, %v967
          %v969 = vmul.f32 %v966, %v968
          %v970 = vadd.f32 %v966, %v969
          %vm971 = vweird.f32 %v964
          %vm972 = vweird.f32 %v966
          %vm973 = vmor %vm971, %vm972
          %v974 = vsel %vm973, %v966, %v970
          %v975 = vand.u32 2147483647, %v964
          %vm976 = vcmp.eq.f32.partialorder %v975, 8.507059e+37
          %v977 = vand.u32 %v964, 2147483648
          %v978 = vor.u32 1.1754944e-38, %v977
          %v979 = vsel %vm976, %v978, %v974
          %v980 = vmul.f32 1.0, %v979
          %v981 = vrcp.pop %v965
          %v982 = vmul.f32 %v965, %v981
          %v983 = vsub.f32 1.0, %v982
          %v984 = vmul.f32 %v981, %v983
          %v985 = vadd.f32 %v981, %v984
          %vm986 = vweird.f32 %v965
          %vm987 = vweird.f32 %v981
          %vm988 = vmor %vm986, %vm987
          %v989 = vsel %vm988, %v981, %v985
          %v990 = vand.u32 2147483647, %v965
          %vm991 = vcmp.eq.f32.partialorder %v990, 8.507059e+37
          %v992 = vand.u32 %v965, 2147483648
          %v993 = vor.u32 1.1754944e-38, %v992
          %v994 = vsel %vm991, %v993, %v989
          %v995 = vmul.f32 1.0, %v994
          %v998 = vrot.slane %v956, 3
          %v999 = vrot.slane %v957, 3
          %v1002 = vtanh.pop %v998
          %v1003 = vtanh.pop %v999
          %v1006 = vrot.slane %v980, 1
          %v1007 = vrot.slane %v995, 1
          %v1010 = vmul.f32 %v1006, %v839
          %v1011 = vmul.f32 %v1007, %v840
          %v1012 = vmul.f32 %v980, %v1002
          %v1013 = vmul.f32 %v995, %v1003
          %v1014 = vadd.f32 %v1010, %v1012
          %v1015 = vadd.f32 %v1011, %v1013
          %v1016 = vtanh.pop %v1014
          %v1017 = vtanh.pop %v1015
          %v1018 = vrot.slane %v980, 2
          %v1019 = vrot.slane %v995, 2
          %v1022 = vmul.f32 %v1018, %v1016
          %v1023 = vmul.f32 %v1019, %v1017
          %s1024 = scalar_lea.vmem [#allocation4], 2
          %v1025 = vld [vmem:[%s1024] ss:$8 sm:$0xf]
          %s1026 = scalar_lea.vmem [#allocation4], 34
          %v1027 = vld [vmem:[%s1026] ss:$8 sm:$0xf]
          %1030 = vst [vmem:[#allocation1] ss:$9 sm:$0xff] %v1022
          %s1031 = scalar_lea.vmem [#allocation1], 1
          %1032 = vst [vmem:[%s1031] ss:$9 sm:$0xff] %v1023
          %v1033 = vld [vmem:[#allocation1] sm:$0xff]
          %1035 = vmatpush.msra.mxu0 %v667
          %1036 = vmatpush.msra.mxu0 %v663
          %1037 = vmatpush.msra.mxu0 %v659
          %1038 = vmatpush.msra.mxu0 %v655
          %1039 = vmatpush.msra.mxu0 %v651
          %1040 = vmatpush.msra.mxu0 %v647
          %1041 = vmatpush.msra.mxu0 %v643
          %1042 = vmatpush.msra.mxu0 %v639
          %1043 = vmatpush.msra.mxu0 %v635
          %1044 = vmatpush.msra.mxu0 %v631
          %1045 = vmatpush.msra.mxu0 %v627
          %1046 = vmatpush.msra.mxu0 %v623
          %1047 = vmatpush.msra.mxu0 %v619
          %1048 = vmatpush.msra.mxu0 %v615
          %1049 = vmatpush.msra.mxu0 %v611
          %1050 = vmatpush.msra.mxu0 %v607
          %1051 = vmatmul.f32.gmra.mxu0 %v1033
          %v1052 = vpop.f32.mrf.mxu0
          %v1053 = vadd.f32 0.0, %v1052
          %1054 = vdwg.mxu0
          %1055 = vmatpush.msra.mxu0 %v668
          %1056 = vmatpush.msra.mxu0 %v664
          %1057 = vmatpush.msra.mxu0 %v660
          %1058 = vmatpush.msra.mxu0 %v656
          %1059 = vmatpush.msra.mxu0 %v652
          %1060 = vmatpush.msra.mxu0 %v648
          %1061 = vmatpush.msra.mxu0 %v644
          %1062 = vmatpush.msra.mxu0 %v640
          %1063 = vmatpush.msra.mxu0 %v636
          %1064 = vmatpush.msra.mxu0 %v632
          %1065 = vmatpush.msra.mxu0 %v628
          %1066 = vmatpush.msra.mxu0 %v624
          %1067 = vmatpush.msra.mxu0 %v620
          %1068 = vmatpush.msra.mxu0 %v616
          %1069 = vmatpush.msra.mxu0 %v612
          %1070 = vmatpush.msra.mxu0 %v608
          %1071 = vmatmul.f32.gmra.mxu0 %v1033
          %v1072 = vpop.f32.mrf.mxu0
          %v1073 = vadd.f32 0.0, %v1072
          %1074 = vdwg.mxu0
          %1075 = vmatpush.msra.mxu0 %v669
          %1076 = vmatpush.msra.mxu0 %v665
          %1077 = vmatpush.msra.mxu0 %v661
          %1078 = vmatpush.msra.mxu0 %v657
          %1079 = vmatpush.msra.mxu0 %v653
          %1080 = vmatpush.msra.mxu0 %v649
          %1081 = vmatpush.msra.mxu0 %v645
          %1082 = vmatpush.msra.mxu0 %v641
          %1083 = vmatpush.msra.mxu0 %v637
          %1084 = vmatpush.msra.mxu0 %v633
          %1085 = vmatpush.msra.mxu0 %v629
          %1086 = vmatpush.msra.mxu0 %v625
          %1087 = vmatpush.msra.mxu0 %v621
          %1088 = vmatpush.msra.mxu0 %v617
          %1089 = vmatpush.msra.mxu0 %v613
          %1090 = vmatpush.msra.mxu0 %v609
          %1091 = vmatmul.f32.gmra.mxu0 %v1033
          %v1092 = vpop.f32.mrf.mxu0
          %v1093 = vadd.f32 0.0, %v1092
          %1094 = vdwg.mxu0
          %1095 = vmatpush.msra.mxu0 %v670
          %1096 = vmatpush.msra.mxu0 %v666
          %1097 = vmatpush.msra.mxu0 %v662
          %1098 = vmatpush.msra.mxu0 %v658
          %1099 = vmatpush.msra.mxu0 %v654
          %1100 = vmatpush.msra.mxu0 %v650
          %1101 = vmatpush.msra.mxu0 %v646
          %1102 = vmatpush.msra.mxu0 %v642
          %1103 = vmatpush.msra.mxu0 %v638
          %1104 = vmatpush.msra.mxu0 %v634
          %1105 = vmatpush.msra.mxu0 %v630
          %1106 = vmatpush.msra.mxu0 %v626
          %1107 = vmatpush.msra.mxu0 %v622
          %1108 = vmatpush.msra.mxu0 %v618
          %1109 = vmatpush.msra.mxu0 %v614
          %1110 = vmatpush.msra.mxu0 %v610
          %1111 = vmatmul.f32.gmra.mxu0 %v1033
          %v1112 = vpop.f32.mrf.mxu0
          %v1113 = vadd.f32 0.0, %v1112
          %1114 = vdwg.mxu0
          %v1119 = vrot.slane %v1073, 7
          %v1120 = vrot.slane %v1093, 6
          %v1121 = vrot.slane %v1113, 5
          %v1122 = vsel %vm763, %v1053, %v1119
          %v1123 = vsel %vm765, %v1120, %v1121
          %v1124 = vsel %vm767, %v1122, %v1123
          %v1125 = vsel %vm769, %v1053, %v1119
          %v1126 = vsel %vm771, %v1120, %v1121
          %v1127 = vsel %vm773, %v1125, %v1126
          %v1128 = vrot.slane %v1127, 1
          %v1131 = vadd.f32 %v1025, %v1124
          %v1132 = vadd.f32 %v1027, %v1128
          %v1133 = vxor.u32 %v1131, 2147483648
          %v1134 = vxor.u32 %v1132, 2147483648
          %v1135 = vmul.f32 %v1133, 1.442695
          %v1136 = vpow.pop %v1135
          %v1137 = vmul.f32 %v1134, 1.442695
          %v1138 = vpow.pop %v1137
          %v1139 = vadd.f32 %v1136, 1.0
          %v1140 = vadd.f32 %v1138, 1.0
          %v1141 = vrcp.pop %v1139
          %v1142 = vmul.f32 %v1139, %v1141
          %v1143 = vsub.f32 1.0, %v1142
          %v1144 = vmul.f32 %v1141, %v1143
          %v1145 = vadd.f32 %v1141, %v1144
          %vm1146 = vweird.f32 %v1139
          %vm1147 = vweird.f32 %v1141
          %vm1148 = vmor %vm1146, %vm1147
          %v1149 = vsel %vm1148, %v1141, %v1145
          %v1150 = vand.u32 2147483647, %v1139
          %vm1151 = vcmp.eq.f32.partialorder %v1150, 8.507059e+37
          %v1152 = vand.u32 %v1139, 2147483648
          %v1153 = vor.u32 1.1754944e-38, %v1152
          %v1154 = vsel %vm1151, %v1153, %v1149
          %v1155 = vmul.f32 1.0, %v1154
          %v1156 = vrcp.pop %v1140
          %v1157 = vmul.f32 %v1140, %v1156
          %v1158 = vsub.f32 1.0, %v1157
          %v1159 = vmul.f32 %v1156, %v1158
          %v1160 = vadd.f32 %v1156, %v1159
          %vm1161 = vweird.f32 %v1140
          %vm1162 = vweird.f32 %v1156
          %vm1163 = vmor %vm1161, %vm1162
          %v1164 = vsel %vm1163, %v1156, %v1160
          %v1165 = vand.u32 2147483647, %v1140
          %vm1166 = vcmp.eq.f32.partialorder %v1165, 8.507059e+37
          %v1167 = vand.u32 %v1140, 2147483648
          %v1168 = vor.u32 1.1754944e-38, %v1167
          %v1169 = vsel %vm1166, %v1168, %v1164
          %v1170 = vmul.f32 1.0, %v1169
          %v1173 = vrot.slane %v1131, 3
          %v1174 = vrot.slane %v1132, 3
          %v1177 = vtanh.pop %v1173
          %v1178 = vtanh.pop %v1174
          %v1181 = vrot.slane %v1155, 1
          %v1182 = vrot.slane %v1170, 1
          %v1185 = vmul.f32 %v1181, %v1014
          %v1186 = vmul.f32 %v1182, %v1015
          %v1187 = vmul.f32 %v1155, %v1177
          %v1188 = vmul.f32 %v1170, %v1178
          %v1189 = vadd.f32 %v1185, %v1187
          %v1190 = vadd.f32 %v1186, %v1188
          %v1191 = vtanh.pop %v1189
          %v1192 = vtanh.pop %v1190
          %v1193 = vrot.slane %v1155, 2
          %v1194 = vrot.slane %v1170, 2
          %v1197 = vmul.f32 %v1193, %v1191
          %v1198 = vmul.f32 %v1194, %v1192
          %s1199 = scalar_lea.vmem [#allocation4], 3
          %v1200 = vld [vmem:[%s1199] ss:$8 sm:$0xf]
          %s1201 = scalar_lea.vmem [#allocation4], 35
          %v1202 = vld [vmem:[%s1201] ss:$8 sm:$0xf]
          %1205 = vst [vmem:[#allocation1] ss:$9 sm:$0xff] %v1197
          %s1206 = scalar_lea.vmem [#allocation1], 1
          %1207 = vst [vmem:[%s1206] ss:$9 sm:$0xff] %v1198
          %v1208 = vld [vmem:[#allocation1] sm:$0xff]
          %1210 = vmatpush.msra.mxu0 %v667
          %1211 = vmatpush.msra.mxu0 %v663
          %1212 = vmatpush.msra.mxu0 %v659
          %1213 = vmatpush.msra.mxu0 %v655
          %1214 = vmatpush.msra.mxu0 %v651
          %1215 = vmatpush.msra.mxu0 %v647
          %1216 = vmatpush.msra.mxu0 %v643
          %1217 = vmatpush.msra.mxu0 %v639
          %1218 = vmatpush.msra.mxu0 %v635
          %1219 = vmatpush.msra.mxu0 %v631
          %1220 = vmatpush.msra.mxu0 %v627
          %1221 = vmatpush.msra.mxu0 %v623
          %1222 = vmatpush.msra.mxu0 %v619
          %1223 = vmatpush.msra.mxu0 %v615
          %1224 = vmatpush.msra.mxu0 %v611
          %1225 = vmatpush.msra.mxu0 %v607
          %1226 = vmatmul.f32.gmra.mxu0 %v1208
          %v1227 = vpop.f32.mrf.mxu0
          %v1228 = vadd.f32 0.0, %v1227
          %1229 = vdwg.mxu0
          %1230 = vmatpush.msra.mxu0 %v668
          %1231 = vmatpush.msra.mxu0 %v664
          %1232 = vmatpush.msra.mxu0 %v660
          %1233 = vmatpush.msra.mxu0 %v656
          %1234 = vmatpush.msra.mxu0 %v652
          %1235 = vmatpush.msra.mxu0 %v648
          %1236 = vmatpush.msra.mxu0 %v644
          %1237 = vmatpush.msra.mxu0 %v640
          %1238 = vmatpush.msra.mxu0 %v636
          %1239 = vmatpush.msra.mxu0 %v632
          %1240 = vmatpush.msra.mxu0 %v628
          %1241 = vmatpush.msra.mxu0 %v624
          %1242 = vmatpush.msra.mxu0 %v620
          %1243 = vmatpush.msra.mxu0 %v616
          %1244 = vmatpush.msra.mxu0 %v612
          %1245 = vmatpush.msra.mxu0 %v608
          %1246 = vmatmul.f32.gmra.mxu0 %v1208
          %v1247 = vpop.f32.mrf.mxu0
          %v1248 = vadd.f32 0.0, %v1247
          %1249 = vdwg.mxu0
          %1250 = vmatpush.msra.mxu0 %v669
          %1251 = vmatpush.msra.mxu0 %v665
          %1252 = vmatpush.msra.mxu0 %v661
          %1253 = vmatpush.msra.mxu0 %v657
          %1254 = vmatpush.msra.mxu0 %v653
          %1255 = vmatpush.msra.mxu0 %v649
          %1256 = vmatpush.msra.mxu0 %v645
          %1257 = vmatpush.msra.mxu0 %v641
          %1258 = vmatpush.msra.mxu0 %v637
          %1259 = vmatpush.msra.mxu0 %v633
          %1260 = vmatpush.msra.mxu0 %v629
          %1261 = vmatpush.msra.mxu0 %v625
          %1262 = vmatpush.msra.mxu0 %v621
          %1263 = vmatpush.msra.mxu0 %v617
          %1264 = vmatpush.msra.mxu0 %v613
          %1265 = vmatpush.msra.mxu0 %v609
          %1266 = vmatmul.f32.gmra.mxu0 %v1208
          %v1267 = vpop.f32.mrf.mxu0
          %v1268 = vadd.f32 0.0, %v1267
          %1269 = vdwg.mxu0
          %1270 = vmatpush.msra.mxu0 %v670
          %1271 = vmatpush.msra.mxu0 %v666
          %1272 = vmatpush.msra.mxu0 %v662
          %1273 = vmatpush.msra.mxu0 %v658
          %1274 = vmatpush.msra.mxu0 %v654
          %1275 = vmatpush.msra.mxu0 %v650
          %1276 = vmatpush.msra.mxu0 %v646
          %1277 = vmatpush.msra.mxu0 %v642
          %1278 = vmatpush.msra.mxu0 %v638
          %1279 = vmatpush.msra.mxu0 %v634
          %1280 = vmatpush.msra.mxu0 %v630
          %1281 = vmatpush.msra.mxu0 %v626
          %1282 = vmatpush.msra.mxu0 %v622
          %1283 = vmatpush.msra.mxu0 %v618
          %1284 = vmatpush.msra.mxu0 %v614
          %1285 = vmatpush.msra.mxu0 %v610
          %1286 = vmatmul.f32.gmra.mxu0 %v1208
          %v1287 = vpop.f32.mrf.mxu0
          %v1288 = vadd.f32 0.0, %v1287
          %1289 = vdwg.mxu0
          %v1294 = vrot.slane %v1248, 7
          %v1295 = vrot.slane %v1268, 6
          %v1296 = vrot.slane %v1288, 5
          %v1297 = vsel %vm763, %v1228, %v1294
          %v1298 = vsel %vm765, %v1295, %v1296
          %v1299 = vsel %vm767, %v1297, %v1298
          %v1300 = vsel %vm769, %v1228, %v1294
          %v1301 = vsel %vm771, %v1295, %v1296
          %v1302 = vsel %vm773, %v1300, %v1301
          %v1303 = vrot.slane %v1302, 1
          %v1306 = vadd.f32 %v1200, %v1299
          %v1307 = vadd.f32 %v1202, %v1303
          %v1308 = vxor.u32 %v1306, 2147483648
          %v1309 = vxor.u32 %v1307, 2147483648
          %v1310 = vmul.f32 %v1308, 1.442695
          %v1311 = vpow.pop %v1310
          %v1312 = vmul.f32 %v1309, 1.442695
          %v1313 = vpow.pop %v1312
          %v1314 = vadd.f32 %v1311, 1.0
          %v1315 = vadd.f32 %v1313, 1.0
          %v1316 = vrcp.pop %v1314
          %v1317 = vmul.f32 %v1314, %v1316
          %v1318 = vsub.f32 1.0, %v1317
          %v1319 = vmul.f32 %v1316, %v1318
          %v1320 = vadd.f32 %v1316, %v1319
          %vm1321 = vweird.f32 %v1314
          %vm1322 = vweird.f32 %v1316
          %vm1323 = vmor %vm1321, %vm1322
          %v1324 = vsel %vm1323, %v1316, %v1320
          %v1325 = vand.u32 2147483647, %v1314
          %vm1326 = vcmp.eq.f32.partialorder %v1325, 8.507059e+37
          %v1327 = vand.u32 %v1314, 2147483648
          %v1328 = vor.u32 1.1754944e-38, %v1327
          %v1329 = vsel %vm1326, %v1328, %v1324
          %v1330 = vmul.f32 1.0, %v1329
          %v1331 = vrcp.pop %v1315
          %v1332 = vmul.f32 %v1315, %v1331
          %v1333 = vsub.f32 1.0, %v1332
          %v1334 = vmul.f32 %v1331, %v1333
          %v1335 = vadd.f32 %v1331, %v1334
          %vm1336 = vweird.f32 %v1315
          %vm1337 = vweird.f32 %v1331
          %vm1338 = vmor %vm1336, %vm1337
          %v1339 = vsel %vm1338, %v1331, %v1335
          %v1340 = vand.u32 2147483647, %v1315
          %vm1341 = vcmp.eq.f32.partialorder %v1340, 8.507059e+37
          %v1342 = vand.u32 %v1315, 2147483648
          %v1343 = vor.u32 1.1754944e-38, %v1342
          %v1344 = vsel %vm1341, %v1343, %v1339
          %v1345 = vmul.f32 1.0, %v1344
          %v1348 = vrot.slane %v1306, 3
          %v1349 = vrot.slane %v1307, 3
          %v1352 = vtanh.pop %v1348
          %v1353 = vtanh.pop %v1349
          %v1356 = vrot.slane %v1330, 1
          %v1357 = vrot.slane %v1345, 1
          %v1360 = vmul.f32 %v1356, %v1189
          %v1361 = vmul.f32 %v1357, %v1190
          %v1362 = vmul.f32 %v1330, %v1352
          %v1363 = vmul.f32 %v1345, %v1353
          %v1364 = vadd.f32 %v1360, %v1362
          %v1365 = vadd.f32 %v1361, %v1363
          %v1366 = vtanh.pop %v1364
          %v1367 = vtanh.pop %v1365
          %v1368 = vrot.slane %v1330, 2
          %v1369 = vrot.slane %v1345, 2
          %v1372 = vmul.f32 %v1368, %v1366
          %v1373 = vmul.f32 %v1369, %v1367
          %s1374 = scalar_lea.vmem [#allocation4], 4
          %v1375 = vld [vmem:[%s1374] ss:$8 sm:$0xf]
          %s1376 = scalar_lea.vmem [#allocation4], 36
          %v1377 = vld [vmem:[%s1376] ss:$8 sm:$0xf]
          %1380 = vst [vmem:[#allocation1] ss:$9 sm:$0xff] %v1372
          %s1381 = scalar_lea.vmem [#allocation1], 1
          %1382 = vst [vmem:[%s1381] ss:$9 sm:$0xff] %v1373
          %v1383 = vld [vmem:[#allocation1] sm:$0xff]
          %1385 = vmatpush.msra.mxu0 %v667
          %1386 = vmatpush.msra.mxu0 %v663
          %1387 = vmatpush.msra.mxu0 %v659
          %1388 = vmatpush.msra.mxu0 %v655
          %1389 = vmatpush.msra.mxu0 %v651
          %1390 = vmatpush.msra.mxu0 %v647
          %1391 = vmatpush.msra.mxu0 %v643
          %1392 = vmatpush.msra.mxu0 %v639
          %1393 = vmatpush.msra.mxu0 %v635
          %1394 = vmatpush.msra.mxu0 %v631
          %1395 = vmatpush.msra.mxu0 %v627
          %1396 = vmatpush.msra.mxu0 %v623
          %1397 = vmatpush.msra.mxu0 %v619
          %1398 = vmatpush.msra.mxu0 %v615
          %1399 = vmatpush.msra.mxu0 %v611
          %1400 = vmatpush.msra.mxu0 %v607
          %1401 = vmatmul.f32.gmra.mxu0 %v1383
          %v1402 = vpop.f32.mrf.mxu0
          %v1403 = vadd.f32 0.0, %v1402
          %1404 = vdwg.mxu0
          %1405 = vmatpush.msra.mxu0 %v668
          %1406 = vmatpush.msra.mxu0 %v664
          %1407 = vmatpush.msra.mxu0 %v660
          %1408 = vmatpush.msra.mxu0 %v656
          %1409 = vmatpush.msra.mxu0 %v652
          %1410 = vmatpush.msra.mxu0 %v648
          %1411 = vmatpush.msra.mxu0 %v644
          %1412 = vmatpush.msra.mxu0 %v640
          %1413 = vmatpush.msra.mxu0 %v636
          %1414 = vmatpush.msra.mxu0 %v632
          %1415 = vmatpush.msra.mxu0 %v628
          %1416 = vmatpush.msra.mxu0 %v624
          %1417 = vmatpush.msra.mxu0 %v620
          %1418 = vmatpush.msra.mxu0 %v616
          %1419 = vmatpush.msra.mxu0 %v612
          %1420 = vmatpush.msra.mxu0 %v608
          %1421 = vmatmul.f32.gmra.mxu0 %v1383
          %v1422 = vpop.f32.mrf.mxu0
          %v1423 = vadd.f32 0.0, %v1422
          %1424 = vdwg.mxu0
          %1425 = vmatpush.msra.mxu0 %v669
          %1426 = vmatpush.msra.mxu0 %v665
          %1427 = vmatpush.msra.mxu0 %v661
          %1428 = vmatpush.msra.mxu0 %v657
          %1429 = vmatpush.msra.mxu0 %v653
          %1430 = vmatpush.msra.mxu0 %v649
          %1431 = vmatpush.msra.mxu0 %v645
          %1432 = vmatpush.msra.mxu0 %v641
          %1433 = vmatpush.msra.mxu0 %v637
          %1434 = vmatpush.msra.mxu0 %v633
          %1435 = vmatpush.msra.mxu0 %v629
          %1436 = vmatpush.msra.mxu0 %v625
          %1437 = vmatpush.msra.mxu0 %v621
          %1438 = vmatpush.msra.mxu0 %v617
          %1439 = vmatpush.msra.mxu0 %v613
          %1440 = vmatpush.msra.mxu0 %v609
          %1441 = vmatmul.f32.gmra.mxu0 %v1383
          %v1442 = vpop.f32.mrf.mxu0
          %v1443 = vadd.f32 0.0, %v1442
          %1444 = vdwg.mxu0
          %1445 = vmatpush.msra.mxu0 %v670
          %1446 = vmatpush.msra.mxu0 %v666
          %1447 = vmatpush.msra.mxu0 %v662
          %1448 = vmatpush.msra.mxu0 %v658
          %1449 = vmatpush.msra.mxu0 %v654
          %1450 = vmatpush.msra.mxu0 %v650
          %1451 = vmatpush.msra.mxu0 %v646
          %1452 = vmatpush.msra.mxu0 %v642
          %1453 = vmatpush.msra.mxu0 %v638
          %1454 = vmatpush.msra.mxu0 %v634
          %1455 = vmatpush.msra.mxu0 %v630
          %1456 = vmatpush.msra.mxu0 %v626
          %1457 = vmatpush.msra.mxu0 %v622
          %1458 = vmatpush.msra.mxu0 %v618
          %1459 = vmatpush.msra.mxu0 %v614
          %1460 = vmatpush.msra.mxu0 %v610
          %1461 = vmatmul.f32.gmra.mxu0 %v1383
          %v1462 = vpop.f32.mrf.mxu0
          %v1463 = vadd.f32 0.0, %v1462
          %1464 = vdwg.mxu0
          %v1469 = vrot.slane %v1423, 7
          %v1470 = vrot.slane %v1443, 6
          %v1471 = vrot.slane %v1463, 5
          %v1472 = vsel %vm763, %v1403, %v1469
          %v1473 = vsel %vm765, %v1470, %v1471
          %v1474 = vsel %vm767, %v1472, %v1473
          %v1475 = vsel %vm769, %v1403, %v1469
          %v1476 = vsel %vm771, %v1470, %v1471
          %v1477 = vsel %vm773, %v1475, %v1476
          %v1478 = vrot.slane %v1477, 1
          %v1481 = vadd.f32 %v1375, %v1474
          %v1482 = vadd.f32 %v1377, %v1478
          %v1483 = vxor.u32 %v1481, 2147483648
          %v1484 = vxor.u32 %v1482, 2147483648
          %v1485 = vmul.f32 %v1483, 1.442695
          %v1486 = vpow.pop %v1485
          %v1487 = vmul.f32 %v1484, 1.442695
          %v1488 = vpow.pop %v1487
          %v1489 = vadd.f32 %v1486, 1.0
          %v1490 = vadd.f32 %v1488, 1.0
          %v1491 = vrcp.pop %v1489
          %v1492 = vmul.f32 %v1489, %v1491
          %v1493 = vsub.f32 1.0, %v1492
          %v1494 = vmul.f32 %v1491, %v1493
          %v1495 = vadd.f32 %v1491, %v1494
          %vm1496 = vweird.f32 %v1489
          %vm1497 = vweird.f32 %v1491
          %vm1498 = vmor %vm1496, %vm1497
          %v1499 = vsel %vm1498, %v1491, %v1495
          %v1500 = vand.u32 2147483647, %v1489
          %vm1501 = vcmp.eq.f32.partialorder %v1500, 8.507059e+37
          %v1502 = vand.u32 %v1489, 2147483648
          %v1503 = vor.u32 1.1754944e-38, %v1502
          %v1504 = vsel %vm1501, %v1503, %v1499
          %v1505 = vmul.f32 1.0, %v1504
          %v1506 = vrcp.pop %v1490
          %v1507 = vmul.f32 %v1490, %v1506
          %v1508 = vsub.f32 1.0, %v1507
          %v1509 = vmul.f32 %v1506, %v1508
          %v1510 = vadd.f32 %v1506, %v1509
          %vm1511 = vweird.f32 %v1490
          %vm1512 = vweird.f32 %v1506
          %vm1513 = vmor %vm1511, %vm1512
          %v1514 = vsel %vm1513, %v1506, %v1510
          %v1515 = vand.u32 2147483647, %v1490
          %vm1516 = vcmp.eq.f32.partialorder %v1515, 8.507059e+37
          %v1517 = vand.u32 %v1490, 2147483648
          %v1518 = vor.u32 1.1754944e-38, %v1517
          %v1519 = vsel %vm1516, %v1518, %v1514
          %v1520 = vmul.f32 1.0, %v1519
          %v1523 = vrot.slane %v1481, 3
          %v1524 = vrot.slane %v1482, 3
          %v1527 = vtanh.pop %v1523
          %v1528 = vtanh.pop %v1524
          %v1531 = vrot.slane %v1505, 1
          %v1532 = vrot.slane %v1520, 1
          %v1535 = vmul.f32 %v1531, %v1364
          %v1536 = vmul.f32 %v1532, %v1365
          %v1537 = vmul.f32 %v1505, %v1527
          %v1538 = vmul.f32 %v1520, %v1528
          %v1539 = vadd.f32 %v1535, %v1537
          %v1540 = vadd.f32 %v1536, %v1538
          %v1541 = vtanh.pop %v1539
          %v1542 = vtanh.pop %v1540
          %v1543 = vrot.slane %v1505, 2
          %v1544 = vrot.slane %v1520, 2
          %v1547 = vmul.f32 %v1543, %v1541
          %v1548 = vmul.f32 %v1544, %v1542
          %s1549 = scalar_lea.vmem [#allocation4], 5
          %v1550 = vld [vmem:[%s1549] ss:$8 sm:$0xf]
          %s1551 = scalar_lea.vmem [#allocation4], 37
          %v1552 = vld [vmem:[%s1551] ss:$8 sm:$0xf]
          %1555 = vst [vmem:[#allocation1] ss:$9 sm:$0xff] %v1547
          %s1556 = scalar_lea.vmem [#allocation1], 1
          %1557 = vst [vmem:[%s1556] ss:$9 sm:$0xff] %v1548
          %v1558 = vld [vmem:[#allocation1] sm:$0xff]
          %1560 = vmatpush.msra.mxu0 %v667
          %1561 = vmatpush.msra.mxu0 %v663
          %1562 = vmatpush.msra.mxu0 %v659
          %1563 = vmatpush.msra.mxu0 %v655
          %1564 = vmatpush.msra.mxu0 %v651
          %1565 = vmatpush.msra.mxu0 %v647
          %1566 = vmatpush.msra.mxu0 %v643
          %1567 = vmatpush.msra.mxu0 %v639
          %1568 = vmatpush.msra.mxu0 %v635
          %1569 = vmatpush.msra.mxu0 %v631
          %1570 = vmatpush.msra.mxu0 %v627
          %1571 = vmatpush.msra.mxu0 %v623
          %1572 = vmatpush.msra.mxu0 %v619
          %1573 = vmatpush.msra.mxu0 %v615
          %1574 = vmatpush.msra.mxu0 %v611
          %1575 = vmatpush.msra.mxu0 %v607
          %1576 = vmatmul.f32.gmra.mxu0 %v1558
          %v1577 = vpop.f32.mrf.mxu0
          %v1578 = vadd.f32 0.0, %v1577
          %1579 = vdwg.mxu0
          %1580 = vmatpush.msra.mxu0 %v668
          %1581 = vmatpush.msra.mxu0 %v664
          %1582 = vmatpush.msra.mxu0 %v660
          %1583 = vmatpush.msra.mxu0 %v656
          %1584 = vmatpush.msra.mxu0 %v652
          %1585 = vmatpush.msra.mxu0 %v648
          %1586 = vmatpush.msra.mxu0 %v644
          %1587 = vmatpush.msra.mxu0 %v640
          %1588 = vmatpush.msra.mxu0 %v636
          %1589 = vmatpush.msra.mxu0 %v632
          %1590 = vmatpush.msra.mxu0 %v628
          %1591 = vmatpush.msra.mxu0 %v624
          %1592 = vmatpush.msra.mxu0 %v620
          %1593 = vmatpush.msra.mxu0 %v616
          %1594 = vmatpush.msra.mxu0 %v612
          %1595 = vmatpush.msra.mxu0 %v608
          %1596 = vmatmul.f32.gmra.mxu0 %v1558
          %v1597 = vpop.f32.mrf.mxu0
          %v1598 = vadd.f32 0.0, %v1597
          %1599 = vdwg.mxu0
          %1600 = vmatpush.msra.mxu0 %v669
          %1601 = vmatpush.msra.mxu0 %v665
          %1602 = vmatpush.msra.mxu0 %v661
          %1603 = vmatpush.msra.mxu0 %v657
          %1604 = vmatpush.msra.mxu0 %v653
          %1605 = vmatpush.msra.mxu0 %v649
          %1606 = vmatpush.msra.mxu0 %v645
          %1607 = vmatpush.msra.mxu0 %v641
          %1608 = vmatpush.msra.mxu0 %v637
          %1609 = vmatpush.msra.mxu0 %v633
          %1610 = vmatpush.msra.mxu0 %v629
          %1611 = vmatpush.msra.mxu0 %v625
          %1612 = vmatpush.msra.mxu0 %v621
          %1613 = vmatpush.msra.mxu0 %v617
          %1614 = vmatpush.msra.mxu0 %v613
          %1615 = vmatpush.msra.mxu0 %v609
          %1616 = vmatmul.f32.gmra.mxu0 %v1558
          %v1617 = vpop.f32.mrf.mxu0
          %v1618 = vadd.f32 0.0, %v1617
          %1619 = vdwg.mxu0
          %1620 = vmatpush.msra.mxu0 %v670
          %1621 = vmatpush.msra.mxu0 %v666
          %1622 = vmatpush.msra.mxu0 %v662
          %1623 = vmatpush.msra.mxu0 %v658
          %1624 = vmatpush.msra.mxu0 %v654
          %1625 = vmatpush.msra.mxu0 %v650
          %1626 = vmatpush.msra.mxu0 %v646
          %1627 = vmatpush.msra.mxu0 %v642
          %1628 = vmatpush.msra.mxu0 %v638
          %1629 = vmatpush.msra.mxu0 %v634
          %1630 = vmatpush.msra.mxu0 %v630
          %1631 = vmatpush.msra.mxu0 %v626
          %1632 = vmatpush.msra.mxu0 %v622
          %1633 = vmatpush.msra.mxu0 %v618
          %1634 = vmatpush.msra.mxu0 %v614
          %1635 = vmatpush.msra.mxu0 %v610
          %1636 = vmatmul.f32.gmra.mxu0 %v1558
          %v1637 = vpop.f32.mrf.mxu0
          %v1638 = vadd.f32 0.0, %v1637
          %1639 = vdwg.mxu0
          %v1644 = vrot.slane %v1598, 7
          %v1645 = vrot.slane %v1618, 6
          %v1646 = vrot.slane %v1638, 5
          %v1647 = vsel %vm763, %v1578, %v1644
          %v1648 = vsel %vm765, %v1645, %v1646
          %v1649 = vsel %vm767, %v1647, %v1648
          %v1650 = vsel %vm769, %v1578, %v1644
          %v1651 = vsel %vm771, %v1645, %v1646
          %v1652 = vsel %vm773, %v1650, %v1651
          %v1653 = vrot.slane %v1652, 1
          %v1656 = vadd.f32 %v1550, %v1649
          %v1657 = vadd.f32 %v1552, %v1653
          %v1658 = vxor.u32 %v1656, 2147483648
          %v1659 = vxor.u32 %v1657, 2147483648
          %v1660 = vmul.f32 %v1658, 1.442695
          %v1661 = vpow.pop %v1660
          %v1662 = vmul.f32 %v1659, 1.442695
          %v1663 = vpow.pop %v1662
          %v1664 = vadd.f32 %v1661, 1.0
          %v1665 = vadd.f32 %v1663, 1.0
          %v1666 = vrcp.pop %v1664
          %v1667 = vmul.f32 %v1664, %v1666
          %v1668 = vsub.f32 1.0, %v1667
          %v1669 = vmul.f32 %v1666, %v1668
          %v1670 = vadd.f32 %v1666, %v1669
          %vm1671 = vweird.f32 %v1664
          %vm1672 = vweird.f32 %v1666
          %vm1673 = vmor %vm1671, %vm1672
          %v1674 = vsel %vm1673, %v1666, %v1670
          %v1675 = vand.u32 2147483647, %v1664
          %vm1676 = vcmp.eq.f32.partialorder %v1675, 8.507059e+37
          %v1677 = vand.u32 %v1664, 2147483648
          %v1678 = vor.u32 1.1754944e-38, %v1677
          %v1679 = vsel %vm1676, %v1678, %v1674
          %v1680 = vmul.f32 1.0, %v1679
          %v1681 = vrcp.pop %v1665
          %v1682 = vmul.f32 %v1665, %v1681
          %v1683 = vsub.f32 1.0, %v1682
          %v1684 = vmul.f32 %v1681, %v1683
          %v1685 = vadd.f32 %v1681, %v1684
          %vm1686 = vweird.f32 %v1665
          %vm1687 = vweird.f32 %v1681
          %vm1688 = vmor %vm1686, %vm1687
          %v1689 = vsel %vm1688, %v1681, %v1685
          %v1690 = vand.u32 2147483647, %v1665
          %vm1691 = vcmp.eq.f32.partialorder %v1690, 8.507059e+37
          %v1692 = vand.u32 %v1665, 2147483648
          %v1693 = vor.u32 1.1754944e-38, %v1692
          %v1694 = vsel %vm1691, %v1693, %v1689
          %v1695 = vmul.f32 1.0, %v1694
          %v1698 = vrot.slane %v1656, 3
          %v1699 = vrot.slane %v1657, 3
          %v1702 = vtanh.pop %v1698
          %v1703 = vtanh.pop %v1699
          %v1706 = vrot.slane %v1680, 1
          %v1707 = vrot.slane %v1695, 1
          %v1710 = vmul.f32 %v1706, %v1539
          %v1711 = vmul.f32 %v1707, %v1540
          %v1712 = vmul.f32 %v1680, %v1702
          %v1713 = vmul.f32 %v1695, %v1703
          %v1714 = vadd.f32 %v1710, %v1712
          %v1715 = vadd.f32 %v1711, %v1713
          %v1716 = vtanh.pop %v1714
          %v1717 = vtanh.pop %v1715
          %v1718 = vrot.slane %v1680, 2
          %v1719 = vrot.slane %v1695, 2
          %v1722 = vmul.f32 %v1718, %v1716
          %v1723 = vmul.f32 %v1719, %v1717
          %s1724 = scalar_lea.vmem [#allocation4], 6
          %v1725 = vld [vmem:[%s1724] ss:$8 sm:$0xf]
          %s1726 = scalar_lea.vmem [#allocation4], 38
          %v1727 = vld [vmem:[%s1726] ss:$8 sm:$0xf]
          %1730 = vst [vmem:[#allocation1] ss:$9 sm:$0xff] %v1722
          %s1731 = scalar_lea.vmem [#allocation1], 1
          %1732 = vst [vmem:[%s1731] ss:$9 sm:$0xff] %v1723
          %v1733 = vld [vmem:[#allocation1] sm:$0xff]
          %1735 = vmatpush.msra.mxu0 %v667
          %1736 = vmatpush.msra.mxu0 %v663
          %1737 = vmatpush.msra.mxu0 %v659
          %1738 = vmatpush.msra.mxu0 %v655
          %1739 = vmatpush.msra.mxu0 %v651
          %1740 = vmatpush.msra.mxu0 %v647
          %1741 = vmatpush.msra.mxu0 %v643
          %1742 = vmatpush.msra.mxu0 %v639
          %1743 = vmatpush.msra.mxu0 %v635
          %1744 = vmatpush.msra.mxu0 %v631
          %1745 = vmatpush.msra.mxu0 %v627
          %1746 = vmatpush.msra.mxu0 %v623
          %1747 = vmatpush.msra.mxu0 %v619
          %1748 = vmatpush.msra.mxu0 %v615
          %1749 = vmatpush.msra.mxu0 %v611
          %1750 = vmatpush.msra.mxu0 %v607
          %1751 = vmatmul.f32.gmra.mxu0 %v1733
          %v1752 = vpop.f32.mrf.mxu0
          %v1753 = vadd.f32 0.0, %v1752
          %1754 = vdwg.mxu0
          %1755 = vmatpush.msra.mxu0 %v668
          %1756 = vmatpush.msra.mxu0 %v664
          %1757 = vmatpush.msra.mxu0 %v660
          %1758 = vmatpush.msra.mxu0 %v656
          %1759 = vmatpush.msra.mxu0 %v652
          %1760 = vmatpush.msra.mxu0 %v648
          %1761 = vmatpush.msra.mxu0 %v644
          %1762 = vmatpush.msra.mxu0 %v640
          %1763 = vmatpush.msra.mxu0 %v636
          %1764 = vmatpush.msra.mxu0 %v632
          %1765 = vmatpush.msra.mxu0 %v628
          %1766 = vmatpush.msra.mxu0 %v624
          %1767 = vmatpush.msra.mxu0 %v620
          %1768 = vmatpush.msra.mxu0 %v616
          %1769 = vmatpush.msra.mxu0 %v612
          %1770 = vmatpush.msra.mxu0 %v608
          %1771 = vmatmul.f32.gmra.mxu0 %v1733
          %v1772 = vpop.f32.mrf.mxu0
          %v1773 = vadd.f32 0.0, %v1772
          %1774 = vdwg.mxu0
          %1775 = vmatpush.msra.mxu0 %v669
          %1776 = vmatpush.msra.mxu0 %v665
          %1777 = vmatpush.msra.mxu0 %v661
          %1778 = vmatpush.msra.mxu0 %v657
          %1779 = vmatpush.msra.mxu0 %v653
          %1780 = vmatpush.msra.mxu0 %v649
          %1781 = vmatpush.msra.mxu0 %v645
          %1782 = vmatpush.msra.mxu0 %v641
          %1783 = vmatpush.msra.mxu0 %v637
          %1784 = vmatpush.msra.mxu0 %v633
          %1785 = vmatpush.msra.mxu0 %v629
          %1786 = vmatpush.msra.mxu0 %v625
          %1787 = vmatpush.msra.mxu0 %v621
          %1788 = vmatpush.msra.mxu0 %v617
          %1789 = vmatpush.msra.mxu0 %v613
          %1790 = vmatpush.msra.mxu0 %v609
          %1791 = vmatmul.f32.gmra.mxu0 %v1733
          %v1792 = vpop.f32.mrf.mxu0
          %v1793 = vadd.f32 0.0, %v1792
          %1794 = vdwg.mxu0
          %1795 = vmatpush.msra.mxu0 %v670
          %1796 = vmatpush.msra.mxu0 %v666
          %1797 = vmatpush.msra.mxu0 %v662
          %1798 = vmatpush.msra.mxu0 %v658
          %1799 = vmatpush.msra.mxu0 %v654
          %1800 = vmatpush.msra.mxu0 %v650
          %1801 = vmatpush.msra.mxu0 %v646
          %1802 = vmatpush.msra.mxu0 %v642
          %1803 = vmatpush.msra.mxu0 %v638
          %1804 = vmatpush.msra.mxu0 %v634
          %1805 = vmatpush.msra.mxu0 %v630
          %1806 = vmatpush.msra.mxu0 %v626
          %1807 = vmatpush.msra.mxu0 %v622
          %1808 = vmatpush.msra.mxu0 %v618
          %1809 = vmatpush.msra.mxu0 %v614
          %1810 = vmatpush.msra.mxu0 %v610
          %1811 = vmatmul.f32.gmra.mxu0 %v1733
          %v1812 = vpop.f32.mrf.mxu0
          %v1813 = vadd.f32 0.0, %v1812
          %1814 = vdwg.mxu0
          %v1819 = vrot.slane %v1773, 7
          %v1820 = vrot.slane %v1793, 6
          %v1821 = vrot.slane %v1813, 5
          %v1822 = vsel %vm763, %v1753, %v1819
          %v1823 = vsel %vm765, %v1820, %v1821
          %v1824 = vsel %vm767, %v1822, %v1823
          %v1825 = vsel %vm769, %v1753, %v1819
          %v1826 = vsel %vm771, %v1820, %v1821
          %v1827 = vsel %vm773, %v1825, %v1826
          %v1828 = vrot.slane %v1827, 1
          %v1831 = vadd.f32 %v1725, %v1824
          %v1832 = vadd.f32 %v1727, %v1828
          %v1833 = vxor.u32 %v1831, 2147483648
          %v1834 = vxor.u32 %v1832, 2147483648
          %v1835 = vmul.f32 %v1833, 1.442695
          %v1836 = vpow.pop %v1835
          %v1837 = vmul.f32 %v1834, 1.442695
          %v1838 = vpow.pop %v1837
          %v1839 = vadd.f32 %v1836, 1.0
          %v1840 = vadd.f32 %v1838, 1.0
          %v1841 = vrcp.pop %v1839
          %v1842 = vmul.f32 %v1839, %v1841
          %v1843 = vsub.f32 1.0, %v1842
          %v1844 = vmul.f32 %v1841, %v1843
          %v1845 = vadd.f32 %v1841, %v1844
          %vm1846 = vweird.f32 %v1839
          %vm1847 = vweird.f32 %v1841
          %vm1848 = vmor %vm1846, %vm1847
          %v1849 = vsel %vm1848, %v1841, %v1845
          %v1850 = vand.u32 2147483647, %v1839
          %vm1851 = vcmp.eq.f32.partialorder %v1850, 8.507059e+37
          %v1852 = vand.u32 %v1839, 2147483648
          %v1853 = vor.u32 1.1754944e-38, %v1852
          %v1854 = vsel %vm1851, %v1853, %v1849
          %v1855 = vmul.f32 1.0, %v1854
          %v1856 = vrcp.pop %v1840
          %v1857 = vmul.f32 %v1840, %v1856
          %v1858 = vsub.f32 1.0, %v1857
          %v1859 = vmul.f32 %v1856, %v1858
          %v1860 = vadd.f32 %v1856, %v1859
          %vm1861 = vweird.f32 %v1840
          %vm1862 = vweird.f32 %v1856
          %vm1863 = vmor %vm1861, %vm1862
          %v1864 = vsel %vm1863, %v1856, %v1860
          %v1865 = vand.u32 2147483647, %v1840
          %vm1866 = vcmp.eq.f32.partialorder %v1865, 8.507059e+37
          %v1867 = vand.u32 %v1840, 2147483648
          %v1868 = vor.u32 1.1754944e-38, %v1867
          %v1869 = vsel %vm1866, %v1868, %v1864
          %v1870 = vmul.f32 1.0, %v1869
          %v1873 = vrot.slane %v1831, 3
          %v1874 = vrot.slane %v1832, 3
          %v1877 = vtanh.pop %v1873
          %v1878 = vtanh.pop %v1874
          %v1881 = vrot.slane %v1855, 1
          %v1882 = vrot.slane %v1870, 1
          %v1885 = vmul.f32 %v1881, %v1714
          %v1886 = vmul.f32 %v1882, %v1715
          %v1887 = vmul.f32 %v1855, %v1877
          %v1888 = vmul.f32 %v1870, %v1878
          %v1889 = vadd.f32 %v1885, %v1887
          %v1890 = vadd.f32 %v1886, %v1888
          %v1891 = vtanh.pop %v1889
          %v1892 = vtanh.pop %v1890
          %v1893 = vrot.slane %v1855, 2
          %v1894 = vrot.slane %v1870, 2
          %v1897 = vmul.f32 %v1893, %v1891
          %v1898 = vmul.f32 %v1894, %v1892
          %s1899 = scalar_lea.vmem [#allocation4], 7
          %v1900 = vld [vmem:[%s1899] ss:$8 sm:$0xf]
          %s1901 = scalar_lea.vmem [#allocation4], 39
          %v1902 = vld [vmem:[%s1901] ss:$8 sm:$0xf]
          %1905 = vst [vmem:[#allocation1] ss:$9 sm:$0xff] %v1897
          %s1906 = scalar_lea.vmem [#allocation1], 1
          %1907 = vst [vmem:[%s1906] ss:$9 sm:$0xff] %v1898
          %v1908 = vld [vmem:[#allocation1] sm:$0xff]
          %1910 = vmatpush.msra.mxu0 %v667
          %1911 = vmatpush.msra.mxu0 %v663
          %1912 = vmatpush.msra.mxu0 %v659
          %1913 = vmatpush.msra.mxu0 %v655
          %1914 = vmatpush.msra.mxu0 %v651
          %1915 = vmatpush.msra.mxu0 %v647
          %1916 = vmatpush.msra.mxu0 %v643
          %1917 = vmatpush.msra.mxu0 %v639
          %1918 = vmatpush.msra.mxu0 %v635
          %1919 = vmatpush.msra.mxu0 %v631
          %1920 = vmatpush.msra.mxu0 %v627
          %1921 = vmatpush.msra.mxu0 %v623
          %1922 = vmatpush.msra.mxu0 %v619
          %1923 = vmatpush.msra.mxu0 %v615
          %1924 = vmatpush.msra.mxu0 %v611
          %1925 = vmatpush.msra.mxu0 %v607
          %1926 = vmatmul.f32.gmra.mxu0 %v1908
          %v1927 = vpop.f32.mrf.mxu0
          %v1928 = vadd.f32 0.0, %v1927
          %1929 = vdwg.mxu0
          %1930 = vmatpush.msra.mxu0 %v668
          %1931 = vmatpush.msra.mxu0 %v664
          %1932 = vmatpush.msra.mxu0 %v660
          %1933 = vmatpush.msra.mxu0 %v656
          %1934 = vmatpush.msra.mxu0 %v652
          %1935 = vmatpush.msra.mxu0 %v648
          %1936 = vmatpush.msra.mxu0 %v644
          %1937 = vmatpush.msra.mxu0 %v640
          %1938 = vmatpush.msra.mxu0 %v636
          %1939 = vmatpush.msra.mxu0 %v632
          %1940 = vmatpush.msra.mxu0 %v628
          %1941 = vmatpush.msra.mxu0 %v624
          %1942 = vmatpush.msra.mxu0 %v620
          %1943 = vmatpush.msra.mxu0 %v616
          %1944 = vmatpush.msra.mxu0 %v612
          %1945 = vmatpush.msra.mxu0 %v608
          %1946 = vmatmul.f32.gmra.mxu0 %v1908
          %v1947 = vpop.f32.mrf.mxu0
          %v1948 = vadd.f32 0.0, %v1947
          %1949 = vdwg.mxu0
          %1950 = vmatpush.msra.mxu0 %v669
          %1951 = vmatpush.msra.mxu0 %v665
          %1952 = vmatpush.msra.mxu0 %v661
          %1953 = vmatpush.msra.mxu0 %v657
          %1954 = vmatpush.msra.mxu0 %v653
          %1955 = vmatpush.msra.mxu0 %v649
          %1956 = vmatpush.msra.mxu0 %v645
          %1957 = vmatpush.msra.mxu0 %v641
          %1958 = vmatpush.msra.mxu0 %v637
          %1959 = vmatpush.msra.mxu0 %v633
          %1960 = vmatpush.msra.mxu0 %v629
          %1961 = vmatpush.msra.mxu0 %v625
          %1962 = vmatpush.msra.mxu0 %v621
          %1963 = vmatpush.msra.mxu0 %v617
          %1964 = vmatpush.msra.mxu0 %v613
          %1965 = vmatpush.msra.mxu0 %v609
          %1966 = vmatmul.f32.gmra.mxu0 %v1908
          %v1967 = vpop.f32.mrf.mxu0
          %v1968 = vadd.f32 0.0, %v1967
          %1969 = vdwg.mxu0
          %1970 = vmatpush.msra.mxu0 %v670
          %1971 = vmatpush.msra.mxu0 %v666
          %1972 = vmatpush.msra.mxu0 %v662
          %1973 = vmatpush.msra.mxu0 %v658
          %1974 = vmatpush.msra.mxu0 %v654
          %1975 = vmatpush.msra.mxu0 %v650
          %1976 = vmatpush.msra.mxu0 %v646
          %1977 = vmatpush.msra.mxu0 %v642
          %1978 = vmatpush.msra.mxu0 %v638
          %1979 = vmatpush.msra.mxu0 %v634
          %1980 = vmatpush.msra.mxu0 %v630
          %1981 = vmatpush.msra.mxu0 %v626
          %1982 = vmatpush.msra.mxu0 %v622
          %1983 = vmatpush.msra.mxu0 %v618
          %1984 = vmatpush.msra.mxu0 %v614
          %1985 = vmatpush.msra.mxu0 %v610
          %1986 = vmatmul.f32.gmra.mxu0 %v1908
          %v1987 = vpop.f32.mrf.mxu0
          %v1988 = vadd.f32 0.0, %v1987
          %1989 = vdwg.mxu0
          %v1994 = vrot.slane %v1948, 7
          %v1995 = vrot.slane %v1968, 6
          %v1996 = vrot.slane %v1988, 5
          %v1997 = vsel %vm763, %v1928, %v1994
          %v1998 = vsel %vm765, %v1995, %v1996
          %v1999 = vsel %vm767, %v1997, %v1998
          %v2000 = vsel %vm769, %v1928, %v1994
          %v2001 = vsel %vm771, %v1995, %v1996
          %v2002 = vsel %vm773, %v2000, %v2001
          %v2003 = vrot.slane %v2002, 1
          %v2006 = vadd.f32 %v1900, %v1999
          %v2007 = vadd.f32 %v1902, %v2003
          %v2008 = vxor.u32 %v2006, 2147483648
          %v2009 = vxor.u32 %v2007, 2147483648
          %v2010 = vmul.f32 %v2008, 1.442695
          %v2011 = vpow.pop %v2010
          %v2012 = vmul.f32 %v2009, 1.442695
          %v2013 = vpow.pop %v2012
          %v2014 = vadd.f32 %v2011, 1.0
          %v2015 = vadd.f32 %v2013, 1.0
          %v2016 = vrcp.pop %v2014
          %v2017 = vmul.f32 %v2014, %v2016
          %v2018 = vsub.f32 1.0, %v2017
          %v2019 = vmul.f32 %v2016, %v2018
          %v2020 = vadd.f32 %v2016, %v2019
          %vm2021 = vweird.f32 %v2014
          %vm2022 = vweird.f32 %v2016
          %vm2023 = vmor %vm2021, %vm2022
          %v2024 = vsel %vm2023, %v2016, %v2020
          %v2025 = vand.u32 2147483647, %v2014
          %vm2026 = vcmp.eq.f32.partialorder %v2025, 8.507059e+37
          %v2027 = vand.u32 %v2014, 2147483648
          %v2028 = vor.u32 1.1754944e-38, %v2027
          %v2029 = vsel %vm2026, %v2028, %v2024
          %v2030 = vmul.f32 1.0, %v2029
          %v2031 = vrcp.pop %v2015
          %v2032 = vmul.f32 %v2015, %v2031
          %v2033 = vsub.f32 1.0, %v2032
          %v2034 = vmul.f32 %v2031, %v2033
          %v2035 = vadd.f32 %v2031, %v2034
          %vm2036 = vweird.f32 %v2015
          %vm2037 = vweird.f32 %v2031
          %vm2038 = vmor %vm2036, %vm2037
          %v2039 = vsel %vm2038, %v2031, %v2035
          %v2040 = vand.u32 2147483647, %v2015
          %vm2041 = vcmp.eq.f32.partialorder %v2040, 8.507059e+37
          %v2042 = vand.u32 %v2015, 2147483648
          %v2043 = vor.u32 1.1754944e-38, %v2042
          %v2044 = vsel %vm2041, %v2043, %v2039
          %v2045 = vmul.f32 1.0, %v2044
          %v2048 = vrot.slane %v2006, 3
          %v2049 = vrot.slane %v2007, 3
          %v2052 = vtanh.pop %v2048
          %v2053 = vtanh.pop %v2049
          %v2056 = vrot.slane %v2030, 1
          %v2057 = vrot.slane %v2045, 1
          %v2060 = vmul.f32 %v2056, %v1889
          %v2061 = vmul.f32 %v2057, %v1890
          %v2062 = vmul.f32 %v2030, %v2052
          %v2063 = vmul.f32 %v2045, %v2053
          %v2064 = vadd.f32 %v2060, %v2062
          %v2065 = vadd.f32 %v2061, %v2063
          %v2066 = vtanh.pop %v2064
          %v2067 = vtanh.pop %v2065
          %v2068 = vrot.slane %v2030, 2
          %v2069 = vrot.slane %v2045, 2
          %v2072 = vmul.f32 %v2068, %v2066
          %v2073 = vmul.f32 %v2069, %v2067
          %2076 = vst [vmem:[#allocation1] ss:$9 sm:$0xff] %v2072
          %s2077 = scalar_lea.vmem [#allocation1], 1
          %2078 = vst [vmem:[%s2077] ss:$9 sm:$0xff] %v2073
          %v2079 = vld [vmem:[#allocation1] sm:$0xff]
          %2081 = vst [vmem:[#allocation2] sm:$0x3] %v2079
          %2084 = vst [vmem:[#allocation1] ss:$9 sm:$0xff] %v2064
          %s2085 = scalar_lea.vmem [#allocation1], 1
          %2086 = vst [vmem:[%s2085] ss:$9 sm:$0xff] %v2065
          %v2087 = vld [vmem:[#allocation1] sm:$0xff]
          %2089 = vst [vmem:[#allocation3] sm:$0x3] %v2087
        $region60: #{tpu_custom_call.1} parent=43 // pred_fallthru
          _
        %p2090 = scmp.gt.s32.totalorder %s25, 0
        %p2091 = scmp.eq.s32.totalorder %s467, 0
        %p2092 = pnand %p2090, %p2091
        %p2093 = pneg %p2092
        // Predicated region
        $region61: #{tpu_custom_call.1} parent=43 // pred_check
          _
        $region62: #{tpu_custom_call.1} parent=43 // pred_check_branch
          %2095 = sbr.rel (%p2092) target = $region64
        $region63: #{tpu_custom_call.1} parent=43 // pred_region
          %v2096 = vld [vmem:[%s310] sm:$0xff]
          %v2097 = vld [vmem:[%s310 + $0x8] sm:$0xff]
          %v2098 = vpack.c.bf16 %v2096, %v2096
          %v2099 = vpack.c.bf16 %v2097, %v2097
          %v2100 = vld [vmem:[%s1] sm:$0xff]
          %v2101 = vld [vmem:[%s1 + $0x8] sm:$0xff]
          %v2102 = vld [vmem:[%s1 + $0x10] sm:$0xff]
          %v2103 = vld [vmem:[%s1 + $0x18] sm:$0xff]
          %v2104 = vld [vmem:[%s1 + $0x20] sm:$0xff]
          %v2105 = vld [vmem:[%s1 + $0x28] sm:$0xff]
          %v2106 = vld [vmem:[%s1 + $0x30] sm:$0xff]
          %v2107 = vld [vmem:[%s1 + $0x38] sm:$0xff]
          %v2108 = vld [vmem:[#allocation9] sm:$0xf]
          %v2110 = vperm.slane %v2108, 0
          %v2111 = vperm.slane %v2108, 1
          %v2112 = vperm.slane %v2108, 2
          %v2113 = vperm.slane %v2108, 3
          %v2120 = vunpack.c.l.b16 %v2098
          %v2121 = vunpack.c.l.b16 %v2099
          %v2122 = vpack.c.b16 %v2121, %v2120
          %v2131 = vunpack.c.l.b16 %v2100
          %v2132 = vunpack.c.h.b16 %v2100
          %v2133 = vunpack.c.l.b16 %v2101
          %v2134 = vunpack.c.h.b16 %v2101
          %v2135 = vunpack.c.l.b16 %v2102
          %v2136 = vunpack.c.h.b16 %v2102
          %v2137 = vunpack.c.l.b16 %v2103
          %v2138 = vunpack.c.h.b16 %v2103
          %v2139 = vunpack.c.l.b16 %v2104
          %v2140 = vunpack.c.h.b16 %v2104
          %v2141 = vunpack.c.l.b16 %v2105
          %v2142 = vunpack.c.h.b16 %v2105
          %v2143 = vunpack.c.l.b16 %v2106
          %v2144 = vunpack.c.h.b16 %v2106
          %v2145 = vunpack.c.l.b16 %v2107
          %v2146 = vunpack.c.h.b16 %v2107
          %v2147 = vpack.c.b16 %v2135, %v2131
          %v2148 = vpack.c.b16 %v2136, %v2132
          %v2149 = vpack.c.b16 %v2137, %v2133
          %v2150 = vpack.c.b16 %v2138, %v2134
          %v2151 = vpack.c.b16 %v2143, %v2139
          %v2152 = vpack.c.b16 %v2144, %v2140
          %v2153 = vpack.c.b16 %v2145, %v2141
          %v2154 = vpack.c.b16 %v2146, %v2142
          %vm2163 = vcmask 261120
          %v2165 = vsel %vm2163, %v2122, 0
          %2167 = vmatpush.bf16.msra.mxu0 0
          %2168 = vmatpush.bf16.msra.mxu0 0
          %2169 = vmatpush.bf16.msra.mxu0 0
          %2170 = vmatpush.bf16.msra.mxu0 0
          %2171 = vmatpush.bf16.msra.mxu0 0
          %2172 = vmatpush.bf16.msra.mxu0 0
          %2173 = vmatpush.bf16.msra.mxu0 %v2151
          %2174 = vmatpush.bf16.msra.mxu0 %v2147
          %2175 = vmatmul.bf16.gmra.mxu0 %v2165
          %v2176 = vpop.f32.mrf.mxu0
          %v2177 = vadd.f32 %v2110, %v2176
          %v2178 = vpop.f32.mrf.mxu0
          %v2179 = vadd.f32 %v2110, %v2178
          %2180 = vdwg.mxu0
          %2181 = vmatpush.bf16.msra.mxu0 0
          %2182 = vmatpush.bf16.msra.mxu0 0
          %2183 = vmatpush.bf16.msra.mxu0 0
          %2184 = vmatpush.bf16.msra.mxu0 0
          %2185 = vmatpush.bf16.msra.mxu0 0
          %2186 = vmatpush.bf16.msra.mxu0 0
          %2187 = vmatpush.bf16.msra.mxu0 %v2152
          %2188 = vmatpush.bf16.msra.mxu0 %v2148
          %2189 = vmatmul.bf16.gmra.mxu0 %v2165
          %v2190 = vpop.f32.mrf.mxu0
          %v2191 = vadd.f32 %v2111, %v2190
          %v2192 = vpop.f32.mrf.mxu0
          %v2193 = vadd.f32 %v2111, %v2192
          %2194 = vdwg.mxu0
          %2195 = vmatpush.bf16.msra.mxu0 0
          %2196 = vmatpush.bf16.msra.mxu0 0
          %2197 = vmatpush.bf16.msra.mxu0 0
          %2198 = vmatpush.bf16.msra.mxu0 0
          %2199 = vmatpush.bf16.msra.mxu0 0
          %2200 = vmatpush.bf16.msra.mxu0 0
          %2201 = vmatpush.bf16.msra.mxu0 %v2153
          %2202 = vmatpush.bf16.msra.mxu0 %v2149
          %2203 = vmatmul.bf16.gmra.mxu0 %v2165
          %v2204 = vpop.f32.mrf.mxu0
          %v2205 = vadd.f32 %v2112, %v2204
          %v2206 = vpop.f32.mrf.mxu0
          %v2207 = vadd.f32 %v2112, %v2206
          %2208 = vdwg.mxu0
          %2209 = vmatpush.bf16.msra.mxu0 0
          %2210 = vmatpush.bf16.msra.mxu0 0
          %2211 = vmatpush.bf16.msra.mxu0 0
          %2212 = vmatpush.bf16.msra.mxu0 0
          %2213 = vmatpush.bf16.msra.mxu0 0
          %2214 = vmatpush.bf16.msra.mxu0 0
          %2215 = vmatpush.bf16.msra.mxu0 %v2154
          %2216 = vmatpush.bf16.msra.mxu0 %v2150
          %2217 = vmatmul.bf16.gmra.mxu0 %v2165
          %v2218 = vpop.f32.mrf.mxu0
          %v2219 = vadd.f32 %v2113, %v2218
          %v2220 = vpop.f32.mrf.mxu0
          %v2221 = vadd.f32 %v2113, %v2220
          %2222 = vdwg.mxu0
          %2223 = vst [vmem:[#allocation4] sm:$0xff] %v2177
          %2224 = vst [vmem:[#allocation4 + $0x8] sm:$0xff] %v2191
          %2225 = vst [vmem:[#allocation4 + $0x10] sm:$0xff] %v2205
          %2226 = vst [vmem:[#allocation4 + $0x18] sm:$0xff] %v2219
          %2227 = vst [vmem:[#allocation4 + $0x20] sm:$0xff] %v2179
          %2228 = vst [vmem:[#allocation4 + $0x28] sm:$0xff] %v2193
          %2229 = vst [vmem:[#allocation4 + $0x30] sm:$0xff] %v2207
          %2230 = vst [vmem:[#allocation4 + $0x38] sm:$0xff] %v2221
          %v2231 = vld [vmem:[#allocation6] sm:$0xff]
          %v2232 = vld [vmem:[#allocation6 + $0x8] sm:$0xff]
          %v2233 = vld [vmem:[#allocation6 + $0x10] sm:$0xff]
          %v2234 = vld [vmem:[#allocation6 + $0x18] sm:$0xff]
          %v2235 = vld [vmem:[#allocation6 + $0x20] sm:$0xff]
          %v2236 = vld [vmem:[#allocation6 + $0x28] sm:$0xff]
          %v2237 = vld [vmem:[#allocation6 + $0x30] sm:$0xff]
          %v2238 = vld [vmem:[#allocation6 + $0x38] sm:$0xff]
          %v2239 = vld [vmem:[#allocation6 + $0x40] sm:$0xff]
          %v2240 = vld [vmem:[#allocation6 + $0x48] sm:$0xff]
          %v2241 = vld [vmem:[#allocation6 + $0x50] sm:$0xff]
          %v2242 = vld [vmem:[#allocation6 + $0x58] sm:$0xff]
          %v2243 = vld [vmem:[#allocation6 + $0x60] sm:$0xff]
          %v2244 = vld [vmem:[#allocation6 + $0x68] sm:$0xff]
          %v2245 = vld [vmem:[#allocation6 + $0x70] sm:$0xff]
          %v2246 = vld [vmem:[#allocation6 + $0x78] sm:$0xff]
          %v2247 = vld [vmem:[#allocation6 + $0x80] sm:$0xff]
          %v2248 = vld [vmem:[#allocation6 + $0x88] sm:$0xff]
          %v2249 = vld [vmem:[#allocation6 + $0x90] sm:$0xff]
          %v2250 = vld [vmem:[#allocation6 + $0x98] sm:$0xff]
          %v2251 = vld [vmem:[#allocation6 + $0xa0] sm:$0xff]
          %v2252 = vld [vmem:[#allocation6 + $0xa8] sm:$0xff]
          %v2253 = vld [vmem:[#allocation6 + $0xb0] sm:$0xff]
          %v2254 = vld [vmem:[#allocation6 + $0xb8] sm:$0xff]
          %v2255 = vld [vmem:[#allocation6 + $0xc0] sm:$0xff]
          %v2256 = vld [vmem:[#allocation6 + $0xc8] sm:$0xff]
          %v2257 = vld [vmem:[#allocation6 + $0xd0] sm:$0xff]
          %v2258 = vld [vmem:[#allocation6 + $0xd8] sm:$0xff]
          %v2259 = vld [vmem:[#allocation6 + $0xe0] sm:$0xff]
          %v2260 = vld [vmem:[#allocation6 + $0xe8] sm:$0xff]
          %v2261 = vld [vmem:[#allocation6 + $0xf0] sm:$0xff]
          %v2262 = vld [vmem:[#allocation6 + $0xf8] sm:$0xff]
          %v2263 = vld [vmem:[#allocation6 + $0x100] sm:$0xff]
          %v2264 = vld [vmem:[#allocation6 + $0x108] sm:$0xff]
          %v2265 = vld [vmem:[#allocation6 + $0x110] sm:$0xff]
          %v2266 = vld [vmem:[#allocation6 + $0x118] sm:$0xff]
          %v2267 = vld [vmem:[#allocation6 + $0x120] sm:$0xff]
          %v2268 = vld [vmem:[#allocation6 + $0x128] sm:$0xff]
          %v2269 = vld [vmem:[#allocation6 + $0x130] sm:$0xff]
          %v2270 = vld [vmem:[#allocation6 + $0x138] sm:$0xff]
          %v2271 = vld [vmem:[#allocation6 + $0x140] sm:$0xff]
          %v2272 = vld [vmem:[#allocation6 + $0x148] sm:$0xff]
          %v2273 = vld [vmem:[#allocation6 + $0x150] sm:$0xff]
          %v2274 = vld [vmem:[#allocation6 + $0x158] sm:$0xff]
          %v2275 = vld [vmem:[#allocation6 + $0x160] sm:$0xff]
          %v2276 = vld [vmem:[#allocation6 + $0x168] sm:$0xff]
          %v2277 = vld [vmem:[#allocation6 + $0x170] sm:$0xff]
          %v2278 = vld [vmem:[#allocation6 + $0x178] sm:$0xff]
          %v2279 = vld [vmem:[#allocation6 + $0x180] sm:$0xff]
          %v2280 = vld [vmem:[#allocation6 + $0x188] sm:$0xff]
          %v2281 = vld [vmem:[#allocation6 + $0x190] sm:$0xff]
          %v2282 = vld [vmem:[#allocation6 + $0x198] sm:$0xff]
          %v2283 = vld [vmem:[#allocation6 + $0x1a0] sm:$0xff]
          %v2284 = vld [vmem:[#allocation6 + $0x1a8] sm:$0xff]
          %v2285 = vld [vmem:[#allocation6 + $0x1b0] sm:$0xff]
          %v2286 = vld [vmem:[#allocation6 + $0x1b8] sm:$0xff]
          %v2287 = vld [vmem:[#allocation6 + $0x1c0] sm:$0xff]
          %v2288 = vld [vmem:[#allocation6 + $0x1c8] sm:$0xff]
          %v2289 = vld [vmem:[#allocation6 + $0x1d0] sm:$0xff]
          %v2290 = vld [vmem:[#allocation6 + $0x1d8] sm:$0xff]
          %v2291 = vld [vmem:[#allocation6 + $0x1e0] sm:$0xff]
          %v2292 = vld [vmem:[#allocation6 + $0x1e8] sm:$0xff]
          %v2293 = vld [vmem:[#allocation6 + $0x1f0] sm:$0xff]
          %v2294 = vld [vmem:[#allocation6 + $0x1f8] sm:$0xff]
          %v2295 = vld [vmem:[#allocation2] sm:$0x3]
          %v2296 = vld [vmem:[#allocation3] sm:$0x3]
          %v2297 = vld [vmem:[#allocation5] ss:$8 sm:$0xf]
          %s2298 = scalar_lea.vmem [#allocation5], 32
          %v2299 = vld [vmem:[%s2298] ss:$8 sm:$0xf]
          %2300 = vmatpush.msra.mxu0 %v2291
          %2301 = vmatpush.msra.mxu0 %v2287
          %2302 = vmatpush.msra.mxu0 %v2283
          %2303 = vmatpush.msra.mxu0 %v2279
          %2304 = vmatpush.msra.mxu0 %v2275
          %2305 = vmatpush.msra.mxu0 %v2271
          %2306 = vmatpush.msra.mxu0 %v2267
          %2307 = vmatpush.msra.mxu0 %v2263
          %2308 = vmatpush.msra.mxu0 %v2259
          %2309 = vmatpush.msra.mxu0 %v2255
          %2310 = vmatpush.msra.mxu0 %v2251
          %2311 = vmatpush.msra.mxu0 %v2247
          %2312 = vmatpush.msra.mxu0 %v2243
          %2313 = vmatpush.msra.mxu0 %v2239
          %2314 = vmatpush.msra.mxu0 %v2235
          %2315 = vmatpush.msra.mxu0 %v2231
          %2316 = vmatmul.f32.gmra.mxu0 %v2295
          %v2317 = vpop.f32.mrf.mxu0
          %v2318 = vadd.f32 0.0, %v2317
          %2319 = vdwg.mxu0
          %2320 = vmatpush.msra.mxu0 %v2292
          %2321 = vmatpush.msra.mxu0 %v2288
          %2322 = vmatpush.msra.mxu0 %v2284
          %2323 = vmatpush.msra.mxu0 %v2280
          %2324 = vmatpush.msra.mxu0 %v2276
          %2325 = vmatpush.msra.mxu0 %v2272
          %2326 = vmatpush.msra.mxu0 %v2268
          %2327 = vmatpush.msra.mxu0 %v2264
          %2328 = vmatpush.msra.mxu0 %v2260
          %2329 = vmatpush.msra.mxu0 %v2256
          %2330 = vmatpush.msra.mxu0 %v2252
          %2331 = vmatpush.msra.mxu0 %v2248
          %2332 = vmatpush.msra.mxu0 %v2244
          %2333 = vmatpush.msra.mxu0 %v2240
          %2334 = vmatpush.msra.mxu0 %v2236
          %2335 = vmatpush.msra.mxu0 %v2232
          %2336 = vmatmul.f32.gmra.mxu0 %v2295
          %v2337 = vpop.f32.mrf.mxu0
          %v2338 = vadd.f32 0.0, %v2337
          %2339 = vdwg.mxu0
          %2340 = vmatpush.msra.mxu0 %v2293
          %2341 = vmatpush.msra.mxu0 %v2289
          %2342 = vmatpush.msra.mxu0 %v2285
          %2343 = vmatpush.msra.mxu0 %v2281
          %2344 = vmatpush.msra.mxu0 %v2277
          %2345 = vmatpush.msra.mxu0 %v2273
          %2346 = vmatpush.msra.mxu0 %v2269
          %2347 = vmatpush.msra.mxu0 %v2265
          %2348 = vmatpush.msra.mxu0 %v2261
          %2349 = vmatpush.msra.mxu0 %v2257
          %2350 = vmatpush.msra.mxu0 %v2253
          %2351 = vmatpush.msra.mxu0 %v2249
          %2352 = vmatpush.msra.mxu0 %v2245
          %2353 = vmatpush.msra.mxu0 %v2241
          %2354 = vmatpush.msra.mxu0 %v2237
          %2355 = vmatpush.msra.mxu0 %v2233
          %2356 = vmatmul.f32.gmra.mxu0 %v2295
          %v2357 = vpop.f32.mrf.mxu0
          %v2358 = vadd.f32 0.0, %v2357
          %2359 = vdwg.mxu0
          %2360 = vmatpush.msra.mxu0 %v2294
          %2361 = vmatpush.msra.mxu0 %v2290
          %2362 = vmatpush.msra.mxu0 %v2286
          %2363 = vmatpush.msra.mxu0 %v2282
          %2364 = vmatpush.msra.mxu0 %v2278
          %2365 = vmatpush.msra.mxu0 %v2274
          %2366 = vmatpush.msra.mxu0 %v2270
          %2367 = vmatpush.msra.mxu0 %v2266
          %2368 = vmatpush.msra.mxu0 %v2262
          %2369 = vmatpush.msra.mxu0 %v2258
          %2370 = vmatpush.msra.mxu0 %v2254
          %2371 = vmatpush.msra.mxu0 %v2250
          %2372 = vmatpush.msra.mxu0 %v2246
          %2373 = vmatpush.msra.mxu0 %v2242
          %2374 = vmatpush.msra.mxu0 %v2238
          %2375 = vmatpush.msra.mxu0 %v2234
          %2376 = vmatmul.f32.gmra.mxu0 %v2295
          %v2377 = vpop.f32.mrf.mxu0
          %v2378 = vadd.f32 0.0, %v2377
          %2379 = vdwg.mxu0
          %v2384 = vrot.slane %v2338, 7
          %v2385 = vrot.slane %v2358, 6
          %v2386 = vrot.slane %v2378, 5
          %vm2387 = vcmask 1040384
          %v2388 = vsel %vm2387, %v2318, %v2384
          %vm2389 = vcmask 1042434
          %v2390 = vsel %vm2389, %v2385, %v2386
          %vm2391 = vcmask 1041408
          %v2392 = vsel %vm2391, %v2388, %v2390
          %vm2393 = vcmask 1041409
          %v2394 = vsel %vm2393, %v2318, %v2384
          %vm2395 = vcmask 1043459
          %v2396 = vsel %vm2395, %v2385, %v2386
          %vm2397 = vcmask 1042433
          %v2398 = vsel %vm2397, %v2394, %v2396
          %v2399 = vrot.slane %v2398, 1
          %v2402 = vadd.f32 %v2297, %v2392
          %v2403 = vadd.f32 %v2299, %v2399
          %v2404 = vxor.u32 %v2402, 2147483648
          %v2405 = vxor.u32 %v2403, 2147483648
          %v2406 = vmul.f32 %v2404, 1.442695
          %v2407 = vpow.pop %v2406
          %v2408 = vmul.f32 %v2405, 1.442695
          %v2409 = vpow.pop %v2408
          %v2410 = vadd.f32 %v2407, 1.0
          %v2411 = vadd.f32 %v2409, 1.0
          %v2412 = vrcp.pop %v2410
          %v2413 = vmul.f32 %v2410, %v2412
          %v2414 = vsub.f32 1.0, %v2413
          %v2415 = vmul.f32 %v2412, %v2414
          %v2416 = vadd.f32 %v2412, %v2415
          %vm2417 = vweird.f32 %v2410
          %vm2418 = vweird.f32 %v2412
          %vm2419 = vmor %vm2417, %vm2418
          %v2420 = vsel %vm2419, %v2412, %v2416
          %v2421 = vand.u32 2147483647, %v2410
          %vm2422 = vcmp.eq.f32.partialorder %v2421, 8.507059e+37
          %v2423 = vand.u32 %v2410, 2147483648
          %v2424 = vor.u32 1.1754944e-38, %v2423
          %v2425 = vsel %vm2422, %v2424, %v2420
          %v2426 = vmul.f32 1.0, %v2425
          %v2427 = vrcp.pop %v2411
          %v2428 = vmul.f32 %v2411, %v2427
          %v2429 = vsub.f32 1.0, %v2428
          %v2430 = vmul.f32 %v2427, %v2429
          %v2431 = vadd.f32 %v2427, %v2430
          %vm2432 = vweird.f32 %v2411
          %vm2433 = vweird.f32 %v2427
          %vm2434 = vmor %vm2432, %vm2433
          %v2435 = vsel %vm2434, %v2427, %v2431
          %v2436 = vand.u32 2147483647, %v2411
          %vm2437 = vcmp.eq.f32.partialorder %v2436, 8.507059e+37
          %v2438 = vand.u32 %v2411, 2147483648
          %v2439 = vor.u32 1.1754944e-38, %v2438
          %v2440 = vsel %vm2437, %v2439, %v2435
          %v2441 = vmul.f32 1.0, %v2440
          %v2444 = vrot.slane %v2402, 3
          %v2445 = vrot.slane %v2403, 3
          %v2448 = vtanh.pop %v2444
          %v2449 = vtanh.pop %v2445
          %v2452 = vrot.slane %v2426, 1
          %v2453 = vrot.slane %v2441, 1
          %v2457 = vrot.slane %v2296, 1
          %v2459 = vmul.f32 %v2452, %v2296
          %v2460 = vmul.f32 %v2453, %v2457
          %v2461 = vmul.f32 %v2426, %v2448
          %v2462 = vmul.f32 %v2441, %v2449
          %v2463 = vadd.f32 %v2459, %v2461
          %v2464 = vadd.f32 %v2460, %v2462
          %v2465 = vtanh.pop %v2463
          %v2466 = vtanh.pop %v2464
          %v2467 = vrot.slane %v2426, 2
          %v2468 = vrot.slane %v2441, 2
          %v2471 = vmul.f32 %v2467, %v2465
          %v2472 = vmul.f32 %v2468, %v2466
          %s2473 = scalar_lea.vmem [#allocation5], 1
          %v2474 = vld [vmem:[%s2473] ss:$8 sm:$0xf]
          %s2475 = scalar_lea.vmem [#allocation5], 33
          %v2476 = vld [vmem:[%s2475] ss:$8 sm:$0xf]
          %2479 = vst [vmem:[#allocation1] ss:$9 sm:$0xff] %v2471
          %s2480 = scalar_lea.vmem [#allocation1], 1
          %2481 = vst [vmem:[%s2480] ss:$9 sm:$0xff] %v2472
          %v2482 = vld [vmem:[#allocation1] sm:$0xff]
          %2484 = vmatpush.msra.mxu0 %v2291
          %2485 = vmatpush.msra.mxu0 %v2287
          %2486 = vmatpush.msra.mxu0 %v2283
          %2487 = vmatpush.msra.mxu0 %v2279
          %2488 = vmatpush.msra.mxu0 %v2275
          %2489 = vmatpush.msra.mxu0 %v2271
          %2490 = vmatpush.msra.mxu0 %v2267
          %2491 = vmatpush.msra.mxu0 %v2263
          %2492 = vmatpush.msra.mxu0 %v2259
          %2493 = vmatpush.msra.mxu0 %v2255
          %2494 = vmatpush.msra.mxu0 %v2251
          %2495 = vmatpush.msra.mxu0 %v2247
          %2496 = vmatpush.msra.mxu0 %v2243
          %2497 = vmatpush.msra.mxu0 %v2239
          %2498 = vmatpush.msra.mxu0 %v2235
          %2499 = vmatpush.msra.mxu0 %v2231
          %2500 = vmatmul.f32.gmra.mxu0 %v2482
          %v2501 = vpop.f32.mrf.mxu0
          %v2502 = vadd.f32 0.0, %v2501
          %2503 = vdwg.mxu0
          %2504 = vmatpush.msra.mxu0 %v2292
          %2505 = vmatpush.msra.mxu0 %v2288
          %2506 = vmatpush.msra.mxu0 %v2284
          %2507 = vmatpush.msra.mxu0 %v2280
          %2508 = vmatpush.msra.mxu0 %v2276
          %2509 = vmatpush.msra.mxu0 %v2272
          %2510 = vmatpush.msra.mxu0 %v2268
          %2511 = vmatpush.msra.mxu0 %v2264
          %2512 = vmatpush.msra.mxu0 %v2260
          %2513 = vmatpush.msra.mxu0 %v2256
          %2514 = vmatpush.msra.mxu0 %v2252
          %2515 = vmatpush.msra.mxu0 %v2248
          %2516 = vmatpush.msra.mxu0 %v2244
          %2517 = vmatpush.msra.mxu0 %v2240
          %2518 = vmatpush.msra.mxu0 %v2236
          %2519 = vmatpush.msra.mxu0 %v2232
          %2520 = vmatmul.f32.gmra.mxu0 %v2482
          %v2521 = vpop.f32.mrf.mxu0
          %v2522 = vadd.f32 0.0, %v2521
          %2523 = vdwg.mxu0
          %2524 = vmatpush.msra.mxu0 %v2293
          %2525 = vmatpush.msra.mxu0 %v2289
          %2526 = vmatpush.msra.mxu0 %v2285
          %2527 = vmatpush.msra.mxu0 %v2281
          %2528 = vmatpush.msra.mxu0 %v2277
          %2529 = vmatpush.msra.mxu0 %v2273
          %2530 = vmatpush.msra.mxu0 %v2269
          %2531 = vmatpush.msra.mxu0 %v2265
          %2532 = vmatpush.msra.mxu0 %v2261
          %2533 = vmatpush.msra.mxu0 %v2257
          %2534 = vmatpush.msra.mxu0 %v2253
          %2535 = vmatpush.msra.mxu0 %v2249
          %2536 = vmatpush.msra.mxu0 %v2245
          %2537 = vmatpush.msra.mxu0 %v2241
          %2538 = vmatpush.msra.mxu0 %v2237
          %2539 = vmatpush.msra.mxu0 %v2233
          %2540 = vmatmul.f32.gmra.mxu0 %v2482
          %v2541 = vpop.f32.mrf.mxu0
          %v2542 = vadd.f32 0.0, %v2541
          %2543 = vdwg.mxu0
          %2544 = vmatpush.msra.mxu0 %v2294
          %2545 = vmatpush.msra.mxu0 %v2290
          %2546 = vmatpush.msra.mxu0 %v2286
          %2547 = vmatpush.msra.mxu0 %v2282
          %2548 = vmatpush.msra.mxu0 %v2278
          %2549 = vmatpush.msra.mxu0 %v2274
          %2550 = vmatpush.msra.mxu0 %v2270
          %2551 = vmatpush.msra.mxu0 %v2266
          %2552 = vmatpush.msra.mxu0 %v2262
          %2553 = vmatpush.msra.mxu0 %v2258
          %2554 = vmatpush.msra.mxu0 %v2254
          %2555 = vmatpush.msra.mxu0 %v2250
          %2556 = vmatpush.msra.mxu0 %v2246
          %2557 = vmatpush.msra.mxu0 %v2242
          %2558 = vmatpush.msra.mxu0 %v2238
          %2559 = vmatpush.msra.mxu0 %v2234
          %2560 = vmatmul.f32.gmra.mxu0 %v2482
          %v2561 = vpop.f32.mrf.mxu0
          %v2562 = vadd.f32 0.0, %v2561
          %2563 = vdwg.mxu0
          %v2568 = vrot.slane %v2522, 7
          %v2569 = vrot.slane %v2542, 6
          %v2570 = vrot.slane %v2562, 5
          %v2571 = vsel %vm2387, %v2502, %v2568
          %v2572 = vsel %vm2389, %v2569, %v2570
          %v2573 = vsel %vm2391, %v2571, %v2572
          %v2574 = vsel %vm2393, %v2502, %v2568
          %v2575 = vsel %vm2395, %v2569, %v2570
          %v2576 = vsel %vm2397, %v2574, %v2575
          %v2577 = vrot.slane %v2576, 1
          %v2580 = vadd.f32 %v2474, %v2573
          %v2581 = vadd.f32 %v2476, %v2577
          %v2582 = vxor.u32 %v2580, 2147483648
          %v2583 = vxor.u32 %v2581, 2147483648
          %v2584 = vmul.f32 %v2582, 1.442695
          %v2585 = vpow.pop %v2584
          %v2586 = vmul.f32 %v2583, 1.442695
          %v2587 = vpow.pop %v2586
          %v2588 = vadd.f32 %v2585, 1.0
          %v2589 = vadd.f32 %v2587, 1.0
          %v2590 = vrcp.pop %v2588
          %v2591 = vmul.f32 %v2588, %v2590
          %v2592 = vsub.f32 1.0, %v2591
          %v2593 = vmul.f32 %v2590, %v2592
          %v2594 = vadd.f32 %v2590, %v2593
          %vm2595 = vweird.f32 %v2588
          %vm2596 = vweird.f32 %v2590
          %vm2597 = vmor %vm2595, %vm2596
          %v2598 = vsel %vm2597, %v2590, %v2594
          %v2599 = vand.u32 2147483647, %v2588
          %vm2600 = vcmp.eq.f32.partialorder %v2599, 8.507059e+37
          %v2601 = vand.u32 %v2588, 2147483648
          %v2602 = vor.u32 1.1754944e-38, %v2601
          %v2603 = vsel %vm2600, %v2602, %v2598
          %v2604 = vmul.f32 1.0, %v2603
          %v2605 = vrcp.pop %v2589
          %v2606 = vmul.f32 %v2589, %v2605
          %v2607 = vsub.f32 1.0, %v2606
          %v2608 = vmul.f32 %v2605, %v2607
          %v2609 = vadd.f32 %v2605, %v2608
          %vm2610 = vweird.f32 %v2589
          %vm2611 = vweird.f32 %v2605
          %vm2612 = vmor %vm2610, %vm2611
          %v2613 = vsel %vm2612, %v2605, %v2609
          %v2614 = vand.u32 2147483647, %v2589
          %vm2615 = vcmp.eq.f32.partialorder %v2614, 8.507059e+37
          %v2616 = vand.u32 %v2589, 2147483648
          %v2617 = vor.u32 1.1754944e-38, %v2616
          %v2618 = vsel %vm2615, %v2617, %v2613
          %v2619 = vmul.f32 1.0, %v2618
          %v2622 = vrot.slane %v2580, 3
          %v2623 = vrot.slane %v2581, 3
          %v2626 = vtanh.pop %v2622
          %v2627 = vtanh.pop %v2623
          %v2630 = vrot.slane %v2604, 1
          %v2631 = vrot.slane %v2619, 1
          %v2634 = vmul.f32 %v2630, %v2463
          %v2635 = vmul.f32 %v2631, %v2464
          %v2636 = vmul.f32 %v2604, %v2626
          %v2637 = vmul.f32 %v2619, %v2627
          %v2638 = vadd.f32 %v2634, %v2636
          %v2639 = vadd.f32 %v2635, %v2637
          %v2640 = vtanh.pop %v2638
          %v2641 = vtanh.pop %v2639
          %v2642 = vrot.slane %v2604, 2
          %v2643 = vrot.slane %v2619, 2
          %v2646 = vmul.f32 %v2642, %v2640
          %v2647 = vmul.f32 %v2643, %v2641
          %s2648 = scalar_lea.vmem [#allocation5], 2
          %v2649 = vld [vmem:[%s2648] ss:$8 sm:$0xf]
          %s2650 = scalar_lea.vmem [#allocation5], 34
          %v2651 = vld [vmem:[%s2650] ss:$8 sm:$0xf]
          %2654 = vst [vmem:[#allocation1] ss:$9 sm:$0xff] %v2646
          %s2655 = scalar_lea.vmem [#allocation1], 1
          %2656 = vst [vmem:[%s2655] ss:$9 sm:$0xff] %v2647
          %v2657 = vld [vmem:[#allocation1] sm:$0xff]
          %2659 = vmatpush.msra.mxu0 %v2291
          %2660 = vmatpush.msra.mxu0 %v2287
          %2661 = vmatpush.msra.mxu0 %v2283
          %2662 = vmatpush.msra.mxu0 %v2279
          %2663 = vmatpush.msra.mxu0 %v2275
          %2664 = vmatpush.msra.mxu0 %v2271
          %2665 = vmatpush.msra.mxu0 %v2267
          %2666 = vmatpush.msra.mxu0 %v2263
          %2667 = vmatpush.msra.mxu0 %v2259
          %2668 = vmatpush.msra.mxu0 %v2255
          %2669 = vmatpush.msra.mxu0 %v2251
          %2670 = vmatpush.msra.mxu0 %v2247
          %2671 = vmatpush.msra.mxu0 %v2243
          %2672 = vmatpush.msra.mxu0 %v2239
          %2673 = vmatpush.msra.mxu0 %v2235
          %2674 = vmatpush.msra.mxu0 %v2231
          %2675 = vmatmul.f32.gmra.mxu0 %v2657
          %v2676 = vpop.f32.mrf.mxu0
          %v2677 = vadd.f32 0.0, %v2676
          %2678 = vdwg.mxu0
          %2679 = vmatpush.msra.mxu0 %v2292
          %2680 = vmatpush.msra.mxu0 %v2288
          %2681 = vmatpush.msra.mxu0 %v2284
          %2682 = vmatpush.msra.mxu0 %v2280
          %2683 = vmatpush.msra.mxu0 %v2276
          %2684 = vmatpush.msra.mxu0 %v2272
          %2685 = vmatpush.msra.mxu0 %v2268
          %2686 = vmatpush.msra.mxu0 %v2264
          %2687 = vmatpush.msra.mxu0 %v2260
          %2688 = vmatpush.msra.mxu0 %v2256
          %2689 = vmatpush.msra.mxu0 %v2252
          %2690 = vmatpush.msra.mxu0 %v2248
          %2691 = vmatpush.msra.mxu0 %v2244
          %2692 = vmatpush.msra.mxu0 %v2240
          %2693 = vmatpush.msra.mxu0 %v2236
          %2694 = vmatpush.msra.mxu0 %v2232
          %2695 = vmatmul.f32.gmra.mxu0 %v2657
          %v2696 = vpop.f32.mrf.mxu0
          %v2697 = vadd.f32 0.0, %v2696
          %2698 = vdwg.mxu0
          %2699 = vmatpush.msra.mxu0 %v2293
          %2700 = vmatpush.msra.mxu0 %v2289
          %2701 = vmatpush.msra.mxu0 %v2285
          %2702 = vmatpush.msra.mxu0 %v2281
          %2703 = vmatpush.msra.mxu0 %v2277
          %2704 = vmatpush.msra.mxu0 %v2273
          %2705 = vmatpush.msra.mxu0 %v2269
          %2706 = vmatpush.msra.mxu0 %v2265
          %2707 = vmatpush.msra.mxu0 %v2261
          %2708 = vmatpush.msra.mxu0 %v2257
          %2709 = vmatpush.msra.mxu0 %v2253
          %2710 = vmatpush.msra.mxu0 %v2249
          %2711 = vmatpush.msra.mxu0 %v2245
          %2712 = vmatpush.msra.mxu0 %v2241
          %2713 = vmatpush.msra.mxu0 %v2237
          %2714 = vmatpush.msra.mxu0 %v2233
          %2715 = vmatmul.f32.gmra.mxu0 %v2657
          %v2716 = vpop.f32.mrf.mxu0
          %v2717 = vadd.f32 0.0, %v2716
          %2718 = vdwg.mxu0
          %2719 = vmatpush.msra.mxu0 %v2294
          %2720 = vmatpush.msra.mxu0 %v2290
          %2721 = vmatpush.msra.mxu0 %v2286
          %2722 = vmatpush.msra.mxu0 %v2282
          %2723 = vmatpush.msra.mxu0 %v2278
          %2724 = vmatpush.msra.mxu0 %v2274
          %2725 = vmatpush.msra.mxu0 %v2270
          %2726 = vmatpush.msra.mxu0 %v2266
          %2727 = vmatpush.msra.mxu0 %v2262
          %2728 = vmatpush.msra.mxu0 %v2258
          %2729 = vmatpush.msra.mxu0 %v2254
          %2730 = vmatpush.msra.mxu0 %v2250
          %2731 = vmatpush.msra.mxu0 %v2246
          %2732 = vmatpush.msra.mxu0 %v2242
          %2733 = vmatpush.msra.mxu0 %v2238
          %2734 = vmatpush.msra.mxu0 %v2234
          %2735 = vmatmul.f32.gmra.mxu0 %v2657
          %v2736 = vpop.f32.mrf.mxu0
          %v2737 = vadd.f32 0.0, %v2736
          %2738 = vdwg.mxu0
          %v2743 = vrot.slane %v2697, 7
          %v2744 = vrot.slane %v2717, 6
          %v2745 = vrot.slane %v2737, 5
          %v2746 = vsel %vm2387, %v2677, %v2743
          %v2747 = vsel %vm2389, %v2744, %v2745
          %v2748 = vsel %vm2391, %v2746, %v2747
          %v2749 = vsel %vm2393, %v2677, %v2743
          %v2750 = vsel %vm2395, %v2744, %v2745
          %v2751 = vsel %vm2397, %v2749, %v2750
          %v2752 = vrot.slane %v2751, 1
          %v2755 = vadd.f32 %v2649, %v2748
          %v2756 = vadd.f32 %v2651, %v2752
          %v2757 = vxor.u32 %v2755, 2147483648
          %v2758 = vxor.u32 %v2756, 2147483648
          %v2759 = vmul.f32 %v2757, 1.442695
          %v2760 = vpow.pop %v2759
          %v2761 = vmul.f32 %v2758, 1.442695
          %v2762 = vpow.pop %v2761
          %v2763 = vadd.f32 %v2760, 1.0
          %v2764 = vadd.f32 %v2762, 1.0
          %v2765 = vrcp.pop %v2763
          %v2766 = vmul.f32 %v2763, %v2765
          %v2767 = vsub.f32 1.0, %v2766
          %v2768 = vmul.f32 %v2765, %v2767
          %v2769 = vadd.f32 %v2765, %v2768
          %vm2770 = vweird.f32 %v2763
          %vm2771 = vweird.f32 %v2765
          %vm2772 = vmor %vm2770, %vm2771
          %v2773 = vsel %vm2772, %v2765, %v2769
          %v2774 = vand.u32 2147483647, %v2763
          %vm2775 = vcmp.eq.f32.partialorder %v2774, 8.507059e+37
          %v2776 = vand.u32 %v2763, 2147483648
          %v2777 = vor.u32 1.1754944e-38, %v2776
          %v2778 = vsel %vm2775, %v2777, %v2773
          %v2779 = vmul.f32 1.0, %v2778
          %v2780 = vrcp.pop %v2764
          %v2781 = vmul.f32 %v2764, %v2780
          %v2782 = vsub.f32 1.0, %v2781
          %v2783 = vmul.f32 %v2780, %v2782
          %v2784 = vadd.f32 %v2780, %v2783
          %vm2785 = vweird.f32 %v2764
          %vm2786 = vweird.f32 %v2780
          %vm2787 = vmor %vm2785, %vm2786
          %v2788 = vsel %vm2787, %v2780, %v2784
          %v2789 = vand.u32 2147483647, %v2764
          %vm2790 = vcmp.eq.f32.partialorder %v2789, 8.507059e+37
          %v2791 = vand.u32 %v2764, 2147483648
          %v2792 = vor.u32 1.1754944e-38, %v2791
          %v2793 = vsel %vm2790, %v2792, %v2788
          %v2794 = vmul.f32 1.0, %v2793
          %v2797 = vrot.slane %v2755, 3
          %v2798 = vrot.slane %v2756, 3
          %v2801 = vtanh.pop %v2797
          %v2802 = vtanh.pop %v2798
          %v2805 = vrot.slane %v2779, 1
          %v2806 = vrot.slane %v2794, 1
          %v2809 = vmul.f32 %v2805, %v2638
          %v2810 = vmul.f32 %v2806, %v2639
          %v2811 = vmul.f32 %v2779, %v2801
          %v2812 = vmul.f32 %v2794, %v2802
          %v2813 = vadd.f32 %v2809, %v2811
          %v2814 = vadd.f32 %v2810, %v2812
          %v2815 = vtanh.pop %v2813
          %v2816 = vtanh.pop %v2814
          %v2817 = vrot.slane %v2779, 2
          %v2818 = vrot.slane %v2794, 2
          %v2821 = vmul.f32 %v2817, %v2815
          %v2822 = vmul.f32 %v2818, %v2816
          %s2823 = scalar_lea.vmem [#allocation5], 3
          %v2824 = vld [vmem:[%s2823] ss:$8 sm:$0xf]
          %s2825 = scalar_lea.vmem [#allocation5], 35
          %v2826 = vld [vmem:[%s2825] ss:$8 sm:$0xf]
          %2829 = vst [vmem:[#allocation1] ss:$9 sm:$0xff] %v2821
          %s2830 = scalar_lea.vmem [#allocation1], 1
          %2831 = vst [vmem:[%s2830] ss:$9 sm:$0xff] %v2822
          %v2832 = vld [vmem:[#allocation1] sm:$0xff]
          %2834 = vmatpush.msra.mxu0 %v2291
          %2835 = vmatpush.msra.mxu0 %v2287
          %2836 = vmatpush.msra.mxu0 %v2283
          %2837 = vmatpush.msra.mxu0 %v2279
          %2838 = vmatpush.msra.mxu0 %v2275
          %2839 = vmatpush.msra.mxu0 %v2271
          %2840 = vmatpush.msra.mxu0 %v2267
          %2841 = vmatpush.msra.mxu0 %v2263
          %2842 = vmatpush.msra.mxu0 %v2259
          %2843 = vmatpush.msra.mxu0 %v2255
          %2844 = vmatpush.msra.mxu0 %v2251
          %2845 = vmatpush.msra.mxu0 %v2247
          %2846 = vmatpush.msra.mxu0 %v2243
          %2847 = vmatpush.msra.mxu0 %v2239
          %2848 = vmatpush.msra.mxu0 %v2235
          %2849 = vmatpush.msra.mxu0 %v2231
          %2850 = vmatmul.f32.gmra.mxu0 %v2832
          %v2851 = vpop.f32.mrf.mxu0
          %v2852 = vadd.f32 0.0, %v2851
          %2853 = vdwg.mxu0
          %2854 = vmatpush.msra.mxu0 %v2292
          %2855 = vmatpush.msra.mxu0 %v2288
          %2856 = vmatpush.msra.mxu0 %v2284
          %2857 = vmatpush.msra.mxu0 %v2280
          %2858 = vmatpush.msra.mxu0 %v2276
          %2859 = vmatpush.msra.mxu0 %v2272
          %2860 = vmatpush.msra.mxu0 %v2268
          %2861 = vmatpush.msra.mxu0 %v2264
          %2862 = vmatpush.msra.mxu0 %v2260
          %2863 = vmatpush.msra.mxu0 %v2256
          %2864 = vmatpush.msra.mxu0 %v2252
          %2865 = vmatpush.msra.mxu0 %v2248
          %2866 = vmatpush.msra.mxu0 %v2244
          %2867 = vmatpush.msra.mxu0 %v2240
          %2868 = vmatpush.msra.mxu0 %v2236
          %2869 = vmatpush.msra.mxu0 %v2232
          %2870 = vmatmul.f32.gmra.mxu0 %v2832
          %v2871 = vpop.f32.mrf.mxu0
          %v2872 = vadd.f32 0.0, %v2871
          %2873 = vdwg.mxu0
          %2874 = vmatpush.msra.mxu0 %v2293
          %2875 = vmatpush.msra.mxu0 %v2289
          %2876 = vmatpush.msra.mxu0 %v2285
          %2877 = vmatpush.msra.mxu0 %v2281
          %2878 = vmatpush.msra.mxu0 %v2277
          %2879 = vmatpush.msra.mxu0 %v2273
          %2880 = vmatpush.msra.mxu0 %v2269
          %2881 = vmatpush.msra.mxu0 %v2265
          %2882 = vmatpush.msra.mxu0 %v2261
          %2883 = vmatpush.msra.mxu0 %v2257
          %2884 = vmatpush.msra.mxu0 %v2253
          %2885 = vmatpush.msra.mxu0 %v2249
          %2886 = vmatpush.msra.mxu0 %v2245
          %2887 = vmatpush.msra.mxu0 %v2241
          %2888 = vmatpush.msra.mxu0 %v2237
          %2889 = vmatpush.msra.mxu0 %v2233
          %2890 = vmatmul.f32.gmra.mxu0 %v2832
          %v2891 = vpop.f32.mrf.mxu0
          %v2892 = vadd.f32 0.0, %v2891
          %2893 = vdwg.mxu0
          %2894 = vmatpush.msra.mxu0 %v2294
          %2895 = vmatpush.msra.mxu0 %v2290
          %2896 = vmatpush.msra.mxu0 %v2286
          %2897 = vmatpush.msra.mxu0 %v2282
          %2898 = vmatpush.msra.mxu0 %v2278
          %2899 = vmatpush.msra.mxu0 %v2274
          %2900 = vmatpush.msra.mxu0 %v2270
          %2901 = vmatpush.msra.mxu0 %v2266
          %2902 = vmatpush.msra.mxu0 %v2262
          %2903 = vmatpush.msra.mxu0 %v2258
          %2904 = vmatpush.msra.mxu0 %v2254
          %2905 = vmatpush.msra.mxu0 %v2250
          %2906 = vmatpush.msra.mxu0 %v2246
          %2907 = vmatpush.msra.mxu0 %v2242
          %2908 = vmatpush.msra.mxu0 %v2238
          %2909 = vmatpush.msra.mxu0 %v2234
          %2910 = vmatmul.f32.gmra.mxu0 %v2832
          %v2911 = vpop.f32.mrf.mxu0
          %v2912 = vadd.f32 0.0, %v2911
          %2913 = vdwg.mxu0
          %v2918 = vrot.slane %v2872, 7
          %v2919 = vrot.slane %v2892, 6
          %v2920 = vrot.slane %v2912, 5
          %v2921 = vsel %vm2387, %v2852, %v2918
          %v2922 = vsel %vm2389, %v2919, %v2920
          %v2923 = vsel %vm2391, %v2921, %v2922
          %v2924 = vsel %vm2393, %v2852, %v2918
          %v2925 = vsel %vm2395, %v2919, %v2920
          %v2926 = vsel %vm2397, %v2924, %v2925
          %v2927 = vrot.slane %v2926, 1
          %v2930 = vadd.f32 %v2824, %v2923
          %v2931 = vadd.f32 %v2826, %v2927
          %v2932 = vxor.u32 %v2930, 2147483648
          %v2933 = vxor.u32 %v2931, 2147483648
          %v2934 = vmul.f32 %v2932, 1.442695
          %v2935 = vpow.pop %v2934
          %v2936 = vmul.f32 %v2933, 1.442695
          %v2937 = vpow.pop %v2936
          %v2938 = vadd.f32 %v2935, 1.0
          %v2939 = vadd.f32 %v2937, 1.0
          %v2940 = vrcp.pop %v2938
          %v2941 = vmul.f32 %v2938, %v2940
          %v2942 = vsub.f32 1.0, %v2941
          %v2943 = vmul.f32 %v2940, %v2942
          %v2944 = vadd.f32 %v2940, %v2943
          %vm2945 = vweird.f32 %v2938
          %vm2946 = vweird.f32 %v2940
          %vm2947 = vmor %vm2945, %vm2946
          %v2948 = vsel %vm2947, %v2940, %v2944
          %v2949 = vand.u32 2147483647, %v2938
          %vm2950 = vcmp.eq.f32.partialorder %v2949, 8.507059e+37
          %v2951 = vand.u32 %v2938, 2147483648
          %v2952 = vor.u32 1.1754944e-38, %v2951
          %v2953 = vsel %vm2950, %v2952, %v2948
          %v2954 = vmul.f32 1.0, %v2953
          %v2955 = vrcp.pop %v2939
          %v2956 = vmul.f32 %v2939, %v2955
          %v2957 = vsub.f32 1.0, %v2956
          %v2958 = vmul.f32 %v2955, %v2957
          %v2959 = vadd.f32 %v2955, %v2958
          %vm2960 = vweird.f32 %v2939
          %vm2961 = vweird.f32 %v2955
          %vm2962 = vmor %vm2960, %vm2961
          %v2963 = vsel %vm2962, %v2955, %v2959
          %v2964 = vand.u32 2147483647, %v2939
          %vm2965 = vcmp.eq.f32.partialorder %v2964, 8.507059e+37
          %v2966 = vand.u32 %v2939, 2147483648
          %v2967 = vor.u32 1.1754944e-38, %v2966
          %v2968 = vsel %vm2965, %v2967, %v2963
          %v2969 = vmul.f32 1.0, %v2968
          %v2972 = vrot.slane %v2930, 3
          %v2973 = vrot.slane %v2931, 3
          %v2976 = vtanh.pop %v2972
          %v2977 = vtanh.pop %v2973
          %v2980 = vrot.slane %v2954, 1
          %v2981 = vrot.slane %v2969, 1
          %v2984 = vmul.f32 %v2980, %v2813
          %v2985 = vmul.f32 %v2981, %v2814
          %v2986 = vmul.f32 %v2954, %v2976
          %v2987 = vmul.f32 %v2969, %v2977
          %v2988 = vadd.f32 %v2984, %v2986
          %v2989 = vadd.f32 %v2985, %v2987
          %v2990 = vtanh.pop %v2988
          %v2991 = vtanh.pop %v2989
          %v2992 = vrot.slane %v2954, 2
          %v2993 = vrot.slane %v2969, 2
          %v2996 = vmul.f32 %v2992, %v2990
          %v2997 = vmul.f32 %v2993, %v2991
          %s2998 = scalar_lea.vmem [#allocation5], 4
          %v2999 = vld [vmem:[%s2998] ss:$8 sm:$0xf]
          %s3000 = scalar_lea.vmem [#allocation5], 36
          %v3001 = vld [vmem:[%s3000] ss:$8 sm:$0xf]
          %3004 = vst [vmem:[#allocation1] ss:$9 sm:$0xff] %v2996
          %s3005 = scalar_lea.vmem [#allocation1], 1
          %3006 = vst [vmem:[%s3005] ss:$9 sm:$0xff] %v2997
          %v3007 = vld [vmem:[#allocation1] sm:$0xff]
          %3009 = vmatpush.msra.mxu0 %v2291
          %3010 = vmatpush.msra.mxu0 %v2287
          %3011 = vmatpush.msra.mxu0 %v2283
          %3012 = vmatpush.msra.mxu0 %v2279
          %3013 = vmatpush.msra.mxu0 %v2275
          %3014 = vmatpush.msra.mxu0 %v2271
          %3015 = vmatpush.msra.mxu0 %v2267
          %3016 = vmatpush.msra.mxu0 %v2263
          %3017 = vmatpush.msra.mxu0 %v2259
          %3018 = vmatpush.msra.mxu0 %v2255
          %3019 = vmatpush.msra.mxu0 %v2251
          %3020 = vmatpush.msra.mxu0 %v2247
          %3021 = vmatpush.msra.mxu0 %v2243
          %3022 = vmatpush.msra.mxu0 %v2239
          %3023 = vmatpush.msra.mxu0 %v2235
          %3024 = vmatpush.msra.mxu0 %v2231
          %3025 = vmatmul.f32.gmra.mxu0 %v3007
          %v3026 = vpop.f32.mrf.mxu0
          %v3027 = vadd.f32 0.0, %v3026
          %3028 = vdwg.mxu0
          %3029 = vmatpush.msra.mxu0 %v2292
          %3030 = vmatpush.msra.mxu0 %v2288
          %3031 = vmatpush.msra.mxu0 %v2284
          %3032 = vmatpush.msra.mxu0 %v2280
          %3033 = vmatpush.msra.mxu0 %v2276
          %3034 = vmatpush.msra.mxu0 %v2272
          %3035 = vmatpush.msra.mxu0 %v2268
          %3036 = vmatpush.msra.mxu0 %v2264
          %3037 = vmatpush.msra.mxu0 %v2260
          %3038 = vmatpush.msra.mxu0 %v2256
          %3039 = vmatpush.msra.mxu0 %v2252
          %3040 = vmatpush.msra.mxu0 %v2248
          %3041 = vmatpush.msra.mxu0 %v2244
          %3042 = vmatpush.msra.mxu0 %v2240
          %3043 = vmatpush.msra.mxu0 %v2236
          %3044 = vmatpush.msra.mxu0 %v2232
          %3045 = vmatmul.f32.gmra.mxu0 %v3007
          %v3046 = vpop.f32.mrf.mxu0
          %v3047 = vadd.f32 0.0, %v3046
          %3048 = vdwg.mxu0
          %3049 = vmatpush.msra.mxu0 %v2293
          %3050 = vmatpush.msra.mxu0 %v2289
          %3051 = vmatpush.msra.mxu0 %v2285
          %3052 = vmatpush.msra.mxu0 %v2281
          %3053 = vmatpush.msra.mxu0 %v2277
          %3054 = vmatpush.msra.mxu0 %v2273
          %3055 = vmatpush.msra.mxu0 %v2269
          %3056 = vmatpush.msra.mxu0 %v2265
          %3057 = vmatpush.msra.mxu0 %v2261
          %3058 = vmatpush.msra.mxu0 %v2257
          %3059 = vmatpush.msra.mxu0 %v2253
          %3060 = vmatpush.msra.mxu0 %v2249
          %3061 = vmatpush.msra.mxu0 %v2245
          %3062 = vmatpush.msra.mxu0 %v2241
          %3063 = vmatpush.msra.mxu0 %v2237
          %3064 = vmatpush.msra.mxu0 %v2233
          %3065 = vmatmul.f32.gmra.mxu0 %v3007
          %v3066 = vpop.f32.mrf.mxu0
          %v3067 = vadd.f32 0.0, %v3066
          %3068 = vdwg.mxu0
          %3069 = vmatpush.msra.mxu0 %v2294
          %3070 = vmatpush.msra.mxu0 %v2290
          %3071 = vmatpush.msra.mxu0 %v2286
          %3072 = vmatpush.msra.mxu0 %v2282
          %3073 = vmatpush.msra.mxu0 %v2278
          %3074 = vmatpush.msra.mxu0 %v2274
          %3075 = vmatpush.msra.mxu0 %v2270
          %3076 = vmatpush.msra.mxu0 %v2266
          %3077 = vmatpush.msra.mxu0 %v2262
          %3078 = vmatpush.msra.mxu0 %v2258
          %3079 = vmatpush.msra.mxu0 %v2254
          %3080 = vmatpush.msra.mxu0 %v2250
          %3081 = vmatpush.msra.mxu0 %v2246
          %3082 = vmatpush.msra.mxu0 %v2242
          %3083 = vmatpush.msra.mxu0 %v2238
          %3084 = vmatpush.msra.mxu0 %v2234
          %3085 = vmatmul.f32.gmra.mxu0 %v3007
          %v3086 = vpop.f32.mrf.mxu0
          %v3087 = vadd.f32 0.0, %v3086
          %3088 = vdwg.mxu0
          %v3093 = vrot.slane %v3047, 7
          %v3094 = vrot.slane %v3067, 6
          %v3095 = vrot.slane %v3087, 5
          %v3096 = vsel %vm2387, %v3027, %v3093
          %v3097 = vsel %vm2389, %v3094, %v3095
          %v3098 = vsel %vm2391, %v3096, %v3097
          %v3099 = vsel %vm2393, %v3027, %v3093
          %v3100 = vsel %vm2395, %v3094, %v3095
          %v3101 = vsel %vm2397, %v3099, %v3100
          %v3102 = vrot.slane %v3101, 1
          %v3105 = vadd.f32 %v2999, %v3098
          %v3106 = vadd.f32 %v3001, %v3102
          %v3107 = vxor.u32 %v3105, 2147483648
          %v3108 = vxor.u32 %v3106, 2147483648
          %v3109 = vmul.f32 %v3107, 1.442695
          %v3110 = vpow.pop %v3109
          %v3111 = vmul.f32 %v3108, 1.442695
          %v3112 = vpow.pop %v3111
          %v3113 = vadd.f32 %v3110, 1.0
          %v3114 = vadd.f32 %v3112, 1.0
          %v3115 = vrcp.pop %v3113
          %v3116 = vmul.f32 %v3113, %v3115
          %v3117 = vsub.f32 1.0, %v3116
          %v3118 = vmul.f32 %v3115, %v3117
          %v3119 = vadd.f32 %v3115, %v3118
          %vm3120 = vweird.f32 %v3113
          %vm3121 = vweird.f32 %v3115
          %vm3122 = vmor %vm3120, %vm3121
          %v3123 = vsel %vm3122, %v3115, %v3119
          %v3124 = vand.u32 2147483647, %v3113
          %vm3125 = vcmp.eq.f32.partialorder %v3124, 8.507059e+37
          %v3126 = vand.u32 %v3113, 2147483648
          %v3127 = vor.u32 1.1754944e-38, %v3126
          %v3128 = vsel %vm3125, %v3127, %v3123
          %v3129 = vmul.f32 1.0, %v3128
          %v3130 = vrcp.pop %v3114
          %v3131 = vmul.f32 %v3114, %v3130
          %v3132 = vsub.f32 1.0, %v3131
          %v3133 = vmul.f32 %v3130, %v3132
          %v3134 = vadd.f32 %v3130, %v3133
          %vm3135 = vweird.f32 %v3114
          %vm3136 = vweird.f32 %v3130
          %vm3137 = vmor %vm3135, %vm3136
          %v3138 = vsel %vm3137, %v3130, %v3134
          %v3139 = vand.u32 2147483647, %v3114
          %vm3140 = vcmp.eq.f32.partialorder %v3139, 8.507059e+37
          %v3141 = vand.u32 %v3114, 2147483648
          %v3142 = vor.u32 1.1754944e-38, %v3141
          %v3143 = vsel %vm3140, %v3142, %v3138
          %v3144 = vmul.f32 1.0, %v3143
          %v3147 = vrot.slane %v3105, 3
          %v3148 = vrot.slane %v3106, 3
          %v3151 = vtanh.pop %v3147
          %v3152 = vtanh.pop %v3148
          %v3155 = vrot.slane %v3129, 1
          %v3156 = vrot.slane %v3144, 1
          %v3159 = vmul.f32 %v3155, %v2988
          %v3160 = vmul.f32 %v3156, %v2989
          %v3161 = vmul.f32 %v3129, %v3151
          %v3162 = vmul.f32 %v3144, %v3152
          %v3163 = vadd.f32 %v3159, %v3161
          %v3164 = vadd.f32 %v3160, %v3162
          %v3165 = vtanh.pop %v3163
          %v3166 = vtanh.pop %v3164
          %v3167 = vrot.slane %v3129, 2
          %v3168 = vrot.slane %v3144, 2
          %v3171 = vmul.f32 %v3167, %v3165
          %v3172 = vmul.f32 %v3168, %v3166
          %s3173 = scalar_lea.vmem [#allocation5], 5
          %v3174 = vld [vmem:[%s3173] ss:$8 sm:$0xf]
          %s3175 = scalar_lea.vmem [#allocation5], 37
          %v3176 = vld [vmem:[%s3175] ss:$8 sm:$0xf]
          %3179 = vst [vmem:[#allocation1] ss:$9 sm:$0xff] %v3171
          %s3180 = scalar_lea.vmem [#allocation1], 1
          %3181 = vst [vmem:[%s3180] ss:$9 sm:$0xff] %v3172
          %v3182 = vld [vmem:[#allocation1] sm:$0xff]
          %3184 = vmatpush.msra.mxu0 %v2291
          %3185 = vmatpush.msra.mxu0 %v2287
          %3186 = vmatpush.msra.mxu0 %v2283
          %3187 = vmatpush.msra.mxu0 %v2279
          %3188 = vmatpush.msra.mxu0 %v2275
          %3189 = vmatpush.msra.mxu0 %v2271
          %3190 = vmatpush.msra.mxu0 %v2267
          %3191 = vmatpush.msra.mxu0 %v2263
          %3192 = vmatpush.msra.mxu0 %v2259
          %3193 = vmatpush.msra.mxu0 %v2255
          %3194 = vmatpush.msra.mxu0 %v2251
          %3195 = vmatpush.msra.mxu0 %v2247
          %3196 = vmatpush.msra.mxu0 %v2243
          %3197 = vmatpush.msra.mxu0 %v2239
          %3198 = vmatpush.msra.mxu0 %v2235
          %3199 = vmatpush.msra.mxu0 %v2231
          %3200 = vmatmul.f32.gmra.mxu0 %v3182
          %v3201 = vpop.f32.mrf.mxu0
          %v3202 = vadd.f32 0.0, %v3201
          %3203 = vdwg.mxu0
          %3204 = vmatpush.msra.mxu0 %v2292
          %3205 = vmatpush.msra.mxu0 %v2288
          %3206 = vmatpush.msra.mxu0 %v2284
          %3207 = vmatpush.msra.mxu0 %v2280
          %3208 = vmatpush.msra.mxu0 %v2276
          %3209 = vmatpush.msra.mxu0 %v2272
          %3210 = vmatpush.msra.mxu0 %v2268
          %3211 = vmatpush.msra.mxu0 %v2264
          %3212 = vmatpush.msra.mxu0 %v2260
          %3213 = vmatpush.msra.mxu0 %v2256
          %3214 = vmatpush.msra.mxu0 %v2252
          %3215 = vmatpush.msra.mxu0 %v2248
          %3216 = vmatpush.msra.mxu0 %v2244
          %3217 = vmatpush.msra.mxu0 %v2240
          %3218 = vmatpush.msra.mxu0 %v2236
          %3219 = vmatpush.msra.mxu0 %v2232
          %3220 = vmatmul.f32.gmra.mxu0 %v3182
          %v3221 = vpop.f32.mrf.mxu0
          %v3222 = vadd.f32 0.0, %v3221
          %3223 = vdwg.mxu0
          %3224 = vmatpush.msra.mxu0 %v2293
          %3225 = vmatpush.msra.mxu0 %v2289
          %3226 = vmatpush.msra.mxu0 %v2285
          %3227 = vmatpush.msra.mxu0 %v2281
          %3228 = vmatpush.msra.mxu0 %v2277
          %3229 = vmatpush.msra.mxu0 %v2273
          %3230 = vmatpush.msra.mxu0 %v2269
          %3231 = vmatpush.msra.mxu0 %v2265
          %3232 = vmatpush.msra.mxu0 %v2261
          %3233 = vmatpush.msra.mxu0 %v2257
          %3234 = vmatpush.msra.mxu0 %v2253
          %3235 = vmatpush.msra.mxu0 %v2249
          %3236 = vmatpush.msra.mxu0 %v2245
          %3237 = vmatpush.msra.mxu0 %v2241
          %3238 = vmatpush.msra.mxu0 %v2237
          %3239 = vmatpush.msra.mxu0 %v2233
          %3240 = vmatmul.f32.gmra.mxu0 %v3182
          %v3241 = vpop.f32.mrf.mxu0
          %v3242 = vadd.f32 0.0, %v3241
          %3243 = vdwg.mxu0
          %3244 = vmatpush.msra.mxu0 %v2294
          %3245 = vmatpush.msra.mxu0 %v2290
          %3246 = vmatpush.msra.mxu0 %v2286
          %3247 = vmatpush.msra.mxu0 %v2282
          %3248 = vmatpush.msra.mxu0 %v2278
          %3249 = vmatpush.msra.mxu0 %v2274
          %3250 = vmatpush.msra.mxu0 %v2270
          %3251 = vmatpush.msra.mxu0 %v2266
          %3252 = vmatpush.msra.mxu0 %v2262
          %3253 = vmatpush.msra.mxu0 %v2258
          %3254 = vmatpush.msra.mxu0 %v2254
          %3255 = vmatpush.msra.mxu0 %v2250
          %3256 = vmatpush.msra.mxu0 %v2246
          %3257 = vmatpush.msra.mxu0 %v2242
          %3258 = vmatpush.msra.mxu0 %v2238
          %3259 = vmatpush.msra.mxu0 %v2234
          %3260 = vmatmul.f32.gmra.mxu0 %v3182
          %v3261 = vpop.f32.mrf.mxu0
          %v3262 = vadd.f32 0.0, %v3261
          %3263 = vdwg.mxu0
          %v3268 = vrot.slane %v3222, 7
          %v3269 = vrot.slane %v3242, 6
          %v3270 = vrot.slane %v3262, 5
          %v3271 = vsel %vm2387, %v3202, %v3268
          %v3272 = vsel %vm2389, %v3269, %v3270
          %v3273 = vsel %vm2391, %v3271, %v3272
          %v3274 = vsel %vm2393, %v3202, %v3268
          %v3275 = vsel %vm2395, %v3269, %v3270
          %v3276 = vsel %vm2397, %v3274, %v3275
          %v3277 = vrot.slane %v3276, 1
          %v3280 = vadd.f32 %v3174, %v3273
          %v3281 = vadd.f32 %v3176, %v3277
          %v3282 = vxor.u32 %v3280, 2147483648
          %v3283 = vxor.u32 %v3281, 2147483648
          %v3284 = vmul.f32 %v3282, 1.442695
          %v3285 = vpow.pop %v3284
          %v3286 = vmul.f32 %v3283, 1.442695
          %v3287 = vpow.pop %v3286
          %v3288 = vadd.f32 %v3285, 1.0
          %v3289 = vadd.f32 %v3287, 1.0
          %v3290 = vrcp.pop %v3288
          %v3291 = vmul.f32 %v3288, %v3290
          %v3292 = vsub.f32 1.0, %v3291
          %v3293 = vmul.f32 %v3290, %v3292
          %v3294 = vadd.f32 %v3290, %v3293
          %vm3295 = vweird.f32 %v3288
          %vm3296 = vweird.f32 %v3290
          %vm3297 = vmor %vm3295, %vm3296
          %v3298 = vsel %vm3297, %v3290, %v3294
          %v3299 = vand.u32 2147483647, %v3288
          %vm3300 = vcmp.eq.f32.partialorder %v3299, 8.507059e+37
          %v3301 = vand.u32 %v3288, 2147483648
          %v3302 = vor.u32 1.1754944e-38, %v3301
          %v3303 = vsel %vm3300, %v3302, %v3298
          %v3304 = vmul.f32 1.0, %v3303
          %v3305 = vrcp.pop %v3289
          %v3306 = vmul.f32 %v3289, %v3305
          %v3307 = vsub.f32 1.0, %v3306
          %v3308 = vmul.f32 %v3305, %v3307
          %v3309 = vadd.f32 %v3305, %v3308
          %vm3310 = vweird.f32 %v3289
          %vm3311 = vweird.f32 %v3305
          %vm3312 = vmor %vm3310, %vm3311
          %v3313 = vsel %vm3312, %v3305, %v3309
          %v3314 = vand.u32 2147483647, %v3289
          %vm3315 = vcmp.eq.f32.partialorder %v3314, 8.507059e+37
          %v3316 = vand.u32 %v3289, 2147483648
          %v3317 = vor.u32 1.1754944e-38, %v3316
          %v3318 = vsel %vm3315, %v3317, %v3313
          %v3319 = vmul.f32 1.0, %v3318
          %v3322 = vrot.slane %v3280, 3
          %v3323 = vrot.slane %v3281, 3
          %v3326 = vtanh.pop %v3322
          %v3327 = vtanh.pop %v3323
          %v3330 = vrot.slane %v3304, 1
          %v3331 = vrot.slane %v3319, 1
          %v3334 = vmul.f32 %v3330, %v3163
          %v3335 = vmul.f32 %v3331, %v3164
          %v3336 = vmul.f32 %v3304, %v3326
          %v3337 = vmul.f32 %v3319, %v3327
          %v3338 = vadd.f32 %v3334, %v3336
          %v3339 = vadd.f32 %v3335, %v3337
          %v3340 = vtanh.pop %v3338
          %v3341 = vtanh.pop %v3339
          %v3342 = vrot.slane %v3304, 2
          %v3343 = vrot.slane %v3319, 2
          %v3346 = vmul.f32 %v3342, %v3340
          %v3347 = vmul.f32 %v3343, %v3341
          %s3348 = scalar_lea.vmem [#allocation5], 6
          %v3349 = vld [vmem:[%s3348] ss:$8 sm:$0xf]
          %s3350 = scalar_lea.vmem [#allocation5], 38
          %v3351 = vld [vmem:[%s3350] ss:$8 sm:$0xf]
          %3354 = vst [vmem:[#allocation1] ss:$9 sm:$0xff] %v3346
          %s3355 = scalar_lea.vmem [#allocation1], 1
          %3356 = vst [vmem:[%s3355] ss:$9 sm:$0xff] %v3347
          %v3357 = vld [vmem:[#allocation1] sm:$0xff]
          %3359 = vmatpush.msra.mxu0 %v2291
          %3360 = vmatpush.msra.mxu0 %v2287
          %3361 = vmatpush.msra.mxu0 %v2283
          %3362 = vmatpush.msra.mxu0 %v2279
          %3363 = vmatpush.msra.mxu0 %v2275
          %3364 = vmatpush.msra.mxu0 %v2271
          %3365 = vmatpush.msra.mxu0 %v2267
          %3366 = vmatpush.msra.mxu0 %v2263
          %3367 = vmatpush.msra.mxu0 %v2259
          %3368 = vmatpush.msra.mxu0 %v2255
          %3369 = vmatpush.msra.mxu0 %v2251
          %3370 = vmatpush.msra.mxu0 %v2247
          %3371 = vmatpush.msra.mxu0 %v2243
          %3372 = vmatpush.msra.mxu0 %v2239
          %3373 = vmatpush.msra.mxu0 %v2235
          %3374 = vmatpush.msra.mxu0 %v2231
          %3375 = vmatmul.f32.gmra.mxu0 %v3357
          %v3376 = vpop.f32.mrf.mxu0
          %v3377 = vadd.f32 0.0, %v3376
          %3378 = vdwg.mxu0
          %3379 = vmatpush.msra.mxu0 %v2292
          %3380 = vmatpush.msra.mxu0 %v2288
          %3381 = vmatpush.msra.mxu0 %v2284
          %3382 = vmatpush.msra.mxu0 %v2280
          %3383 = vmatpush.msra.mxu0 %v2276
          %3384 = vmatpush.msra.mxu0 %v2272
          %3385 = vmatpush.msra.mxu0 %v2268
          %3386 = vmatpush.msra.mxu0 %v2264
          %3387 = vmatpush.msra.mxu0 %v2260
          %3388 = vmatpush.msra.mxu0 %v2256
          %3389 = vmatpush.msra.mxu0 %v2252
          %3390 = vmatpush.msra.mxu0 %v2248
          %3391 = vmatpush.msra.mxu0 %v2244
          %3392 = vmatpush.msra.mxu0 %v2240
          %3393 = vmatpush.msra.mxu0 %v2236
          %3394 = vmatpush.msra.mxu0 %v2232
          %3395 = vmatmul.f32.gmra.mxu0 %v3357
          %v3396 = vpop.f32.mrf.mxu0
          %v3397 = vadd.f32 0.0, %v3396
          %3398 = vdwg.mxu0
          %3399 = vmatpush.msra.mxu0 %v2293
          %3400 = vmatpush.msra.mxu0 %v2289
          %3401 = vmatpush.msra.mxu0 %v2285
          %3402 = vmatpush.msra.mxu0 %v2281
          %3403 = vmatpush.msra.mxu0 %v2277
          %3404 = vmatpush.msra.mxu0 %v2273
          %3405 = vmatpush.msra.mxu0 %v2269
          %3406 = vmatpush.msra.mxu0 %v2265
          %3407 = vmatpush.msra.mxu0 %v2261
          %3408 = vmatpush.msra.mxu0 %v2257
          %3409 = vmatpush.msra.mxu0 %v2253
          %3410 = vmatpush.msra.mxu0 %v2249
          %3411 = vmatpush.msra.mxu0 %v2245
          %3412 = vmatpush.msra.mxu0 %v2241
          %3413 = vmatpush.msra.mxu0 %v2237
          %3414 = vmatpush.msra.mxu0 %v2233
          %3415 = vmatmul.f32.gmra.mxu0 %v3357
          %v3416 = vpop.f32.mrf.mxu0
          %v3417 = vadd.f32 0.0, %v3416
          %3418 = vdwg.mxu0
          %3419 = vmatpush.msra.mxu0 %v2294
          %3420 = vmatpush.msra.mxu0 %v2290
          %3421 = vmatpush.msra.mxu0 %v2286
          %3422 = vmatpush.msra.mxu0 %v2282
          %3423 = vmatpush.msra.mxu0 %v2278
          %3424 = vmatpush.msra.mxu0 %v2274
          %3425 = vmatpush.msra.mxu0 %v2270
          %3426 = vmatpush.msra.mxu0 %v2266
          %3427 = vmatpush.msra.mxu0 %v2262
          %3428 = vmatpush.msra.mxu0 %v2258
          %3429 = vmatpush.msra.mxu0 %v2254
          %3430 = vmatpush.msra.mxu0 %v2250
          %3431 = vmatpush.msra.mxu0 %v2246
          %3432 = vmatpush.msra.mxu0 %v2242
          %3433 = vmatpush.msra.mxu0 %v2238
          %3434 = vmatpush.msra.mxu0 %v2234
          %3435 = vmatmul.f32.gmra.mxu0 %v3357
          %v3436 = vpop.f32.mrf.mxu0
          %v3437 = vadd.f32 0.0, %v3436
          %3438 = vdwg.mxu0
          %v3443 = vrot.slane %v3397, 7
          %v3444 = vrot.slane %v3417, 6
          %v3445 = vrot.slane %v3437, 5
          %v3446 = vsel %vm2387, %v3377, %v3443
          %v3447 = vsel %vm2389, %v3444, %v3445
          %v3448 = vsel %vm2391, %v3446, %v3447
          %v3449 = vsel %vm2393, %v3377, %v3443
          %v3450 = vsel %vm2395, %v3444, %v3445
          %v3451 = vsel %vm2397, %v3449, %v3450
          %v3452 = vrot.slane %v3451, 1
          %v3455 = vadd.f32 %v3349, %v3448
          %v3456 = vadd.f32 %v3351, %v3452
          %v3457 = vxor.u32 %v3455, 2147483648
          %v3458 = vxor.u32 %v3456, 2147483648
          %v3459 = vmul.f32 %v3457, 1.442695
          %v3460 = vpow.pop %v3459
          %v3461 = vmul.f32 %v3458, 1.442695
          %v3462 = vpow.pop %v3461
          %v3463 = vadd.f32 %v3460, 1.0
          %v3464 = vadd.f32 %v3462, 1.0
          %v3465 = vrcp.pop %v3463
          %v3466 = vmul.f32 %v3463, %v3465
          %v3467 = vsub.f32 1.0, %v3466
          %v3468 = vmul.f32 %v3465, %v3467
          %v3469 = vadd.f32 %v3465, %v3468
          %vm3470 = vweird.f32 %v3463
          %vm3471 = vweird.f32 %v3465
          %vm3472 = vmor %vm3470, %vm3471
          %v3473 = vsel %vm3472, %v3465, %v3469
          %v3474 = vand.u32 2147483647, %v3463
          %vm3475 = vcmp.eq.f32.partialorder %v3474, 8.507059e+37
          %v3476 = vand.u32 %v3463, 2147483648
          %v3477 = vor.u32 1.1754944e-38, %v3476
          %v3478 = vsel %vm3475, %v3477, %v3473
          %v3479 = vmul.f32 1.0, %v3478
          %v3480 = vrcp.pop %v3464
          %v3481 = vmul.f32 %v3464, %v3480
          %v3482 = vsub.f32 1.0, %v3481
          %v3483 = vmul.f32 %v3480, %v3482
          %v3484 = vadd.f32 %v3480, %v3483
          %vm3485 = vweird.f32 %v3464
          %vm3486 = vweird.f32 %v3480
          %vm3487 = vmor %vm3485, %vm3486
          %v3488 = vsel %vm3487, %v3480, %v3484
          %v3489 = vand.u32 2147483647, %v3464
          %vm3490 = vcmp.eq.f32.partialorder %v3489, 8.507059e+37
          %v3491 = vand.u32 %v3464, 2147483648
          %v3492 = vor.u32 1.1754944e-38, %v3491
          %v3493 = vsel %vm3490, %v3492, %v3488
          %v3494 = vmul.f32 1.0, %v3493
          %v3497 = vrot.slane %v3455, 3
          %v3498 = vrot.slane %v3456, 3
          %v3501 = vtanh.pop %v3497
          %v3502 = vtanh.pop %v3498
          %v3505 = vrot.slane %v3479, 1
          %v3506 = vrot.slane %v3494, 1
          %v3509 = vmul.f32 %v3505, %v3338
          %v3510 = vmul.f32 %v3506, %v3339
          %v3511 = vmul.f32 %v3479, %v3501
          %v3512 = vmul.f32 %v3494, %v3502
          %v3513 = vadd.f32 %v3509, %v3511
          %v3514 = vadd.f32 %v3510, %v3512
          %v3515 = vtanh.pop %v3513
          %v3516 = vtanh.pop %v3514
          %v3517 = vrot.slane %v3479, 2
          %v3518 = vrot.slane %v3494, 2
          %v3521 = vmul.f32 %v3517, %v3515
          %v3522 = vmul.f32 %v3518, %v3516
          %s3523 = scalar_lea.vmem [#allocation5], 7
          %v3524 = vld [vmem:[%s3523] ss:$8 sm:$0xf]
          %s3525 = scalar_lea.vmem [#allocation5], 39
          %v3526 = vld [vmem:[%s3525] ss:$8 sm:$0xf]
          %3529 = vst [vmem:[#allocation1] ss:$9 sm:$0xff] %v3521
          %s3530 = scalar_lea.vmem [#allocation1], 1
          %3531 = vst [vmem:[%s3530] ss:$9 sm:$0xff] %v3522
          %v3532 = vld [vmem:[#allocation1] sm:$0xff]
          %3534 = vmatpush.msra.mxu0 %v2291
          %3535 = vmatpush.msra.mxu0 %v2287
          %3536 = vmatpush.msra.mxu0 %v2283
          %3537 = vmatpush.msra.mxu0 %v2279
          %3538 = vmatpush.msra.mxu0 %v2275
          %3539 = vmatpush.msra.mxu0 %v2271
          %3540 = vmatpush.msra.mxu0 %v2267
          %3541 = vmatpush.msra.mxu0 %v2263
          %3542 = vmatpush.msra.mxu0 %v2259
          %3543 = vmatpush.msra.mxu0 %v2255
          %3544 = vmatpush.msra.mxu0 %v2251
          %3545 = vmatpush.msra.mxu0 %v2247
          %3546 = vmatpush.msra.mxu0 %v2243
          %3547 = vmatpush.msra.mxu0 %v2239
          %3548 = vmatpush.msra.mxu0 %v2235
          %3549 = vmatpush.msra.mxu0 %v2231
          %3550 = vmatmul.f32.gmra.mxu0 %v3532
          %v3551 = vpop.f32.mrf.mxu0
          %v3552 = vadd.f32 0.0, %v3551
          %3553 = vdwg.mxu0
          %3554 = vmatpush.msra.mxu0 %v2292
          %3555 = vmatpush.msra.mxu0 %v2288
          %3556 = vmatpush.msra.mxu0 %v2284
          %3557 = vmatpush.msra.mxu0 %v2280
          %3558 = vmatpush.msra.mxu0 %v2276
          %3559 = vmatpush.msra.mxu0 %v2272
          %3560 = vmatpush.msra.mxu0 %v2268
          %3561 = vmatpush.msra.mxu0 %v2264
          %3562 = vmatpush.msra.mxu0 %v2260
          %3563 = vmatpush.msra.mxu0 %v2256
          %3564 = vmatpush.msra.mxu0 %v2252
          %3565 = vmatpush.msra.mxu0 %v2248
          %3566 = vmatpush.msra.mxu0 %v2244
          %3567 = vmatpush.msra.mxu0 %v2240
          %3568 = vmatpush.msra.mxu0 %v2236
          %3569 = vmatpush.msra.mxu0 %v2232
          %3570 = vmatmul.f32.gmra.mxu0 %v3532
          %v3571 = vpop.f32.mrf.mxu0
          %v3572 = vadd.f32 0.0, %v3571
          %3573 = vdwg.mxu0
          %3574 = vmatpush.msra.mxu0 %v2293
          %3575 = vmatpush.msra.mxu0 %v2289
          %3576 = vmatpush.msra.mxu0 %v2285
          %3577 = vmatpush.msra.mxu0 %v2281
          %3578 = vmatpush.msra.mxu0 %v2277
          %3579 = vmatpush.msra.mxu0 %v2273
          %3580 = vmatpush.msra.mxu0 %v2269
          %3581 = vmatpush.msra.mxu0 %v2265
          %3582 = vmatpush.msra.mxu0 %v2261
          %3583 = vmatpush.msra.mxu0 %v2257
          %3584 = vmatpush.msra.mxu0 %v2253
          %3585 = vmatpush.msra.mxu0 %v2249
          %3586 = vmatpush.msra.mxu0 %v2245
          %3587 = vmatpush.msra.mxu0 %v2241
          %3588 = vmatpush.msra.mxu0 %v2237
          %3589 = vmatpush.msra.mxu0 %v2233
          %3590 = vmatmul.f32.gmra.mxu0 %v3532
          %v3591 = vpop.f32.mrf.mxu0
          %v3592 = vadd.f32 0.0, %v3591
          %3593 = vdwg.mxu0
          %3594 = vmatpush.msra.mxu0 %v2294
          %3595 = vmatpush.msra.mxu0 %v2290
          %3596 = vmatpush.msra.mxu0 %v2286
          %3597 = vmatpush.msra.mxu0 %v2282
          %3598 = vmatpush.msra.mxu0 %v2278
          %3599 = vmatpush.msra.mxu0 %v2274
          %3600 = vmatpush.msra.mxu0 %v2270
          %3601 = vmatpush.msra.mxu0 %v2266
          %3602 = vmatpush.msra.mxu0 %v2262
          %3603 = vmatpush.msra.mxu0 %v2258
          %3604 = vmatpush.msra.mxu0 %v2254
          %3605 = vmatpush.msra.mxu0 %v2250
          %3606 = vmatpush.msra.mxu0 %v2246
          %3607 = vmatpush.msra.mxu0 %v2242
          %3608 = vmatpush.msra.mxu0 %v2238
          %3609 = vmatpush.msra.mxu0 %v2234
          %3610 = vmatmul.f32.gmra.mxu0 %v3532
          %v3611 = vpop.f32.mrf.mxu0
          %v3612 = vadd.f32 0.0, %v3611
          %3613 = vdwg.mxu0
          %v3618 = vrot.slane %v3572, 7
          %v3619 = vrot.slane %v3592, 6
          %v3620 = vrot.slane %v3612, 5
          %v3621 = vsel %vm2387, %v3552, %v3618
          %v3622 = vsel %vm2389, %v3619, %v3620
          %v3623 = vsel %vm2391, %v3621, %v3622
          %v3624 = vsel %vm2393, %v3552, %v3618
          %v3625 = vsel %vm2395, %v3619, %v3620
          %v3626 = vsel %vm2397, %v3624, %v3625
          %v3627 = vrot.slane %v3626, 1
          %v3630 = vadd.f32 %v3524, %v3623
          %v3631 = vadd.f32 %v3526, %v3627
          %v3632 = vxor.u32 %v3630, 2147483648
          %v3633 = vxor.u32 %v3631, 2147483648
          %v3634 = vmul.f32 %v3632, 1.442695
          %v3635 = vpow.pop %v3634
          %v3636 = vmul.f32 %v3633, 1.442695
          %v3637 = vpow.pop %v3636
          %v3638 = vadd.f32 %v3635, 1.0
          %v3639 = vadd.f32 %v3637, 1.0
          %v3640 = vrcp.pop %v3638
          %v3641 = vmul.f32 %v3638, %v3640
          %v3642 = vsub.f32 1.0, %v3641
          %v3643 = vmul.f32 %v3640, %v3642
          %v3644 = vadd.f32 %v3640, %v3643
          %vm3645 = vweird.f32 %v3638
          %vm3646 = vweird.f32 %v3640
          %vm3647 = vmor %vm3645, %vm3646
          %v3648 = vsel %vm3647, %v3640, %v3644
          %v3649 = vand.u32 2147483647, %v3638
          %vm3650 = vcmp.eq.f32.partialorder %v3649, 8.507059e+37
          %v3651 = vand.u32 %v3638, 2147483648
          %v3652 = vor.u32 1.1754944e-38, %v3651
          %v3653 = vsel %vm3650, %v3652, %v3648
          %v3654 = vmul.f32 1.0, %v3653
          %v3655 = vrcp.pop %v3639
          %v3656 = vmul.f32 %v3639, %v3655
          %v3657 = vsub.f32 1.0, %v3656
          %v3658 = vmul.f32 %v3655, %v3657
          %v3659 = vadd.f32 %v3655, %v3658
          %vm3660 = vweird.f32 %v3639
          %vm3661 = vweird.f32 %v3655
          %vm3662 = vmor %vm3660, %vm3661
          %v3663 = vsel %vm3662, %v3655, %v3659
          %v3664 = vand.u32 2147483647, %v3639
          %vm3665 = vcmp.eq.f32.partialorder %v3664, 8.507059e+37
          %v3666 = vand.u32 %v3639, 2147483648
          %v3667 = vor.u32 1.1754944e-38, %v3666
          %v3668 = vsel %vm3665, %v3667, %v3663
          %v3669 = vmul.f32 1.0, %v3668
          %v3672 = vrot.slane %v3630, 3
          %v3673 = vrot.slane %v3631, 3
          %v3676 = vtanh.pop %v3672
          %v3677 = vtanh.pop %v3673
          %v3680 = vrot.slane %v3654, 1
          %v3681 = vrot.slane %v3669, 1
          %v3684 = vmul.f32 %v3680, %v3513
          %v3685 = vmul.f32 %v3681, %v3514
          %v3686 = vmul.f32 %v3654, %v3676
          %v3687 = vmul.f32 %v3669, %v3677
          %v3688 = vadd.f32 %v3684, %v3686
          %v3689 = vadd.f32 %v3685, %v3687
          %v3690 = vtanh.pop %v3688
          %v3691 = vtanh.pop %v3689
          %v3692 = vrot.slane %v3654, 2
          %v3693 = vrot.slane %v3669, 2
          %v3696 = vmul.f32 %v3692, %v3690
          %v3697 = vmul.f32 %v3693, %v3691
          %3700 = vst [vmem:[#allocation1] ss:$9 sm:$0xff] %v3696
          %s3701 = scalar_lea.vmem [#allocation1], 1
          %3702 = vst [vmem:[%s3701] ss:$9 sm:$0xff] %v3697
          %v3703 = vld [vmem:[#allocation1] sm:$0xff]
          %3705 = vst [vmem:[#allocation2] sm:$0x3] %v3703
          %3708 = vst [vmem:[#allocation1] ss:$9 sm:$0xff] %v3688
          %s3709 = scalar_lea.vmem [#allocation1], 1
          %3710 = vst [vmem:[%s3709] ss:$9 sm:$0xff] %v3689
          %v3711 = vld [vmem:[#allocation1] sm:$0xff]
          %3713 = vst [vmem:[#allocation3] sm:$0x3] %v3711
        $region64: #{tpu_custom_call.1} parent=43 // pred_fallthru
          _
        %p3714 = scmp.eq.s32.totalorder %s25, 1
        // Predicated region
        $region65: #{tpu_custom_call.1} parent=43 // pred_check
          %p3715 = pneg %p3714
        $region66: #{tpu_custom_call.1} parent=43 // pred_check_branch
          %3717 = sbr.rel (%p3715) target = $region68
        $region67: #{tpu_custom_call.1} parent=43 // pred_region
          %v3718 = vld [vmem:[#allocation2] sm:$0x3]
          %v3719 = vpack.c.bf16 %v3718, %v3718
          %v3720 = vld [vmem:[%s4] sm:$0xf]
          %v3721 = vld [vmem:[%s4 + $0x4] sm:$0xf]
          %v3722 = vld [vmem:[%s4 + $0x8] sm:$0xf]
          %v3723 = vld [vmem:[%s4 + $0xc] sm:$0xf]
          %v3724 = vld [vmem:[%s4 + $0x10] sm:$0xf]
          %v3725 = vld [vmem:[%s4 + $0x14] sm:$0xf]
          %v3726 = vld [vmem:[%s4 + $0x18] sm:$0xf]
          %v3727 = vld [vmem:[%s4 + $0x1c] sm:$0xf]
          %v3728 = vld [vmem:[%s4 + $0x20] sm:$0xf]
          %v3729 = vld [vmem:[%s4 + $0x24] sm:$0xf]
          %v3730 = vld [vmem:[%s4 + $0x28] sm:$0xf]
          %v3731 = vld [vmem:[%s4 + $0x2c] sm:$0xf]
          %v3732 = vld [vmem:[%s4 + $0x30] sm:$0xf]
          %v3733 = vld [vmem:[%s4 + $0x34] sm:$0xf]
          %v3734 = vld [vmem:[%s4 + $0x38] sm:$0xf]
          %v3735 = vld [vmem:[%s4 + $0x3c] sm:$0xf]
          %v3736 = vld [vmem:[%s5] sm:$0x1]
          %v3738 = vperm.slane %v3736, 0
          %v3756 = vunpack.c.l.b16 %v3720
          %v3757 = vunpack.c.l.b16 %v3721
          %v3758 = vunpack.c.l.b16 %v3722
          %v3759 = vunpack.c.l.b16 %v3723
          %v3760 = vunpack.c.l.b16 %v3724
          %v3761 = vunpack.c.l.b16 %v3725
          %v3762 = vunpack.c.l.b16 %v3726
          %v3763 = vunpack.c.l.b16 %v3727
          %v3764 = vunpack.c.l.b16 %v3728
          %v3765 = vunpack.c.l.b16 %v3729
          %v3766 = vunpack.c.l.b16 %v3730
          %v3767 = vunpack.c.l.b16 %v3731
          %v3768 = vunpack.c.l.b16 %v3732
          %v3769 = vunpack.c.l.b16 %v3733
          %v3770 = vunpack.c.l.b16 %v3734
          %v3771 = vunpack.c.l.b16 %v3735
          %v3772 = vpack.c.b16 %v3757, %v3756
          %v3773 = vpack.c.b16 %v3759, %v3758
          %v3774 = vpack.c.b16 %v3761, %v3760
          %v3775 = vpack.c.b16 %v3763, %v3762
          %v3776 = vpack.c.b16 %v3765, %v3764
          %v3777 = vpack.c.b16 %v3767, %v3766
          %v3778 = vpack.c.b16 %v3769, %v3768
          %v3779 = vpack.c.b16 %v3771, %v3770
          %3788 = vmatpush.bf16.msra.mxu0 %v3779
          %3789 = vmatpush.bf16.msra.mxu0 %v3778
          %3790 = vmatpush.bf16.msra.mxu0 %v3777
          %3791 = vmatpush.bf16.msra.mxu0 %v3776
          %3792 = vmatpush.bf16.msra.mxu0 %v3775
          %3793 = vmatpush.bf16.msra.mxu0 %v3774
          %3794 = vmatpush.bf16.msra.mxu0 %v3773
          %3795 = vmatpush.bf16.msra.mxu0 %v3772
          %3796 = vmatmul.bf16.gmra.mxu0 %v3719
          %v3797 = vpop.f32.mrf.mxu0
          %v3798 = vadd.f32 %v3738, %v3797
          %v3799 = vpop.f32.mrf.mxu0
          %3800 = vdwg.mxu0
          %vm3801 = vcmask 254976
          %3802 = vst.msk [vmem:[#allocation11] sm:$0x3] %vm3801, %v3798
        $region68: #{tpu_custom_call.1} parent=43 // pred_fallthru
          _
        // Predicated region
        $region69: #{tpu_custom_call.1} parent=43 // pred_check
          %p3803 = pneg %p187
        $region70: #{tpu_custom_call.1} parent=43 // pred_check_branch
          %3805 = sbr.rel (%p3803) target = $region72
        $region71: #{tpu_custom_call.1} parent=43 // pred_region
          %3807 = vsyncadd [#allocation8], 0
          %s3808 = smul.addr %s24, 2
          %s3809 = scalar_lea.hbm %s6, %s3808
          %s3811 = sshll.u32 [#allocation11], 4
          %s3812 = int_to_ptr.vmem [resolvable:$true] %s3811
          %s3813 = sshll.u32 %s3809, 4
          %s3814 = int_to_ptr.hbm [resolvable:$true] %s3813
          %3816 = dma.vmem_to_hbm [thread:$0]  %s3812, 32, %s3814, [#allocation8]
        $region72: #{tpu_custom_call.1} parent=43 // pred_fallthru
          _
        // Predicated region
        $region73: #{tpu_custom_call.1} parent=43 // pred_check
          %p3817 = pneg %p187
        $region74: #{tpu_custom_call.1} parent=43 // pred_check_branch
          %3819 = sbr.rel (%p3817) target = $region76
        $region75: #{tpu_custom_call.1} parent=43 // pred_region
          %3821 = dma.done [#allocation8], 32
        $region76: #{tpu_custom_call.1} parent=43 // pred_fallthru
          _
      $region44: #{tpu_custom_call.1} parent=5 // pred_fallthru
        _
      %p3822 = scmp.le.s32.totalorder 2, %s15
      // Predicated region
      $region77: #{tpu_custom_call.1} parent=5 // pred_check
        %p3823 = pneg %p3822
      $region78: #{tpu_custom_call.1} parent=5 // pred_check_branch
        %3825 = sbr.rel (%p3823) target = $region80
      $region79: #{tpu_custom_call.1} parent=5 // pred_region
        %s3826 = ssub.s32 %s15, 2
      $region80: #{tpu_custom_call.1} parent=5 // pred_fallthru
        _
    $region6: #{tpu_custom_call.1} parent=1 // loop_footer
      %s19 = sadd.s32 1, %s15
    $region7: #{tpu_custom_call.1} parent=1 // loop_footer_branch
      %14 = sbr.rel target = $region3
    $region8: #{tpu_custom_call.1} parent=1 // loop_exit
      _
    %3827 = vsyncpa [#allocation7], 1
    %s3828 = scalar_lea.sflag [#allocation7], 1
    %3829 = vsyncpa %s3828, 1
    %3830 = vsyncpa [#allocation10], 1
    %3831 = vsyncpa [#allocation8], 1
    %s3832 = scalar_lea.sflag [#allocation8], 1
    %3833 = vsyncpa %s3832, 1

</llo_original>
